<compile_context>
chip_gen: v6e
topology: v6e:2x2x1
jax: 0.10.0
libtpu: 0.0.40
codegen_flags: <defaults>
</compile_context>

<pallas_src>
import functools
import math

import jax
import jax.numpy as jnp
import numpy as np
from jax.experimental import pallas as pl
from jax.experimental.pallas import tpu as pltpu


# Row layout of the packed per-layer (11, H) bias / LayerNorm tensor.
_V_SA_BQ, _V_SA_BK, _V_SA_BV, _V_SA_BO = 0, 1, 2, 3
_V_EA_BQ, _V_EA_BK, _V_EA_BV, _V_EA_BO = 4, 5, 6, 7
_V_PF_B2, _V_LN_G, _V_LN_B = 8, 9, 10
_N_VEC_ROWS = 11


# ---------------------------------------------------------------------------
# In-kernel helpers (f32 math, bf16 MXU inputs with f32 accumulation).
# ---------------------------------------------------------------------------
def _softmax_lastdim(x):
    m = jnp.max(x, axis=-1, keepdims=True)
    e = jnp.exp(x - m)
    return e * pl.reciprocal(jnp.sum(e, axis=-1, keepdims=True), approx=True)


def _layer_norm(x, gamma, beta, eps=1e-5):
    mu = jnp.mean(x, axis=-1, keepdims=True)
    xc = x - mu
    var = jnp.mean(xc * xc, axis=-1, keepdims=True)
    return xc * jax.lax.rsqrt(var + eps) * gamma + beta


def _split_heads(x, B, T, n_heads, hd):
    """(B*T, n_heads*hd) f32 -> (B*n_heads, T, hd) bf16 head-batched layout.

    Built from static row/lane slices + stack, which lowers robustly.  For large
    B*n_heads this should become a reshape/transpose to keep IR size bounded.
    """
    parts = []
    for b in range(B):
        xb = x[b * T:(b + 1) * T, :]
        for h in range(n_heads):
            parts.append(xb[:, h * hd:(h + 1) * hd])
    return jnp.stack(parts, axis=0).astype(jnp.bfloat16)


def _merge_heads(ctx, B, T, n_heads, hd):
    """(B*n_heads, T, hd) f32 -> (B*T, n_heads*hd): concat heads along lanes."""
    rows = []
    for b in range(B):
        rows.append(jnp.concatenate(
            [ctx[b * n_heads + h] for h in range(n_heads)], axis=-1))
    return jnp.concatenate(rows, axis=0)


def _attend(q, k, v, w_o, b_o, *, B, Tq, Tkv, n_heads):
    """Head-batched attention + concat-heads output projection.

    q: (B*Tq, H), k/v: (B*Tkv, H) f32.  1/sqrt(head_dim) is already folded into
    W_q / b_q, so the energy needs no extra scaling pass.
    """
    H = q.shape[-1]
    hd = H // n_heads
    qh = _split_heads(q, B, Tq, n_heads, hd)          # (B*nh, Tq, hd) bf16
    kh = _split_heads(k, B, Tkv, n_heads, hd)         # (B*nh, Tkv, hd) bf16
    vh = _split_heads(v, B, Tkv, n_heads, hd)         # (B*nh, Tkv, hd) bf16
    energy = jax.lax.dot_general(qh, kh, (((2,), (2,)), ((0,), (0,))),
                                 preferred_element_type=jnp.float32)
    # TODO(synk): attention mask (trg_mask / src_mask) not applied (mask=None path).
    attn = _softmax_lastdim(energy)                   # (B*nh, Tq, Tkv) f32
    ctx = jax.lax.dot_general(attn.astype(jnp.bfloat16), vh,
                              (((2,), (1,)), ((0,), (0,))),
                              preferred_element_type=jnp.float32)
    cat = _merge_heads(ctx, B, Tq, n_heads, hd)       # (B*Tq, H) f32
    return (jnp.dot(cat.astype(jnp.bfloat16), w_o,
                    preferred_element_type=jnp.float32) + b_o)


# ---------------------------------------------------------------------------
# Fully fused decoder kernel: one grid step == one layer; head fused at the end.
# ---------------------------------------------------------------------------
def decoder_kernel(trg0_ref, src_ref,
                   sa_wqkv, sa_wo, ea_wq, ea_wkv, ea_wo,
                   pf_w1, pf_w2, vecs_ref, pf_b1_ref,
                   fc1_w, head_vecs,
                   out_ref, trg_state,
                   *, B, T, S, H, n_heads, n_layers):
    l = pl.program_id(0)

    @pl.when(l == 0)
    def _():
        trg_state[...] = trg0_ref[...]

    x = trg_state[...]                     # (B*T, H) f32, resident across layers
    src = src_ref[...]                     # (B*S, H) bf16
    vecs = vecs_ref[0]                     # (11, H) f32

    def vrow(i):
        return vecs[i:i + 1, :]

    ln_g, ln_b = vrow(_V_LN_G), vrow(_V_LN_B)

    # --- self-attention: fused (H, 3H) QKV projection + residual + LN ---
    xb = x.astype(jnp.bfloat16)
    qkv = jnp.dot(xb, sa_wqkv[0], preferred_element_type=jnp.float32)   # (B*T, 3H)
    q = qkv[:, 0 * H:1 * H] + vrow(_V_SA_BQ)
    k = qkv[:, 1 * H:2 * H] + vrow(_V_SA_BK)
    v = qkv[:, 2 * H:3 * H] + vrow(_V_SA_BV)
    sa = _attend(q, k, v, sa_wo[0], vrow(_V_SA_BO),
                 B=B, Tq=T, Tkv=T, n_heads=n_heads)
    x = _layer_norm(x + sa, ln_g, ln_b)

    # --- cross-attention: (H,H) Q proj + fused (H,2H) KV proj from src + LN ---
    xb = x.astype(jnp.bfloat16)
    q = jnp.dot(xb, ea_wq[0], preferred_element_type=jnp.float32) + vrow(_V_EA_BQ)
    kv = jnp.dot(src, ea_wkv[0], preferred_element_type=jnp.float32)    # (B*S, 2H)
    k = kv[:, 0 * H:1 * H] + vrow(_V_EA_BK)
    v = kv[:, 1 * H:2 * H] + vrow(_V_EA_BV)
    ea = _attend(q, k, v, ea_wo[0], vrow(_V_EA_BO),
                 B=B, Tq=T, Tkv=S, n_heads=n_heads)
    x = _layer_norm(x + ea, ln_g, ln_b)

    # --- position-wise feedforward + residual + LN ---
    # TODO(synk): for large pf_dim, chunk the pf axis with lax.fori_loop(unroll=True).
    xb = x.astype(jnp.bfloat16)
    h1 = jnp.maximum(jnp.dot(xb, pf_w1[0], preferred_element_type=jnp.float32)
                     + pf_b1_ref[0], 0.0)                               # (B*T, PF)
    ff = jnp.dot(h1.astype(jnp.bfloat16), pf_w2[0],
                 preferred_element_type=jnp.float32) + vrow(_V_PF_B2)
    x = _layer_norm(x + ff, ln_g, ln_b)

    trg_state[...] = x

    # --- norm-softmax pooling + fc_1 -> ReLU -> fc_2, fused into the last step ---
    @pl.when(l == n_layers - 1)
    def _():
        hv = head_vecs[...]                                  # (3, FC) f32
        fc1_b = hv[0:1, :]
        fc2_wt = hv[1:2, :]
        fc2_b = hv[2:3, 0:1]
        pooled_rows = []
        for b in range(B):
            xb_ = x[b * T:(b + 1) * T, :]                               # (T, H) f32
            nrm = jnp.sqrt(jnp.sum(xb_ * xb_, axis=-1, keepdims=True))  # (T, 1)
            e = jnp.exp(nrm - jnp.max(nrm, axis=0, keepdims=True))
            a = e / jnp.sum(e, axis=0, keepdims=True)   # exact softmax (feeds output)
            # NOTE: for real T/H sizes this weighted sum should be a (1,T)@(T,H)
            # dot_general on the MXU; at T=8/H=32 the VPU form is equivalent.
            pooled_rows.append(jnp.sum(a * xb_, axis=0, keepdims=True))  # (1, H)
        pooled = jnp.concatenate(pooled_rows, axis=0)                    # (B, H)
        h = jnp.maximum(
            jnp.dot(pooled.astype(jnp.bfloat16), fc1_w[...],
                    preferred_element_type=jnp.float32) + fc1_b, 0.0)    # (B, FC)
        # fc_2 has out_features == 1 -> lane reduction.  Dropout(0.2) is identity.
        y = jnp.sum(h * fc2_wt, axis=-1, keepdims=True) + fc2_b          # (B, 1)
        out_ref[...] = y.astype(out_ref.dtype)


# ---------------------------------------------------------------------------
# Wrapper: one pallas_call for the whole Decoder forward.
# ---------------------------------------------------------------------------
def _padded_bytes(shape, dtype):
    dims = list(shape)
    if len(dims) >= 1:
        dims[-1] = -(-dims[-1] // 128) * 128
    if len(dims) >= 2:
        dims[-2] = -(-dims[-2] // 8) * 8
    n = 1
    for d in dims:
        n *= int(d)
    return n * jnp.dtype(dtype).itemsize


def _derive_vmem_limit(block_list, scratch_list):
    # 2x for the runtime's double buffering of pipelined blocks, generous headroom
    # for relayout temporaries.  Capped below v7x's 64 MiB physical VMEM; v5e/v6e
    # (128 MiB) are covered a fortiori.
    need = sum(2 * _padded_bytes(s, d) for s, d in block_list)
    need += sum(_padded_bytes(s, d) for s, d in scratch_list)
    return int(min(56 << 20, max(32 << 20, 4 * need + (8 << 20))))


def decoder_forward(trg, src, kp, *, n_heads):
    B, T, H = trg.shape
    S = src.shape[1]
    L = kp["sa_wqkv"].shape[0]

    trg2 = trg.reshape(B * T, H)                        # batch folded into M dim
    src2 = src.reshape(B * S, H).astype(jnp.bfloat16)   # only ever a matmul operand

    kernel = functools.partial(decoder_kernel, B=B, T=T, S=S, H=H,
                               n_heads=n_heads, n_layers=L)

    def per_layer(arr):
        zeros = (0,) * (arr.ndim - 1)
        return pl.BlockSpec((1,) + arr.shape[1:], lambda l: (l,) + zeros)

    def whole(arr):
        zeros = (0,) * arr.ndim
        # Constant index map: block is fetched once and stays resident.
        return pl.BlockSpec(arr.shape, lambda l: zeros)

    layer_arrs = [kp["sa_wqkv"], kp["sa_wo"], kp["ea_wq"], kp["ea_wkv"],
                  kp["ea_wo"], kp["pf_w1"], kp["pf_w2"], kp["vecs"], kp["pf_b1"]]

    in_specs = ([whole(trg2), whole(src2)]
                + [per_layer(a) for a in layer_arrs]
                + [whole(kp["fc1_w"]), whole(kp["head_vecs"])])
    out_spec = pl.BlockSpec((B, 1), lambda l: (0, 0))

    block_list = ([(trg2.shape, trg2.dtype), (src2.shape, src2.dtype)]
                  + [((1,) + a.shape[1:], a.dtype) for a in layer_arrs]
                  + [(kp["fc1_w"].shape, kp["fc1_w"].dtype),
                     (kp["head_vecs"].shape, kp["head_vecs"].dtype),
                     ((B, 1), jnp.float32)])
    vmem_limit = _derive_vmem_limit(block_list, [((B * T, H), jnp.float32)])

    return pl.pallas_call(
        kernel,
        out_shape=jax.ShapeDtypeStruct((B, 1), jnp.float32),
        grid_spec=pltpu.PrefetchScalarGridSpec(
            num_scalar_prefetch=0,
            grid=(L,),
            in_specs=in_specs,
            out_specs=out_spec,
            scratch_shapes=[pltpu.VMEM((B * T, H), jnp.float32)]),
        compiler_params=pltpu.CompilerParams(
            dimension_semantics=("arbitrary",),     # sequential layer dependency
            vmem_limit_bytes=vmem_limit),
    )(trg2, src2, *layer_arrs, kp["fc1_w"], kp["head_vecs"])


# ---------------------------------------------------------------------------
# Parameter init (PyTorch-like f32 layout) and kernel-form preprocessing.
# ---------------------------------------------------------------------------
def init_raw_params(key, hid_dim, pf_dim, n_layers, fc_dim=256):
    def keygen(k):
        while True:
            k, sub = jax.random.split(k)
            yield sub
    kg = keygen(key)

    def lin(din, dout):  # nn.Linear weight pre-transposed to (in, out)
        w = jax.random.normal(next(kg), (din, dout), jnp.float32) * 0.05
        b = jax.random.normal(next(kg), (1, dout), jnp.float32) * 0.05
        return w, b

    layers = []
    for _ in range(n_layers):
        lp = {}
        for pre in ("sa", "ea"):
            for nm in ("q", "k", "v", "o"):
                lp[f"{pre}_w{nm}"], lp[f"{pre}_b{nm}"] = lin(hid_dim, hid_dim)
        lp["pf_w1"], lp["pf_b1"] = lin(hid_dim, pf_dim)
        lp["pf_w2"], lp["pf_b2"] = lin(pf_dim, hid_dim)
        lp["ln_g"] = jnp.ones((1, hid_dim), jnp.float32)    # LayerNorm defaults
        lp["ln_b"] = jnp.zeros((1, hid_dim), jnp.float32)
        layers.append(lp)
    fc1_w, fc1_b = lin(hid_dim, fc_dim)
    fc2_w, fc2_b = lin(fc_dim, 1)
    # NOTE: self.ft = nn.Linear(200, 256) is unused in Decoder.forward -> omitted.
    return {"layers": layers, "fc1_w": fc1_w, "fc1_b": fc1_b,
            "fc2_w": fc2_w, "fc2_b": fc2_b}


def prep_kernel_params(raw, n_heads):
    """Host-side preprocessing for the fused kernel.

    * Q/K/V fused into full-width (H,3H) / (H,2H) matmul weights, bf16.
    * 1/sqrt(head_dim) folded into W_q / b_q.
    * Per-layer weights stacked along a leading layer axis.
    * All H-wide biases + LayerNorm vectors packed into one (L, 11, H) tensor.
    """
    H = raw["layers"][0]["ln_g"].shape[-1]
    hd = H // n_heads
    inv_scale = 1.0 / math.sqrt(hd)
    FC = raw["fc1_w"].shape[-1]

    def stack(fn, dtype=None):
        arr = jnp.stack([fn(lp) for lp in raw["layers"]], axis=0)
        return arr.astype(dtype) if dtype is not None else arr

    kp = {}
    kp["sa_wqkv"] = stack(lambda lp: jnp.concatenate(
        [lp["sa_wq"] * inv_scale, lp["sa_wk"], lp["sa_wv"]], axis=1), jnp.bfloat16)
    kp["sa_wo"] = stack(lambda lp: lp["sa_wo"], jnp.bfloat16)
    kp["ea_wq"] = stack(lambda lp: lp["ea_wq"] * inv_scale, jnp.bfloat16)
    kp["ea_wkv"] = stack(lambda lp: jnp.concatenate(
        [lp["ea_wk"], lp["ea_wv"]], axis=1), jnp.bfloat16)
    kp["ea_wo"] = stack(lambda lp: lp["ea_wo"], jnp.bfloat16)
    kp["pf_w1"] = stack(lambda lp: lp["pf_w1"], jnp.bfloat16)
    kp["pf_w2"] = stack(lambda lp: lp["pf_w2"], jnp.bfloat16)
    kp["pf_b1"] = stack(lambda lp: lp["pf_b1"])                  # (L, 1, PF) f32
    kp["vecs"] = stack(lambda lp: jnp.concatenate(
        [lp["sa_bq"] * inv_scale, lp["sa_bk"], lp["sa_bv"], lp["sa_bo"],
         lp["ea_bq"] * inv_scale, lp["ea_bk"], lp["ea_bv"], lp["ea_bo"],
         lp["pf_b2"], lp["ln_g"], lp["ln_b"]], axis=0))          # (L, 11, H) f32
    kp["fc1_w"] = raw["fc1_w"].astype(jnp.bfloat16)
    kp["head_vecs"] = jnp.concatenate(
        [raw["fc1_b"],
         raw["fc2_w"].T,
         jnp.concatenate([raw["fc2_b"],
                          jnp.zeros((1, FC - 1), jnp.float32)], axis=1)],
        axis=0)                                                  # (3, FC) f32
    return kp


# ---------------------------------------------------------------------------
# Pure-JAX reference (mirrors the PyTorch forward) for a correctness check.
# ---------------------------------------------------------------------------
def reference(trg, src, raw, n_heads):
    H = trg.shape[-1]
    hd = H // n_heads
    scale = math.sqrt(hd)

    def ln(x, lp):
        mu = x.mean(-1, keepdims=True)
        var = ((x - mu) ** 2).mean(-1, keepdims=True)
        return (x - mu) / jnp.sqrt(var + 1e-5) * lp["ln_g"] + lp["ln_b"]

    def mha(q_in, kv_in, lp, pre):
        B, T, _ = q_in.shape
        S = kv_in.shape[1]
        Q = q_in @ lp[f"{pre}_wq"] + lp[f"{pre}_bq"]
        K = kv_in @ lp[f"{pre}_wk"] + lp[f"{pre}_bk"]
        V = kv_in @ lp[f"{pre}_wv"] + lp[f"{pre}_bv"]
        Q = Q.reshape(B, T, n_heads, hd).transpose(0, 2, 1, 3)
        K = K.reshape(B, S, n_heads, hd).transpose(0, 2, 1, 3)
        V = V.reshape(B, S, n_heads, hd).transpose(0, 2, 1, 3)
        e = jnp.einsum("bhqd,bhkd->bhqk", Q, K) / scale
        a = jax.nn.softmax(e, axis=-1)
        x = jnp.einsum("bhqk,bhkd->bhqd", a, V)
        x = x.transpose(0, 2, 1, 3).reshape(B, T, H)
        return x @ lp[f"{pre}_wo"] + lp[f"{pre}_bo"]

    def ff(x, lp):
        return (jnp.maximum(x @ lp["pf_w1"] + lp["pf_b1"], 0.0)
                @ lp["pf_w2"] + lp["pf_b2"])

    x = trg
    for lp in raw["layers"]:
        x = ln(x + mha(x, x, lp, "sa"), lp)
        x = ln(x + mha(x, src, lp, "ea"), lp)
        x = ln(x + ff(x, lp), lp)

    nrm = jnp.linalg.norm(x, axis=2)                 # (B, T)
    a = jax.nn.softmax(nrm, axis=1)
    pooled = jnp.einsum("bt,bth->bh", a, x)          # (B, H)
    h = jnp.maximum(pooled @ raw["fc1_w"] + raw["fc1_b"], 0.0)
    return h @ raw["fc2_w"] + raw["fc2_b"]           # (B, 1)


if __name__ == "__main__":
    B, T, S, H = 2, 8, 16, 32
    N_HEADS, N_LAYERS, PF_DIM = 4, 3, 64

    key = jax.random.PRNGKey(0)
    k_trg, k_src, k_par = jax.random.split(key, 3)
    trg = jax.random.normal(k_trg, (B, T, H), jnp.float32)
    src = jax.random.normal(k_src, (B, S, H), jnp.float32)

    raw = init_raw_params(k_par, H, PF_DIM, N_LAYERS)
    kparams = prep_kernel_params(raw, N_HEADS)

    fwd = jax.jit(functools.partial(decoder_forward, n_heads=N_HEADS))
    out = jax.block_until_ready(fwd(trg, src, kparams))

    ref = reference(trg, src, raw, N_HEADS)
    assert out.shape == (B, 1)
    # bf16 weights / MXU inputs vs. f32 reference -> loosened tolerance.
    np.testing.assert_allclose(np.asarray(out), np.asarray(ref), atol=5e-2, rtol=5e-2)

    print("KERNEL_OK")
</pallas_src>

<mosaic_0001>
module attributes {stable_mosaic.version = 11 : i64} {
  func.func @decoder_kernel(%arg0: i32, %arg1: memref<16x32xf32, #tpu.memory_space<vmem>>, %arg2: memref<32x32xbf16, #tpu.memory_space<vmem>>, %arg3: memref<1x32x96xbf16, #tpu.memory_space<vmem>>, %arg4: memref<1x32x32xbf16, #tpu.memory_space<vmem>>, %arg5: memref<1x32x32xbf16, #tpu.memory_space<vmem>>, %arg6: memref<1x32x64xbf16, #tpu.memory_space<vmem>>, %arg7: memref<1x32x32xbf16, #tpu.memory_space<vmem>>, %arg8: memref<1x32x64xbf16, #tpu.memory_space<vmem>>, %arg9: memref<1x64x32xbf16, #tpu.memory_space<vmem>>, %arg10: memref<1x11x32xf32, #tpu.memory_space<vmem>>, %arg11: memref<1x1x64xf32, #tpu.memory_space<vmem>>, %arg12: memref<32x256xbf16, #tpu.memory_space<vmem>>, %arg13: memref<3x256xf32, #tpu.memory_space<vmem>>, %arg14: memref<2x1xf32, #tpu.memory_space<vmem>>, %arg15: memref<16x32xf32, #tpu.memory_space<vmem>>) attributes {dimension_semantics = [#tpu.dimension_semantics<arbitrary>], iteration_bounds = array<i64: 3>, scalar_prefetch = 0 : i64, scratch_operands = 1 : i64, tpu.core_type = #tpu.core_type<tc>, window_params = [{pipeline_mode = #tpu.pipeline_mode<synchronous>, transform_indices = @transform_0, window_bounds = array<i64: 16, 32>}, {pipeline_mode = #tpu.pipeline_mode<synchronous>, transform_indices = @transform_1, window_bounds = array<i64: 32, 32>}, {transform_indices = @transform_2, window_bounds = array<i64: 1, 32, 96>}, {transform_indices = @transform_3, window_bounds = array<i64: 1, 32, 32>}, {transform_indices = @transform_4, window_bounds = array<i64: 1, 32, 32>}, {transform_indices = @transform_5, window_bounds = array<i64: 1, 32, 64>}, {transform_indices = @transform_6, window_bounds = array<i64: 1, 32, 32>}, {transform_indices = @transform_7, window_bounds = array<i64: 1, 32, 64>}, {transform_indices = @transform_8, window_bounds = array<i64: 1, 64, 32>}, {transform_indices = @transform_9, window_bounds = array<i64: 1, 11, 32>}, {transform_indices = @transform_10, window_bounds = array<i64: 1, 1, 64>}, {pipeline_mode = #tpu.pipeline_mode<synchronous>, transform_indices = @transform_11, window_bounds = array<i64: 32, 256>}, {pipeline_mode = #tpu.pipeline_mode<synchronous>, transform_indices = @transform_12, window_bounds = array<i64: 3, 256>}, {pipeline_mode = #tpu.pipeline_mode<synchronous>, transform_indices = @transform_13, window_bounds = array<i64: 2, 1>}]} {
    %c0_i32 = arith.constant 0 : i32
    %0 = arith.cmpi eq, %arg0, %c0_i32 : i32
    %1 = arith.extui %0 : i1 to i32
    %c0_i32_0 = arith.constant 0 : i32
    %2 = arith.cmpi ne, %1, %c0_i32_0 : i32
    scf.if %2 {
      %c0_64 = arith.constant 0 : index
      %c0_65 = arith.constant 0 : index
      %325 = vector.load %arg1[%c0_64, %c0_65] : memref<16x32xf32, #tpu.memory_space<vmem>>, vector<16x32xf32>
      %c0_66 = arith.constant 0 : index
      %c0_67 = arith.constant 0 : index
      %326 = vector.load %arg15[%c0_66, %c0_67] : memref<16x32xf32, #tpu.memory_space<vmem>>, vector<16x32xf32>
      tpu.vector_store %arg15[%c0_66, %c0_67], %325 {strides = array<i32>} : memref<16x32xf32, #tpu.memory_space<vmem>>, vector<16x32xf32>,
    } else {
    }
    %c0 = arith.constant 0 : index
    %c0_1 = arith.constant 0 : index
    %3 = vector.load %arg15[%c0, %c0_1] : memref<16x32xf32, #tpu.memory_space<vmem>>, vector<16x32xf32>
    %c0_2 = arith.constant 0 : index
    %c0_3 = arith.constant 0 : index
    %4 = vector.load %arg2[%c0_2, %c0_3] : memref<32x32xbf16, #tpu.memory_space<vmem>>, vector<32x32xbf16>
    %c0_4 = arith.constant 0 : index
    %c0_5 = arith.constant 0 : index
    %c0_6 = arith.constant 0 : index
    %5 = vector.load %arg10[%c0_4, %c0_5, %c0_6] : memref<1x11x32xf32, #tpu.memory_space<vmem>>, vector<1x11x32xf32>
    %6 = vector.shape_cast %5 : vector<1x11x32xf32> to vector<11x32xf32>
    %7 = vector.extract_strided_slice %6 {offsets = [9, 0], sizes = [1, 32], strides = [1, 1]} : vector<11x32xf32> to vector<1x32xf32>
    %8 = vector.extract_strided_slice %6 {offsets = [10, 0], sizes = [1, 32], strides = [1, 1]} : vector<11x32xf32> to vector<1x32xf32>
    %9 = arith.truncf %3 : vector<16x32xf32> to vector<16x32xbf16>
    %c0_7 = arith.constant 0 : index
    %c0_8 = arith.constant 0 : index
    %c0_9 = arith.constant 0 : index
    %10 = vector.load %arg3[%c0_7, %c0_8, %c0_9] : memref<1x32x96xbf16, #tpu.memory_space<vmem>>, vector<1x32x96xbf16>
    %11 = vector.shape_cast %10 : vector<1x32x96xbf16> to vector<32x96xbf16>
    %cst = arith.constant dense<0.000000e+00> : vector<16x96xf32>
    %12 = tpu.matmul %9, %11, %cst {dimension_numbers = #tpu.dot_dimension_numbers<[1], [0], [0], [1], [0, 0, 1, 1], [], []>} : vector<16x32xbf16>, vector<32x96xbf16>, vector<16x96xf32> -> vector<16x96xf32>
    %13 = vector.extract_strided_slice %12 {offsets = [0, 0], sizes = [16, 32], strides = [1, 1]} : vector<16x96xf32> to vector<16x32xf32>
    %14 = vector.extract_strided_slice %6 {offsets = [0, 0], sizes = [1, 32], strides = [1, 1]} : vector<11x32xf32> to vector<1x32xf32>
    %15 = vector.broadcast %14 : vector<1x32xf32> to vector<16x32xf32>
    %16 = arith.addf %13, %15 : vector<16x32xf32>
    %17 = vector.extract_strided_slice %12 {offsets = [0, 32], sizes = [16, 32], strides = [1, 1]} : vector<16x96xf32> to vector<16x32xf32>
    %18 = vector.extract_strided_slice %6 {offsets = [1, 0], sizes = [1, 32], strides = [1, 1]} : vector<11x32xf32> to vector<1x32xf32>
    %19 = vector.broadcast %18 : vector<1x32xf32> to vector<16x32xf32>
    %20 = arith.addf %17, %19 : vector<16x32xf32>
    %21 = vector.extract_strided_slice %12 {offsets = [0, 64], sizes = [16, 32], strides = [1, 1]} : vector<16x96xf32> to vector<16x32xf32>
    %22 = vector.extract_strided_slice %6 {offsets = [2, 0], sizes = [1, 32], strides = [1, 1]} : vector<11x32xf32> to vector<1x32xf32>
    %23 = vector.broadcast %22 : vector<1x32xf32> to vector<16x32xf32>
    %24 = arith.addf %21, %23 : vector<16x32xf32>
    %c0_10 = arith.constant 0 : index
    %c0_11 = arith.constant 0 : index
    %c0_12 = arith.constant 0 : index
    %25 = vector.load %arg4[%c0_10, %c0_11, %c0_12] : memref<1x32x32xbf16, #tpu.memory_space<vmem>>, vector<1x32x32xbf16>
    %26 = vector.shape_cast %25 : vector<1x32x32xbf16> to vector<32x32xbf16>
    %27 = vector.extract_strided_slice %6 {offsets = [3, 0], sizes = [1, 32], strides = [1, 1]} : vector<11x32xf32> to vector<1x32xf32>
    %28 = vector.extract_strided_slice %16 {offsets = [0, 0], sizes = [8, 32], strides = [1, 1]} : vector<16x32xf32> to vector<8x32xf32>
    %29 = vector.extract_strided_slice %28 {offsets = [0, 0], sizes = [8, 8], strides = [1, 1]} : vector<8x32xf32> to vector<8x8xf32>
    %30 = vector.extract_strided_slice %28 {offsets = [0, 8], sizes = [8, 8], strides = [1, 1]} : vector<8x32xf32> to vector<8x8xf32>
    %31 = vector.extract_strided_slice %28 {offsets = [0, 16], sizes = [8, 8], strides = [1, 1]} : vector<8x32xf32> to vector<8x8xf32>
    %32 = vector.extract_strided_slice %28 {offsets = [0, 24], sizes = [8, 8], strides = [1, 1]} : vector<8x32xf32> to vector<8x8xf32>
    %33 = vector.extract_strided_slice %16 {offsets = [8, 0], sizes = [8, 32], strides = [1, 1]} : vector<16x32xf32> to vector<8x32xf32>
    %34 = vector.extract_strided_slice %33 {offsets = [0, 0], sizes = [8, 8], strides = [1, 1]} : vector<8x32xf32> to vector<8x8xf32>
    %35 = vector.extract_strided_slice %33 {offsets = [0, 8], sizes = [8, 8], strides = [1, 1]} : vector<8x32xf32> to vector<8x8xf32>
    %36 = vector.extract_strided_slice %33 {offsets = [0, 16], sizes = [8, 8], strides = [1, 1]} : vector<8x32xf32> to vector<8x8xf32>
    %37 = vector.extract_strided_slice %33 {offsets = [0, 24], sizes = [8, 8], strides = [1, 1]} : vector<8x32xf32> to vector<8x8xf32>
    %38 = vector.shape_cast %29 : vector<8x8xf32> to vector<1x8x8xf32>
    %39 = vector.shape_cast %30 : vector<8x8xf32> to vector<1x8x8xf32>
    %40 = vector.shape_cast %31 : vector<8x8xf32> to vector<1x8x8xf32>
    %41 = vector.shape_cast %32 : vector<8x8xf32> to vector<1x8x8xf32>
    %42 = vector.shape_cast %34 : vector<8x8xf32> to vector<1x8x8xf32>
    %43 = vector.shape_cast %35 : vector<8x8xf32> to vector<1x8x8xf32>
    %44 = vector.shape_cast %36 : vector<8x8xf32> to vector<1x8x8xf32>
    %45 = vector.shape_cast %37 : vector<8x8xf32> to vector<1x8x8xf32>
    %46 = tpu.concatenate %38, %39, %40, %41, %42, %43, %44, %45 in 0 : vector<1x8x8xf32>, vector<1x8x8xf32>, vector<1x8x8xf32>, vector<1x8x8xf32>, vector<1x8x8xf32>, vector<1x8x8xf32>, vector<1x8x8xf32>, vector<1x8x8xf32> -> vector<8x8x8xf32>
    %47 = arith.truncf %46 : vector<8x8x8xf32> to vector<8x8x8xbf16>
    %48 = vector.extract_strided_slice %20 {offsets = [0, 0], sizes = [8, 32], strides = [1, 1]} : vector<16x32xf32> to vector<8x32xf32>
    %49 = vector.extract_strided_slice %48 {offsets = [0, 0], sizes = [8, 8], strides = [1, 1]} : vector<8x32xf32> to vector<8x8xf32>
    %50 = vector.extract_strided_slice %48 {offsets = [0, 8], sizes = [8, 8], strides = [1, 1]} : vector<8x32xf32> to vector<8x8xf32>
    %51 = vector.extract_strided_slice %48 {offsets = [0, 16], sizes = [8, 8], strides = [1, 1]} : vector<8x32xf32> to vector<8x8xf32>
    %52 = vector.extract_strided_slice %48 {offsets = [0, 24], sizes = [8, 8], strides = [1, 1]} : vector<8x32xf32> to vector<8x8xf32>
    %53 = vector.extract_strided_slice %20 {offsets = [8, 0], sizes = [8, 32], strides = [1, 1]} : vector<16x32xf32> to vector<8x32xf32>
    %54 = vector.extract_strided_slice %53 {offsets = [0, 0], sizes = [8, 8], strides = [1, 1]} : vector<8x32xf32> to vector<8x8xf32>
    %55 = vector.extract_strided_slice %53 {offsets = [0, 8], sizes = [8, 8], strides = [1, 1]} : vector<8x32xf32> to vector<8x8xf32>
    %56 = vector.extract_strided_slice %53 {offsets = [0, 16], sizes = [8, 8], strides = [1, 1]} : vector<8x32xf32> to vector<8x8xf32>
    %57 = vector.extract_strided_slice %53 {offsets = [0, 24], sizes = [8, 8], strides = [1, 1]} : vector<8x32xf32> to vector<8x8xf32>
    %58 = vector.shape_cast %49 : vector<8x8xf32> to vector<1x8x8xf32>
    %59 = vector.shape_cast %50 : vector<8x8xf32> to vector<1x8x8xf32>
    %60 = vector.shape_cast %51 : vector<8x8xf32> to vector<1x8x8xf32>
    %61 = vector.shape_cast %52 : vector<8x8xf32> to vector<1x8x8xf32>
    %62 = vector.shape_cast %54 : vector<8x8xf32> to vector<1x8x8xf32>
    %63 = vector.shape_cast %55 : vector<8x8xf32> to vector<1x8x8xf32>
    %64 = vector.shape_cast %56 : vector<8x8xf32> to vector<1x8x8xf32>
    %65 = vector.shape_cast %57 : vector<8x8xf32> to vector<1x8x8xf32>
    %66 = tpu.concatenate %58, %59, %60, %61, %62, %63, %64, %65 in 0 : vector<1x8x8xf32>, vector<1x8x8xf32>, vector<1x8x8xf32>, vector<1x8x8xf32>, vector<1x8x8xf32>, vector<1x8x8xf32>, vector<1x8x8xf32>, vector<1x8x8xf32> -> vector<8x8x8xf32>
    %67 = arith.truncf %66 : vector<8x8x8xf32> to vector<8x8x8xbf16>
    %68 = vector.extract_strided_slice %24 {offsets = [0, 0], sizes = [8, 32], strides = [1, 1]} : vector<16x32xf32> to vector<8x32xf32>
    %69 = vector.extract_strided_slice %68 {offsets = [0, 0], sizes = [8, 8], strides = [1, 1]} : vector<8x32xf32> to vector<8x8xf32>
    %70 = vector.extract_strided_slice %68 {offsets = [0, 8], sizes = [8, 8], strides = [1, 1]} : vector<8x32xf32> to vector<8x8xf32>
    %71 = vector.extract_strided_slice %68 {offsets = [0, 16], sizes = [8, 8], strides = [1, 1]} : vector<8x32xf32> to vector<8x8xf32>
    %72 = vector.extract_strided_slice %68 {offsets = [0, 24], sizes = [8, 8], strides = [1, 1]} : vector<8x32xf32> to vector<8x8xf32>
    %73 = vector.extract_strided_slice %24 {offsets = [8, 0], sizes = [8, 32], strides = [1, 1]} : vector<16x32xf32> to vector<8x32xf32>
    %74 = vector.extract_strided_slice %73 {offsets = [0, 0], sizes = [8, 8], strides = [1, 1]} : vector<8x32xf32> to vector<8x8xf32>
    %75 = vector.extract_strided_slice %73 {offsets = [0, 8], sizes = [8, 8], strides = [1, 1]} : vector<8x32xf32> to vector<8x8xf32>
    %76 = vector.extract_strided_slice %73 {offsets = [0, 16], sizes = [8, 8], strides = [1, 1]} : vector<8x32xf32> to vector<8x8xf32>
    %77 = vector.extract_strided_slice %73 {offsets = [0, 24], sizes = [8, 8], strides = [1, 1]} : vector<8x32xf32> to vector<8x8xf32>
    %78 = vector.shape_cast %69 : vector<8x8xf32> to vector<1x8x8xf32>
    %79 = vector.shape_cast %70 : vector<8x8xf32> to vector<1x8x8xf32>
    %80 = vector.shape_cast %71 : vector<8x8xf32> to vector<1x8x8xf32>
    %81 = vector.shape_cast %72 : vector<8x8xf32> to vector<1x8x8xf32>
    %82 = vector.shape_cast %74 : vector<8x8xf32> to vector<1x8x8xf32>
    %83 = vector.shape_cast %75 : vector<8x8xf32> to vector<1x8x8xf32>
    %84 = vector.shape_cast %76 : vector<8x8xf32> to vector<1x8x8xf32>
    %85 = vector.shape_cast %77 : vector<8x8xf32> to vector<1x8x8xf32>
    %86 = tpu.concatenate %78, %79, %80, %81, %82, %83, %84, %85 in 0 : vector<1x8x8xf32>, vector<1x8x8xf32>, vector<1x8x8xf32>, vector<1x8x8xf32>, vector<1x8x8xf32>, vector<1x8x8xf32>, vector<1x8x8xf32>, vector<1x8x8xf32> -> vector<8x8x8xf32>
    %87 = arith.truncf %86 : vector<8x8x8xf32> to vector<8x8x8xbf16>
    %cst_13 = arith.constant dense<0.000000e+00> : vector<8x8x8xf32>
    %88 = tpu.matmul %47, %67, %cst_13 {dimension_numbers = #tpu.dot_dimension_numbers<[2], [2], [1], [1], [0, 0, 0, 1, 1, 1], [0], [0]>} : vector<8x8x8xbf16>, vector<8x8x8xbf16>, vector<8x8x8xf32> -> vector<8x8x8xf32>
    %cst_14 = arith.constant dense<0xFF800000> : vector<8x8xf32>
    %89 = vector.multi_reduction <maximumf>, %88, %cst_14 [2] : vector<8x8x8xf32> to vector<8x8xf32>
    %90 = vector.shape_cast %89 : vector<8x8xf32> to vector<8x8x1xf32>
    %91 = vector.broadcast %90 : vector<8x8x1xf32> to vector<8x8x8xf32>
    %92 = arith.subf %88, %91 : vector<8x8x8xf32>
    %93 = math.exp %92 : vector<8x8x8xf32>
    %cst_15 = arith.constant dense<0.000000e+00> : vector<8x8xf32>
    %94 = vector.multi_reduction <add>, %93, %cst_15 [2] : vector<8x8x8xf32> to vector<8x8xf32>
    %95 = vector.shape_cast %94 : vector<8x8xf32> to vector<8x8x1xf32>
    %96 = tpu.reciprocal %95 {approx = true} : vector<8x8x1xf32> -> vector<8x8x1xf32>
    %97 = vector.broadcast %96 : vector<8x8x1xf32> to vector<8x8x8xf32>
    %98 = arith.mulf %93, %97 : vector<8x8x8xf32>
    %99 = arith.truncf %98 : vector<8x8x8xf32> to vector<8x8x8xbf16>
    %cst_16 = arith.constant dense<0.000000e+00> : vector<8x8x8xf32>
    %100 = tpu.matmul %99, %87, %cst_16 {dimension_numbers = #tpu.dot_dimension_numbers<[2], [1], [1], [2], [0, 0, 0, 1, 1, 2], [0], [0]>} : vector<8x8x8xbf16>, vector<8x8x8xbf16>, vector<8x8x8xf32> -> vector<8x8x8xf32>
    %101 = vector.extract_strided_slice %100 {offsets = [0, 0, 0], sizes = [1, 8, 8], strides = [1, 1, 1]} : vector<8x8x8xf32> to vector<1x8x8xf32>
    %102 = vector.shape_cast %101 : vector<1x8x8xf32> to vector<8x8xf32>
    %103 = vector.extract_strided_slice %100 {offsets = [1, 0, 0], sizes = [1, 8, 8], strides = [1, 1, 1]} : vector<8x8x8xf32> to vector<1x8x8xf32>
    %104 = vector.shape_cast %103 : vector<1x8x8xf32> to vector<8x8xf32>
    %105 = vector.extract_strided_slice %100 {offsets = [2, 0, 0], sizes = [1, 8, 8], strides = [1, 1, 1]} : vector<8x8x8xf32> to vector<1x8x8xf32>
    %106 = vector.shape_cast %105 : vector<1x8x8xf32> to vector<8x8xf32>
    %107 = vector.extract_strided_slice %100 {offsets = [3, 0, 0], sizes = [1, 8, 8], strides = [1, 1, 1]} : vector<8x8x8xf32> to vector<1x8x8xf32>
    %108 = vector.shape_cast %107 : vector<1x8x8xf32> to vector<8x8xf32>
    %109 = tpu.concatenate %102, %104, %106, %108 in 1 : vector<8x8xf32>, vector<8x8xf32>, vector<8x8xf32>, vector<8x8xf32> -> vector<8x32xf32>
    %110 = vector.extract_strided_slice %100 {offsets = [4, 0, 0], sizes = [1, 8, 8], strides = [1, 1, 1]} : vector<8x8x8xf32> to vector<1x8x8xf32>
    %111 = vector.shape_cast %110 : vector<1x8x8xf32> to vector<8x8xf32>
    %112 = vector.extract_strided_slice %100 {offsets = [5, 0, 0], sizes = [1, 8, 8], strides = [1, 1, 1]} : vector<8x8x8xf32> to vector<1x8x8xf32>
    %113 = vector.shape_cast %112 : vector<1x8x8xf32> to vector<8x8xf32>
    %114 = vector.extract_strided_slice %100 {offsets = [6, 0, 0], sizes = [1, 8, 8], strides = [1, 1, 1]} : vector<8x8x8xf32> to vector<1x8x8xf32>
    %115 = vector.shape_cast %114 : vector<1x8x8xf32> to vector<8x8xf32>
    %116 = vector.extract_strided_slice %100 {offsets = [7, 0, 0], sizes = [1, 8, 8], strides = [1, 1, 1]} : vector<8x8x8xf32> to vector<1x8x8xf32>
    %117 = vector.shape_cast %116 : vector<1x8x8xf32> to vector<8x8xf32>
    %118 = tpu.concatenate %111, %113, %115, %117 in 1 : vector<8x8xf32>, vector<8x8xf32>, vector<8x8xf32>, vector<8x8xf32> -> vector<8x32xf32>
    %119 = tpu.concatenate %109, %118 in 0 : vector<8x32xf32>, vector<8x32xf32> -> vector<16x32xf32>
    %120 = arith.truncf %119 : vector<16x32xf32> to vector<16x32xbf16>
    %cst_17 = arith.constant dense<0.000000e+00> : vector<16x32xf32>
    %121 = tpu.matmul %120, %26, %cst_17 {dimension_numbers = #tpu.dot_dimension_numbers<[1], [0], [0], [1], [0, 0, 1, 1], [], []>} : vector<16x32xbf16>, vector<32x32xbf16>, vector<16x32xf32> -> vector<16x32xf32>
    %122 = vector.broadcast %27 : vector<1x32xf32> to vector<16x32xf32>
    %123 = arith.addf %121, %122 : vector<16x32xf32>
    %124 = arith.addf %3, %123 : vector<16x32xf32>
    %cst_18 = arith.constant dense<0.000000e+00> : vector<16xf32>
    %125 = vector.multi_reduction <add>, %124, %cst_18 [1] : vector<16x32xf32> to vector<16xf32>
    %126 = vector.shape_cast %125 : vector<16xf32> to vector<16x1xf32>
    %cst_19 = arith.constant 3.200000e+01 : f32
    %127 = vector.broadcast %cst_19 : f32 to vector<16x1xf32>
    %128 = arith.divf %126, %127 : vector<16x1xf32>
    %129 = vector.broadcast %128 : vector<16x1xf32> to vector<16x32xf32>
    %130 = arith.subf %124, %129 : vector<16x32xf32>
    %131 = arith.mulf %130, %130 : vector<16x32xf32>
    %cst_20 = arith.constant dense<0.000000e+00> : vector<16xf32>
    %132 = vector.multi_reduction <add>, %131, %cst_20 [1] : vector<16x32xf32> to vector<16xf32>
    %133 = vector.shape_cast %132 : vector<16xf32> to vector<16x1xf32>
    %cst_21 = arith.constant 3.200000e+01 : f32
    %134 = vector.broadcast %cst_21 : f32 to vector<16x1xf32>
    %135 = arith.divf %133, %134 : vector<16x1xf32>
    %cst_22 = arith.constant 9.99999974E-6 : f32
    %136 = vector.broadcast %cst_22 : f32 to vector<16x1xf32>
    %137 = arith.addf %135, %136 : vector<16x1xf32>
    %138 = math.rsqrt %137 : vector<16x1xf32>
    %139 = vector.broadcast %138 : vector<16x1xf32> to vector<16x32xf32>
    %140 = arith.mulf %130, %139 : vector<16x32xf32>
    %141 = vector.broadcast %7 : vector<1x32xf32> to vector<16x32xf32>
    %142 = arith.mulf %140, %141 : vector<16x32xf32>
    %143 = vector.broadcast %8 : vector<1x32xf32> to vector<16x32xf32>
    %144 = arith.addf %142, %143 : vector<16x32xf32>
    %145 = arith.truncf %144 : vector<16x32xf32> to vector<16x32xbf16>
    %c0_23 = arith.constant 0 : index
    %c0_24 = arith.constant 0 : index
    %c0_25 = arith.constant 0 : index
    %146 = vector.load %arg5[%c0_23, %c0_24, %c0_25] : memref<1x32x32xbf16, #tpu.memory_space<vmem>>, vector<1x32x32xbf16>
    %147 = vector.shape_cast %146 : vector<1x32x32xbf16> to vector<32x32xbf16>
    %cst_26 = arith.constant dense<0.000000e+00> : vector<16x32xf32>
    %148 = tpu.matmul %145, %147, %cst_26 {dimension_numbers = #tpu.dot_dimension_numbers<[1], [0], [0], [1], [0, 0, 1, 1], [], []>} : vector<16x32xbf16>, vector<32x32xbf16>, vector<16x32xf32> -> vector<16x32xf32>
    %149 = vector.extract_strided_slice %6 {offsets = [4, 0], sizes = [1, 32], strides = [1, 1]} : vector<11x32xf32> to vector<1x32xf32>
    %150 = vector.broadcast %149 : vector<1x32xf32> to vector<16x32xf32>
    %151 = arith.addf %148, %150 : vector<16x32xf32>
    %c0_27 = arith.constant 0 : index
    %c0_28 = arith.constant 0 : index
    %c0_29 = arith.constant 0 : index
    %152 = vector.load %arg6[%c0_27, %c0_28, %c0_29] : memref<1x32x64xbf16, #tpu.memory_space<vmem>>, vector<1x32x64xbf16>
    %153 = vector.shape_cast %152 : vector<1x32x64xbf16> to vector<32x64xbf16>
    %cst_30 = arith.constant dense<0.000000e+00> : vector<32x64xf32>
    %154 = tpu.matmul %4, %153, %cst_30 {dimension_numbers = #tpu.dot_dimension_numbers<[1], [0], [0], [1], [0, 0, 1, 1], [], []>} : vector<32x32xbf16>, vector<32x64xbf16>, vector<32x64xf32> -> vector<32x64xf32>
    %155 = vector.extract_strided_slice %154 {offsets = [0, 0], sizes = [32, 32], strides = [1, 1]} : vector<32x64xf32> to vector<32x32xf32>
    %156 = vector.extract_strided_slice %6 {offsets = [5, 0], sizes = [1, 32], strides = [1, 1]} : vector<11x32xf32> to vector<1x32xf32>
    %157 = vector.broadcast %156 : vector<1x32xf32> to vector<32x32xf32>
    %158 = arith.addf %155, %157 : vector<32x32xf32>
    %159 = vector.extract_strided_slice %154 {offsets = [0, 32], sizes = [32, 32], strides = [1, 1]} : vector<32x64xf32> to vector<32x32xf32>
    %160 = vector.extract_strided_slice %6 {offsets = [6, 0], sizes = [1, 32], strides = [1, 1]} : vector<11x32xf32> to vector<1x32xf32>
    %161 = vector.broadcast %160 : vector<1x32xf32> to vector<32x32xf32>
    %162 = arith.addf %159, %161 : vector<32x32xf32>
    %c0_31 = arith.constant 0 : index
    %c0_32 = arith.constant 0 : index
    %c0_33 = arith.constant 0 : index
    %163 = vector.load %arg7[%c0_31, %c0_32, %c0_33] : memref<1x32x32xbf16, #tpu.memory_space<vmem>>, vector<1x32x32xbf16>
    %164 = vector.shape_cast %163 : vector<1x32x32xbf16> to vector<32x32xbf16>
    %165 = vector.extract_strided_slice %6 {offsets = [7, 0], sizes = [1, 32], strides = [1, 1]} : vector<11x32xf32> to vector<1x32xf32>
    %166 = vector.extract_strided_slice %151 {offsets = [0, 0], sizes = [8, 32], strides = [1, 1]} : vector<16x32xf32> to vector<8x32xf32>
    %167 = vector.extract_strided_slice %166 {offsets = [0, 0], sizes = [8, 8], strides = [1, 1]} : vector<8x32xf32> to vector<8x8xf32>
    %168 = vector.extract_strided_slice %166 {offsets = [0, 8], sizes = [8, 8], strides = [1, 1]} : vector<8x32xf32> to vector<8x8xf32>
    %169 = vector.extract_strided_slice %166 {offsets = [0, 16], sizes = [8, 8], strides = [1, 1]} : vector<8x32xf32> to vector<8x8xf32>
    %170 = vector.extract_strided_slice %166 {offsets = [0, 24], sizes = [8, 8], strides = [1, 1]} : vector<8x32xf32> to vector<8x8xf32>
    %171 = vector.extract_strided_slice %151 {offsets = [8, 0], sizes = [8, 32], strides = [1, 1]} : vector<16x32xf32> to vector<8x32xf32>
    %172 = vector.extract_strided_slice %171 {offsets = [0, 0], sizes = [8, 8], strides = [1, 1]} : vector<8x32xf32> to vector<8x8xf32>
    %173 = vector.extract_strided_slice %171 {offsets = [0, 8], sizes = [8, 8], strides = [1, 1]} : vector<8x32xf32> to vector<8x8xf32>
    %174 = vector.extract_strided_slice %171 {offsets = [0, 16], sizes = [8, 8], strides = [1, 1]} : vector<8x32xf32> to vector<8x8xf32>
    %175 = vector.extract_strided_slice %171 {offsets = [0, 24], sizes = [8, 8], strides = [1, 1]} : vector<8x32xf32> to vector<8x8xf32>
    %176 = vector.shape_cast %167 : vector<8x8xf32> to vector<1x8x8xf32>
    %177 = vector.shape_cast %168 : vector<8x8xf32> to vector<1x8x8xf32>
    %178 = vector.shape_cast %169 : vector<8x8xf32> to vector<1x8x8xf32>
    %179 = vector.shape_cast %170 : vector<8x8xf32> to vector<1x8x8xf32>
    %180 = vector.shape_cast %172 : vector<8x8xf32> to vector<1x8x8xf32>
    %181 = vector.shape_cast %173 : vector<8x8xf32> to vector<1x8x8xf32>
    %182 = vector.shape_cast %174 : vector<8x8xf32> to vector<1x8x8xf32>
    %183 = vector.shape_cast %175 : vector<8x8xf32> to vector<1x8x8xf32>
    %184 = tpu.concatenate %176, %177, %178, %179, %180, %181, %182, %183 in 0 : vector<1x8x8xf32>, vector<1x8x8xf32>, vector<1x8x8xf32>, vector<1x8x8xf32>, vector<1x8x8xf32>, vector<1x8x8xf32>, vector<1x8x8xf32>, vector<1x8x8xf32> -> vector<8x8x8xf32>
    %185 = arith.truncf %184 : vector<8x8x8xf32> to vector<8x8x8xbf16>
    %186 = vector.extract_strided_slice %158 {offsets = [0, 0], sizes = [16, 32], strides = [1, 1]} : vector<32x32xf32> to vector<16x32xf32>
    %187 = vector.extract_strided_slice %186 {offsets = [0, 0], sizes = [16, 8], strides = [1, 1]} : vector<16x32xf32> to vector<16x8xf32>
    %188 = vector.extract_strided_slice %186 {offsets = [0, 8], sizes = [16, 8], strides = [1, 1]} : vector<16x32xf32> to vector<16x8xf32>
    %189 = vector.extract_strided_slice %186 {offsets = [0, 16], sizes = [16, 8], strides = [1, 1]} : vector<16x32xf32> to vector<16x8xf32>
    %190 = vector.extract_strided_slice %186 {offsets = [0, 24], sizes = [16, 8], strides = [1, 1]} : vector<16x32xf32> to vector<16x8xf32>
    %191 = vector.extract_strided_slice %158 {offsets = [16, 0], sizes = [16, 32], strides = [1, 1]} : vector<32x32xf32> to vector<16x32xf32>
    %192 = vector.extract_strided_slice %191 {offsets = [0, 0], sizes = [16, 8], strides = [1, 1]} : vector<16x32xf32> to vector<16x8xf32>
    %193 = vector.extract_strided_slice %191 {offsets = [0, 8], sizes = [16, 8], strides = [1, 1]} : vector<16x32xf32> to vector<16x8xf32>
    %194 = vector.extract_strided_slice %191 {offsets = [0, 16], sizes = [16, 8], strides = [1, 1]} : vector<16x32xf32> to vector<16x8xf32>
    %195 = vector.extract_strided_slice %191 {offsets = [0, 24], sizes = [16, 8], strides = [1, 1]} : vector<16x32xf32> to vector<16x8xf32>
    %196 = vector.shape_cast %187 : vector<16x8xf32> to vector<1x16x8xf32>
    %197 = vector.shape_cast %188 : vector<16x8xf32> to vector<1x16x8xf32>
    %198 = vector.shape_cast %189 : vector<16x8xf32> to vector<1x16x8xf32>
    %199 = vector.shape_cast %190 : vector<16x8xf32> to vector<1x16x8xf32>
    %200 = vector.shape_cast %192 : vector<16x8xf32> to vector<1x16x8xf32>
    %201 = vector.shape_cast %193 : vector<16x8xf32> to vector<1x16x8xf32>
    %202 = vector.shape_cast %194 : vector<16x8xf32> to vector<1x16x8xf32>
    %203 = vector.shape_cast %195 : vector<16x8xf32> to vector<1x16x8xf32>
    %204 = tpu.concatenate %196, %197, %198, %199, %200, %201, %202, %203 in 0 : vector<1x16x8xf32>, vector<1x16x8xf32>, vector<1x16x8xf32>, vector<1x16x8xf32>, vector<1x16x8xf32>, vector<1x16x8xf32>, vector<1x16x8xf32>, vector<1x16x8xf32> -> vector<8x16x8xf32>
    %205 = arith.truncf %204 : vector<8x16x8xf32> to vector<8x16x8xbf16>
    %206 = vector.extract_strided_slice %162 {offsets = [0, 0], sizes = [16, 32], strides = [1, 1]} : vector<32x32xf32> to vector<16x32xf32>
    %207 = vector.extract_strided_slice %206 {offsets = [0, 0], sizes = [16, 8], strides = [1, 1]} : vector<16x32xf32> to vector<16x8xf32>
    %208 = vector.extract_strided_slice %206 {offsets = [0, 8], sizes = [16, 8], strides = [1, 1]} : vector<16x32xf32> to vector<16x8xf32>
    %209 = vector.extract_strided_slice %206 {offsets = [0, 16], sizes = [16, 8], strides = [1, 1]} : vector<16x32xf32> to vector<16x8xf32>
    %210 = vector.extract_strided_slice %206 {offsets = [0, 24], sizes = [16, 8], strides = [1, 1]} : vector<16x32xf32> to vector<16x8xf32>
    %211 = vector.extract_strided_slice %162 {offsets = [16, 0], sizes = [16, 32], strides = [1, 1]} : vector<32x32xf32> to vector<16x32xf32>
    %212 = vector.extract_strided_slice %211 {offsets = [0, 0], sizes = [16, 8], strides = [1, 1]} : vector<16x32xf32> to vector<16x8xf32>
    %213 = vector.extract_strided_slice %211 {offsets = [0, 8], sizes = [16, 8], strides = [1, 1]} : vector<16x32xf32> to vector<16x8xf32>
    %214 = vector.extract_strided_slice %211 {offsets = [0, 16], sizes = [16, 8], strides = [1, 1]} : vector<16x32xf32> to vector<16x8xf32>
    %215 = vector.extract_strided_slice %211 {offsets = [0, 24], sizes = [16, 8], strides = [1, 1]} : vector<16x32xf32> to vector<16x8xf32>
    %216 = vector.shape_cast %207 : vector<16x8xf32> to vector<1x16x8xf32>
    %217 = vector.shape_cast %208 : vector<16x8xf32> to vector<1x16x8xf32>
    %218 = vector.shape_cast %209 : vector<16x8xf32> to vector<1x16x8xf32>
    %219 = vector.shape_cast %210 : vector<16x8xf32> to vector<1x16x8xf32>
    %220 = vector.shape_cast %212 : vector<16x8xf32> to vector<1x16x8xf32>
    %221 = vector.shape_cast %213 : vector<16x8xf32> to vector<1x16x8xf32>
    %222 = vector.shape_cast %214 : vector<16x8xf32> to vector<1x16x8xf32>
    %223 = vector.shape_cast %215 : vector<16x8xf32> to vector<1x16x8xf32>
    %224 = tpu.concatenate %216, %217, %218, %219, %220, %221, %222, %223 in 0 : vector<1x16x8xf32>, vector<1x16x8xf32>, vector<1x16x8xf32>, vector<1x16x8xf32>, vector<1x16x8xf32>, vector<1x16x8xf32>, vector<1x16x8xf32>, vector<1x16x8xf32> -> vector<8x16x8xf32>
    %225 = arith.truncf %224 : vector<8x16x8xf32> to vector<8x16x8xbf16>
    %cst_34 = arith.constant dense<0.000000e+00> : vector<8x8x16xf32>
    %226 = tpu.matmul %185, %205, %cst_34 {dimension_numbers = #tpu.dot_dimension_numbers<[2], [2], [1], [1], [0, 0, 0, 1, 1, 1], [0], [0]>} : vector<8x8x8xbf16>, vector<8x16x8xbf16>, vector<8x8x16xf32> -> vector<8x8x16xf32>
    %cst_35 = arith.constant dense<0xFF800000> : vector<8x8xf32>
    %227 = vector.multi_reduction <maximumf>, %226, %cst_35 [2] : vector<8x8x16xf32> to vector<8x8xf32>
    %228 = vector.shape_cast %227 : vector<8x8xf32> to vector<8x8x1xf32>
    %229 = vector.broadcast %228 : vector<8x8x1xf32> to vector<8x8x16xf32>
    %230 = arith.subf %226, %229 : vector<8x8x16xf32>
    %231 = math.exp %230 : vector<8x8x16xf32>
    %cst_36 = arith.constant dense<0.000000e+00> : vector<8x8xf32>
    %232 = vector.multi_reduction <add>, %231, %cst_36 [2] : vector<8x8x16xf32> to vector<8x8xf32>
    %233 = vector.shape_cast %232 : vector<8x8xf32> to vector<8x8x1xf32>
    %234 = tpu.reciprocal %233 {approx = true} : vector<8x8x1xf32> -> vector<8x8x1xf32>
    %235 = vector.broadcast %234 : vector<8x8x1xf32> to vector<8x8x16xf32>
    %236 = arith.mulf %231, %235 : vector<8x8x16xf32>
    %237 = arith.truncf %236 : vector<8x8x16xf32> to vector<8x8x16xbf16>
    %cst_37 = arith.constant dense<0.000000e+00> : vector<8x8x8xf32>
    %238 = tpu.matmul %237, %225, %cst_37 {dimension_numbers = #tpu.dot_dimension_numbers<[2], [1], [1], [2], [0, 0, 0, 1, 1, 2], [0], [0]>} : vector<8x8x16xbf16>, vector<8x16x8xbf16>, vector<8x8x8xf32> -> vector<8x8x8xf32>
    %239 = vector.extract_strided_slice %238 {offsets = [0, 0, 0], sizes = [1, 8, 8], strides = [1, 1, 1]} : vector<8x8x8xf32> to vector<1x8x8xf32>
    %240 = vector.shape_cast %239 : vector<1x8x8xf32> to vector<8x8xf32>
    %241 = vector.extract_strided_slice %238 {offsets = [1, 0, 0], sizes = [1, 8, 8], strides = [1, 1, 1]} : vector<8x8x8xf32> to vector<1x8x8xf32>
    %242 = vector.shape_cast %241 : vector<1x8x8xf32> to vector<8x8xf32>
    %243 = vector.extract_strided_slice %238 {offsets = [2, 0, 0], sizes = [1, 8, 8], strides = [1, 1, 1]} : vector<8x8x8xf32> to vector<1x8x8xf32>
    %244 = vector.shape_cast %243 : vector<1x8x8xf32> to vector<8x8xf32>
    %245 = vector.extract_strided_slice %238 {offsets = [3, 0, 0], sizes = [1, 8, 8], strides = [1, 1, 1]} : vector<8x8x8xf32> to vector<1x8x8xf32>
    %246 = vector.shape_cast %245 : vector<1x8x8xf32> to vector<8x8xf32>
    %247 = tpu.concatenate %240, %242, %244, %246 in 1 : vector<8x8xf32>, vector<8x8xf32>, vector<8x8xf32>, vector<8x8xf32> -> vector<8x32xf32>
    %248 = vector.extract_strided_slice %238 {offsets = [4, 0, 0], sizes = [1, 8, 8], strides = [1, 1, 1]} : vector<8x8x8xf32> to vector<1x8x8xf32>
    %249 = vector.shape_cast %248 : vector<1x8x8xf32> to vector<8x8xf32>
    %250 = vector.extract_strided_slice %238 {offsets = [5, 0, 0], sizes = [1, 8, 8], strides = [1, 1, 1]} : vector<8x8x8xf32> to vector<1x8x8xf32>
    %251 = vector.shape_cast %250 : vector<1x8x8xf32> to vector<8x8xf32>
    %252 = vector.extract_strided_slice %238 {offsets = [6, 0, 0], sizes = [1, 8, 8], strides = [1, 1, 1]} : vector<8x8x8xf32> to vector<1x8x8xf32>
    %253 = vector.shape_cast %252 : vector<1x8x8xf32> to vector<8x8xf32>
    %254 = vector.extract_strided_slice %238 {offsets = [7, 0, 0], sizes = [1, 8, 8], strides = [1, 1, 1]} : vector<8x8x8xf32> to vector<1x8x8xf32>
    %255 = vector.shape_cast %254 : vector<1x8x8xf32> to vector<8x8xf32>
    %256 = tpu.concatenate %249, %251, %253, %255 in 1 : vector<8x8xf32>, vector<8x8xf32>, vector<8x8xf32>, vector<8x8xf32> -> vector<8x32xf32>
    %257 = tpu.concatenate %247, %256 in 0 : vector<8x32xf32>, vector<8x32xf32> -> vector<16x32xf32>
    %258 = arith.truncf %257 : vector<16x32xf32> to vector<16x32xbf16>
    %cst_38 = arith.constant dense<0.000000e+00> : vector<16x32xf32>
    %259 = tpu.matmul %258, %164, %cst_38 {dimension_numbers = #tpu.dot_dimension_numbers<[1], [0], [0], [1], [0, 0, 1, 1], [], []>} : vector<16x32xbf16>, vector<32x32xbf16>, vector<16x32xf32> -> vector<16x32xf32>
    %260 = vector.broadcast %165 : vector<1x32xf32> to vector<16x32xf32>
    %261 = arith.addf %259, %260 : vector<16x32xf32>
    %262 = arith.addf %144, %261 : vector<16x32xf32>
    %cst_39 = arith.constant dense<0.000000e+00> : vector<16xf32>
    %263 = vector.multi_reduction <add>, %262, %cst_39 [1] : vector<16x32xf32> to vector<16xf32>
    %264 = vector.shape_cast %263 : vector<16xf32> to vector<16x1xf32>
    %cst_40 = arith.constant 3.200000e+01 : f32
    %265 = vector.broadcast %cst_40 : f32 to vector<16x1xf32>
    %266 = arith.divf %264, %265 : vector<16x1xf32>
    %267 = vector.broadcast %266 : vector<16x1xf32> to vector<16x32xf32>
    %268 = arith.subf %262, %267 : vector<16x32xf32>
    %269 = arith.mulf %268, %268 : vector<16x32xf32>
    %cst_41 = arith.constant dense<0.000000e+00> : vector<16xf32>
    %270 = vector.multi_reduction <add>, %269, %cst_41 [1] : vector<16x32xf32> to vector<16xf32>
    %271 = vector.shape_cast %270 : vector<16xf32> to vector<16x1xf32>
    %cst_42 = arith.constant 3.200000e+01 : f32
    %272 = vector.broadcast %cst_42 : f32 to vector<16x1xf32>
    %273 = arith.divf %271, %272 : vector<16x1xf32>
    %cst_43 = arith.constant 9.99999974E-6 : f32
    %274 = vector.broadcast %cst_43 : f32 to vector<16x1xf32>
    %275 = arith.addf %273, %274 : vector<16x1xf32>
    %276 = math.rsqrt %275 : vector<16x1xf32>
    %277 = vector.broadcast %276 : vector<16x1xf32> to vector<16x32xf32>
    %278 = arith.mulf %268, %277 : vector<16x32xf32>
    %279 = vector.broadcast %7 : vector<1x32xf32> to vector<16x32xf32>
    %280 = arith.mulf %278, %279 : vector<16x32xf32>
    %281 = vector.broadcast %8 : vector<1x32xf32> to vector<16x32xf32>
    %282 = arith.addf %280, %281 : vector<16x32xf32>
    %283 = arith.truncf %282 : vector<16x32xf32> to vector<16x32xbf16>
    %c0_44 = arith.constant 0 : index
    %c0_45 = arith.constant 0 : index
    %c0_46 = arith.constant 0 : index
    %284 = vector.load %arg8[%c0_44, %c0_45, %c0_46] : memref<1x32x64xbf16, #tpu.memory_space<vmem>>, vector<1x32x64xbf16>
    %285 = vector.shape_cast %284 : vector<1x32x64xbf16> to vector<32x64xbf16>
    %cst_47 = arith.constant dense<0.000000e+00> : vector<16x64xf32>
    %286 = tpu.matmul %283, %285, %cst_47 {dimension_numbers = #tpu.dot_dimension_numbers<[1], [0], [0], [1], [0, 0, 1, 1], [], []>} : vector<16x32xbf16>, vector<32x64xbf16>, vector<16x64xf32> -> vector<16x64xf32>
    %c0_48 = arith.constant 0 : index
    %c0_49 = arith.constant 0 : index
    %c0_50 = arith.constant 0 : index
    %287 = vector.load %arg11[%c0_48, %c0_49, %c0_50] : memref<1x1x64xf32, #tpu.memory_space<vmem>>, vector<1x1x64xf32>
    %288 = vector.shape_cast %287 : vector<1x1x64xf32> to vector<1x64xf32>
    %289 = vector.broadcast %288 : vector<1x64xf32> to vector<16x64xf32>
    %290 = arith.addf %286, %289 : vector<16x64xf32>
    %cst_51 = arith.constant 0.000000e+00 : f32
    %291 = vector.broadcast %cst_51 : f32 to vector<16x64xf32>
    %292 = arith.maximumf %290, %291 : vector<16x64xf32>
    %293 = arith.truncf %292 : vector<16x64xf32> to vector<16x64xbf16>
    %c0_52 = arith.constant 0 : index
    %c0_53 = arith.constant 0 : index
    %c0_54 = arith.constant 0 : index
    %294 = vector.load %arg9[%c0_52, %c0_53, %c0_54] : memref<1x64x32xbf16, #tpu.memory_space<vmem>>, vector<1x64x32xbf16>
    %295 = vector.shape_cast %294 : vector<1x64x32xbf16> to vector<64x32xbf16>
    %cst_55 = arith.constant dense<0.000000e+00> : vector<16x32xf32>
    %296 = tpu.matmul %293, %295, %cst_55 {dimension_numbers = #tpu.dot_dimension_numbers<[1], [0], [0], [1], [0, 0, 1, 1], [], []>} : vector<16x64xbf16>, vector<64x32xbf16>, vector<16x32xf32> -> vector<16x32xf32>
    %297 = vector.extract_strided_slice %6 {offsets = [8, 0], sizes = [1, 32], strides = [1, 1]} : vector<11x32xf32> to vector<1x32xf32>
    %298 = vector.broadcast %297 : vector<1x32xf32> to vector<16x32xf32>
    %299 = arith.addf %296, %298 : vector<16x32xf32>
    %300 = arith.addf %282, %299 : vector<16x32xf32>
    %cst_56 = arith.constant dense<0.000000e+00> : vector<16xf32>
    %301 = vector.multi_reduction <add>, %300, %cst_56 [1] : vector<16x32xf32> to vector<16xf32>
    %302 = vector.shape_cast %301 : vector<16xf32> to vector<16x1xf32>
    %cst_57 = arith.constant 3.200000e+01 : f32
    %303 = vector.broadcast %cst_57 : f32 to vector<16x1xf32>
    %304 = arith.divf %302, %303 : vector<16x1xf32>
    %305 = vector.broadcast %304 : vector<16x1xf32> to vector<16x32xf32>
    %306 = arith.subf %300, %305 : vector<16x32xf32>
    %307 = arith.mulf %306, %306 : vector<16x32xf32>
    %cst_58 = arith.constant dense<0.000000e+00> : vector<16xf32>
    %308 = vector.multi_reduction <add>, %307, %cst_58 [1] : vector<16x32xf32> to vector<16xf32>
    %309 = vector.shape_cast %308 : vector<16xf32> to vector<16x1xf32>
    %cst_59 = arith.constant 3.200000e+01 : f32
    %310 = vector.broadcast %cst_59 : f32 to vector<16x1xf32>
    %311 = arith.divf %309, %310 : vector<16x1xf32>
    %cst_60 = arith.constant 9.99999974E-6 : f32
    %312 = vector.broadcast %cst_60 : f32 to vector<16x1xf32>
    %313 = arith.addf %311, %312 : vector<16x1xf32>
    %314 = math.rsqrt %313 : vector<16x1xf32>
    %315 = vector.broadcast %314 : vector<16x1xf32> to vector<16x32xf32>
    %316 = arith.mulf %306, %315 : vector<16x32xf32>
    %317 = vector.broadcast %7 : vector<1x32xf32> to vector<16x32xf32>
    %318 = arith.mulf %316, %317 : vector<16x32xf32>
    %319 = vector.broadcast %8 : vector<1x32xf32> to vector<16x32xf32>
    %320 = arith.addf %318, %319 : vector<16x32xf32>
    %c0_61 = arith.constant 0 : index
    %c0_62 = arith.constant 0 : index
    %321 = vector.load %arg15[%c0_61, %c0_62] : memref<16x32xf32, #tpu.memory_space<vmem>>, vector<16x32xf32>
    tpu.vector_store %arg15[%c0_61, %c0_62], %320 {strides = array<i32>} : memref<16x32xf32, #tpu.memory_space<vmem>>, vector<16x32xf32>,
    %c2_i32 = arith.constant 2 : i32
    %322 = arith.cmpi eq, %arg0, %c2_i32 : i32
    %323 = arith.extui %322 : i1 to i32
    %c0_i32_63 = arith.constant 0 : i32
    %324 = arith.cmpi ne, %323, %c0_i32_63 : i32
    scf.if %324 {
      %c0_64 = arith.constant 0 : index
      %c0_65 = arith.constant 0 : index
      %325 = vector.load %arg13[%c0_64, %c0_65] : memref<3x256xf32, #tpu.memory_space<vmem>>, vector<3x256xf32>
      %326 = vector.extract_strided_slice %325 {offsets = [0, 0], sizes = [1, 256], strides = [1, 1]} : vector<3x256xf32> to vector<1x256xf32>
      %327 = vector.extract_strided_slice %325 {offsets = [1, 0], sizes = [1, 256], strides = [1, 1]} : vector<3x256xf32> to vector<1x256xf32>
      %328 = vector.extract_strided_slice %325 {offsets = [2, 0], sizes = [1, 1], strides = [1, 1]} : vector<3x256xf32> to vector<1x1xf32>
      %329 = vector.extract_strided_slice %320 {offsets = [0, 0], sizes = [8, 32], strides = [1, 1]} : vector<16x32xf32> to vector<8x32xf32>
      %330 = arith.mulf %329, %329 : vector<8x32xf32>
      %cst_66 = arith.constant dense<0.000000e+00> : vector<8xf32>
      %331 = vector.multi_reduction <add>, %330, %cst_66 [1] : vector<8x32xf32> to vector<8xf32>
      %332 = vector.shape_cast %331 : vector<8xf32> to vector<8x1xf32>
      %333 = math.sqrt %332 : vector<8x1xf32>
      %cst_67 = arith.constant dense<0xFF800000> : vector<1xf32>
      %334 = vector.multi_reduction <maximumf>, %333, %cst_67 [0] : vector<8x1xf32> to vector<1xf32>
      %335 = vector.shape_cast %334 : vector<1xf32> to vector<1x1xf32>
      %336 = vector.broadcast %335 : vector<1x1xf32> to vector<8x1xf32>
      %337 = arith.subf %333, %336 : vector<8x1xf32>
      %338 = math.exp %337 : vector<8x1xf32>
      %cst_68 = arith.constant dense<0.000000e+00> : vector<1xf32>
      %339 = vector.multi_reduction <add>, %338, %cst_68 [0] : vector<8x1xf32> to vector<1xf32>
      %340 = vector.shape_cast %339 : vector<1xf32> to vector<1x1xf32>
      %341 = vector.broadcast %340 : vector<1x1xf32> to vector<8x1xf32>
      %342 = arith.divf %338, %341 : vector<8x1xf32>
      %343 = vector.broadcast %342 : vector<8x1xf32> to vector<8x32xf32>
      %344 = arith.mulf %343, %329 : vector<8x32xf32>
      %cst_69 = arith.constant dense<0.000000e+00> : vector<32xf32>
      %345 = vector.multi_reduction <add>, %344, %cst_69 [0] : vector<8x32xf32> to vector<32xf32>
      %346 = vector.shape_cast %345 : vector<32xf32> to vector<1x32xf32>
      %347 = vector.extract_strided_slice %320 {offsets = [8, 0], sizes = [8, 32], strides = [1, 1]} : vector<16x32xf32> to vector<8x32xf32>
      %348 = arith.mulf %347, %347 : vector<8x32xf32>
      %cst_70 = arith.constant dense<0.000000e+00> : vector<8xf32>
      %349 = vector.multi_reduction <add>, %348, %cst_70 [1] : vector<8x32xf32> to vector<8xf32>
      %350 = vector.shape_cast %349 : vector<8xf32> to vector<8x1xf32>
      %351 = math.sqrt %350 : vector<8x1xf32>
      %cst_71 = arith.constant dense<0xFF800000> : vector<1xf32>
      %352 = vector.multi_reduction <maximumf>, %351, %cst_71 [0] : vector<8x1xf32> to vector<1xf32>
      %353 = vector.shape_cast %352 : vector<1xf32> to vector<1x1xf32>
      %354 = vector.broadcast %353 : vector<1x1xf32> to vector<8x1xf32>
      %355 = arith.subf %351, %354 : vector<8x1xf32>
      %356 = math.exp %355 : vector<8x1xf32>
      %cst_72 = arith.constant dense<0.000000e+00> : vector<1xf32>
      %357 = vector.multi_reduction <add>, %356, %cst_72 [0] : vector<8x1xf32> to vector<1xf32>
      %358 = vector.shape_cast %357 : vector<1xf32> to vector<1x1xf32>
      %359 = vector.broadcast %358 : vector<1x1xf32> to vector<8x1xf32>
      %360 = arith.divf %356, %359 : vector<8x1xf32>
      %361 = vector.broadcast %360 : vector<8x1xf32> to vector<8x32xf32>
      %362 = arith.mulf %361, %347 : vector<8x32xf32>
      %cst_73 = arith.constant dense<0.000000e+00> : vector<32xf32>
      %363 = vector.multi_reduction <add>, %362, %cst_73 [0] : vector<8x32xf32> to vector<32xf32>
      %364 = vector.shape_cast %363 : vector<32xf32> to vector<1x32xf32>
      %365 = tpu.concatenate %346, %364 in 0 : vector<1x32xf32>, vector<1x32xf32> -> vector<2x32xf32>
      %366 = arith.truncf %365 : vector<2x32xf32> to vector<2x32xbf16>
      %c0_74 = arith.constant 0 : index
      %c0_75 = arith.constant 0 : index
      %367 = vector.load %arg12[%c0_74, %c0_75] : memref<32x256xbf16, #tpu.memory_space<vmem>>, vector<32x256xbf16>
      %cst_76 = arith.constant dense<0.000000e+00> : vector<2x256xf32>
      %368 = tpu.matmul %366, %367, %cst_76 {dimension_numbers = #tpu.dot_dimension_numbers<[1], [0], [0], [1], [0, 0, 1, 1], [], []>} : vector<2x32xbf16>, vector<32x256xbf16>, vector<2x256xf32> -> vector<2x256xf32>
      %369 = vector.broadcast %326 : vector<1x256xf32> to vector<2x256xf32>
      %370 = arith.addf %368, %369 : vector<2x256xf32>
      %cst_77 = arith.constant 0.000000e+00 : f32
      %371 = vector.broadcast %cst_77 : f32 to vector<2x256xf32>
      %372 = arith.maximumf %370, %371 : vector<2x256xf32>
      %373 = vector.broadcast %327 : vector<1x256xf32> to vector<2x256xf32>
      %374 = arith.mulf %372, %373 : vector<2x256xf32>
      %cst_78 = arith.constant dense<0.000000e+00> : vector<2xf32>
      %375 = vector.multi_reduction <add>, %374, %cst_78 [1] : vector<2x256xf32> to vector<2xf32>
      %376 = vector.shape_cast %375 : vector<2xf32> to vector<2x1xf32>
      %377 = vector.broadcast %328 : vector<1x1xf32> to vector<2x1xf32>
      %378 = arith.addf %376, %377 : vector<2x1xf32>
      %c0_79 = arith.constant 0 : index
      %c0_80 = arith.constant 0 : index
      %379 = vector.load %arg14[%c0_79, %c0_80] : memref<2x1xf32, #tpu.memory_space<vmem>>, vector<2x1xf32>
      tpu.vector_store %arg14[%c0_79, %c0_80], %378 {strides = array<i32>} : memref<2x1xf32, #tpu.memory_space<vmem>>, vector<2x1xf32>,
    } else {
    }
    return
  }
  func.func @transform_0(%arg0: i32) -> (i32, i32) {
    %c0_i32 = arith.constant 0 : i32
    %c0_i32_0 = arith.constant 0 : i32
    %c0_i32_1 = arith.constant 0 : i32
    return %c0_i32, %c0_i32_0 : i32, i32
  }
  func.func @transform_1(%arg0: i32) -> (i32, i32) {
    %c0_i32 = arith.constant 0 : i32
    %c0_i32_0 = arith.constant 0 : i32
    %c0_i32_1 = arith.constant 0 : i32
    return %c0_i32, %c0_i32_0 : i32, i32
  }
  func.func @transform_2(%arg0: i32) -> (i32, i32, i32) {
    %c0_i32 = arith.constant 0 : i32
    %c0_i32_0 = arith.constant 0 : i32
    %c0_i32_1 = arith.constant 0 : i32
    return %arg0, %c0_i32, %c0_i32_0 : i32, i32, i32
  }
  func.func @transform_3(%arg0: i32) -> (i32, i32, i32) {
    %c0_i32 = arith.constant 0 : i32
    %c0_i32_0 = arith.constant 0 : i32
    %c0_i32_1 = arith.constant 0 : i32
    return %arg0, %c0_i32, %c0_i32_0 : i32, i32, i32
  }
  func.func @transform_4(%arg0: i32) -> (i32, i32, i32) {
    %c0_i32 = arith.constant 0 : i32
    %c0_i32_0 = arith.constant 0 : i32
    %c0_i32_1 = arith.constant 0 : i32
    return %arg0, %c0_i32, %c0_i32_0 : i32, i32, i32
  }
  func.func @transform_5(%arg0: i32) -> (i32, i32, i32) {
    %c0_i32 = arith.constant 0 : i32
    %c0_i32_0 = arith.constant 0 : i32
    %c0_i32_1 = arith.constant 0 : i32
    return %arg0, %c0_i32, %c0_i32_0 : i32, i32, i32
  }
  func.func @transform_6(%arg0: i32) -> (i32, i32, i32) {
    %c0_i32 = arith.constant 0 : i32
    %c0_i32_0 = arith.constant 0 : i32
    %c0_i32_1 = arith.constant 0 : i32
    return %arg0, %c0_i32, %c0_i32_0 : i32, i32, i32
  }
  func.func @transform_7(%arg0: i32) -> (i32, i32, i32) {
    %c0_i32 = arith.constant 0 : i32
    %c0_i32_0 = arith.constant 0 : i32
    %c0_i32_1 = arith.constant 0 : i32
    return %arg0, %c0_i32, %c0_i32_0 : i32, i32, i32
  }
  func.func @transform_8(%arg0: i32) -> (i32, i32, i32) {
    %c0_i32 = arith.constant 0 : i32
    %c0_i32_0 = arith.constant 0 : i32
    %c0_i32_1 = arith.constant 0 : i32
    return %arg0, %c0_i32, %c0_i32_0 : i32, i32, i32
  }
  func.func @transform_9(%arg0: i32) -> (i32, i32, i32) {
    %c0_i32 = arith.constant 0 : i32
    %c0_i32_0 = arith.constant 0 : i32
    %c0_i32_1 = arith.constant 0 : i32
    return %arg0, %c0_i32, %c0_i32_0 : i32, i32, i32
  }
  func.func @transform_10(%arg0: i32) -> (i32, i32, i32) {
    %c0_i32 = arith.constant 0 : i32
    %c0_i32_0 = arith.constant 0 : i32
    %c0_i32_1 = arith.constant 0 : i32
    return %arg0, %c0_i32, %c0_i32_0 : i32, i32, i32
  }
  func.func @transform_11(%arg0: i32) -> (i32, i32) {
    %c0_i32 = arith.constant 0 : i32
    %c0_i32_0 = arith.constant 0 : i32
    %c0_i32_1 = arith.constant 0 : i32
    return %c0_i32, %c0_i32_0 : i32, i32
  }
  func.func @transform_12(%arg0: i32) -> (i32, i32) {
    %c0_i32 = arith.constant 0 : i32
    %c0_i32_0 = arith.constant 0 : i32
    %c0_i32_1 = arith.constant 0 : i32
    return %c0_i32, %c0_i32_0 : i32, i32
  }
  func.func @transform_13(%arg0: i32) -> (i32, i32) {
    %c0_i32 = arith.constant 0 : i32
    %c0_i32_0 = arith.constant 0 : i32
    %c0_i32_1 = arith.constant 0 : i32
    return %c0_i32, %c0_i32_0 : i32, i32
  }
}

</mosaic_0001>

<llo_original>
// kernel: decoder_forward.1
$region0: #{decoder_forward.1}
  #allocation0 [shape = 'u32[]', space=smem, size = 0x4, offset = 0x4, fixed_abs, tag = 'smem constant byte address 0x4 - core index']
  #allocation1 [shape = 'u32[144,128]{1,0:T(1,128)}', space=vmem, size = 0x12000, scoped, tag = 'internal scratch']
  #allocation2 [shape = 'f32[16,32]{1,0:T(8,128)}', space=vmem, size = 0x2000, scoped, tag = 'scratch operand']
  %s0 = inlined_call_operand.hbm [shape: f32[16,32], index: 0, kind: input, shape index: {}]
  %s1 = inlined_call_operand.vmem [shape: bf16[32,32], index: 1, kind: input, shape index: {}]
  %s2 = inlined_call_operand.vmem [shape: bf16[3,32,96], index: 2, kind: input, shape index: {}]
  %s3 = inlined_call_operand.vmem [shape: bf16[3,32,32], index: 3, kind: input, shape index: {}]
  %s4 = inlined_call_operand.vmem [shape: bf16[3,32,32], index: 4, kind: input, shape index: {}]
  %s5 = inlined_call_operand.vmem [shape: bf16[3,32,64], index: 5, kind: input, shape index: {}]
  %s6 = inlined_call_operand.vmem [shape: bf16[3,32,32], index: 6, kind: input, shape index: {}]
  %s7 = inlined_call_operand.hbm [shape: bf16[3,32,64], index: 7, kind: input, shape index: {}]
  %s8 = inlined_call_operand.vmem [shape: bf16[3,64,32], index: 8, kind: input, shape index: {}]
  %s9 = inlined_call_operand.vmem [shape: f32[3,11,32], index: 9, kind: input, shape index: {}]
  %s10 = inlined_call_operand.vmem [shape: f32[3,1,64], index: 10, kind: input, shape index: {}]
  %s11 = inlined_call_operand.hbm [shape: bf16[32,256], index: 11, kind: input, shape index: {}]
  %s12 = inlined_call_operand.vmem [shape: f32[3,256], index: 12, kind: input, shape index: {}]
  %s13 = inlined_call_operand.vmem [shape: f32[2,1], index: 13, kind: output, shape index: {}]
  %s14 = sld [smem:[#allocation0]]
  $region105: #{decoder_forward.1} parent=0
    _
  %s16 = ssub.s32 1, %s14
  %s17 = scalar_select 0, %s16, %s14
  $region1: #{decoder_forward.1} parent=0
    #allocation3 [shape = 'u8[8192]{0}', space=vmem, size = 0x2000, scoped, tag = 'input window, operand 0, single buffered']
    #allocation4 [shape = 's32[2]{0}', space=sflag, size = 0x8, scoped, tag = 'scoped memory for decoder_forward.1']
    #allocation5 [shape = 'u8[16384]{0}', space=vmem, size = 0x4000, scoped, tag = 'input window, operand 7']
    #allocation6 [shape = 's32[2]{0}', space=sflag, size = 0x8, scoped, tag = 'scoped memory for decoder_forward.1']
    #allocation7 [shape = 'u8[16384]{0}', space=vmem, size = 0x4000, scoped, tag = 'input window, operand 11, single buffered']
    %18 = vsyncpa [#allocation4], 0
    %19 = vsyncpa [#allocation6], 0
    %s20 = scalar_lea.sflag [#allocation6], 1
    %21 = vsyncpa %s20, 0
    loop: start=0, step=1, limit=5
    $region2: #{decoder_forward.1} parent=1 // loop_pre_header
      _
    $region3: #{decoder_forward.1} parent=1 // loop_header
      %s23 = sphi 0, %s27
      %p24 = scmp.ge.s32.totalorder %s23, 5
      %s31 = sphi 0, %s31
      %s33 = sphi 0, %s31
      %s34 = sphi 0, %s33
      %s48 = sphi 0, %s34
      %s52 = sphi 0, %s52
      %s54 = sphi 0, %s52
      %s55 = sphi 0, %s54
      %s69 = sphi 0, %s55
      %s75 = sphi 0, %s77
      %s78 = sphi 0, %s75
      %s79 = sphi 0, %s78
      %s95 = sphi 0, %s79
      %s101 = sphi 0, %s103
      %s104 = sphi 0, %s101
      %s105 = sphi 0, %s104
      %s121 = sphi 0, %s105
      %s127 = sphi 0, %s129
      %s130 = sphi 0, %s127
      %s131 = sphi 0, %s130
      %s147 = sphi 0, %s131
      %s153 = sphi 0, %s155
      %s156 = sphi 0, %s153
      %s157 = sphi 0, %s156
      %s173 = sphi 0, %s157
      %s179 = sphi 0, %s181
      %s182 = sphi 0, %s179
      %s183 = sphi 0, %s182
      %s199 = sphi 0, %s183
      %s205 = sphi 0, %s207
      %s208 = sphi 0, %s205
      %s209 = sphi 0, %s208
      %s225 = sphi 0, %s209
      %s231 = sphi 0, %s233
      %s234 = sphi 0, %s231
      %s235 = sphi 0, %s234
      %s251 = sphi 0, %s235
      %s257 = sphi 0, %s259
      %s260 = sphi 0, %s257
      %s261 = sphi 0, %s260
      %s277 = sphi 0, %s261
      %s283 = sphi 0, %s285
      %s286 = sphi 0, %s283
      %s287 = sphi 0, %s286
      %s303 = sphi 0, %s287
      %s307 = sphi 0, %s307
      %s309 = sphi 0, %s307
      %s310 = sphi 0, %s309
      %s324 = sphi 0, %s310
      %s328 = sphi 0, %s328
      %s330 = sphi 0, %s328
      %s331 = sphi 0, %s330
      %s345 = sphi 0, %s331
      %s349 = sphi 0, %s349
      %s351 = sphi 0, %s349
      %s352 = sphi 0, %s351
      %s366 = sphi 0, %s352
    $region4: #{decoder_forward.1} parent=1 // loop_header_branch
      %26 = sbr.rel (%p24) target = $region8
    $region5: #{decoder_forward.1} parent=1 // loop_body
      %s28 = ssub.s32 %s23, 1
      %s29 = ssub.s32 %s23, 2
      %s30 = sadd.s32 %s23, 1
      %s32 = sadd.s32 %s31, 1
      %p35 = scmp.eq.s32.totalorder %s23, 2
      %p36 = scmp.ne.s32.totalorder %s31, %s33
      %p37 = scmp.eq.s32.totalorder %s23, 0
      %p38 = por %p36, %p37
      %p39 = scmp.ne.s32.totalorder %s31, %s33
      %p40 = scmp.eq.s32.totalorder %s28, 2
      %p41 = por %p39, %p40
      %p42 = scmp.ne.s32.totalorder %s33, %s34
      %p43 = scmp.eq.s32.totalorder %s28, 0
      %p44 = por %p42, %p43
      %p45 = scmp.ne.s32.totalorder %s33, %s34
      %p46 = scmp.eq.s32.totalorder %s29, 2
      %p47 = por %p45, %p46
      %p49 = scmp.ne.s32.totalorder %s34, %s48
      %p50 = scmp.eq.s32.totalorder %s29, 0
      %p51 = por %p49, %p50
      %s53 = sadd.s32 %s52, 1
      %p56 = scmp.eq.s32.totalorder %s23, 2
      %p57 = scmp.ne.s32.totalorder %s52, %s54
      %p58 = scmp.eq.s32.totalorder %s23, 0
      %p59 = por %p57, %p58
      %p60 = scmp.ne.s32.totalorder %s52, %s54
      %p61 = scmp.eq.s32.totalorder %s28, 2
      %p62 = por %p60, %p61
      %p63 = scmp.ne.s32.totalorder %s54, %s55
      %p64 = scmp.eq.s32.totalorder %s28, 0
      %p65 = por %p63, %p64
      %p66 = scmp.ne.s32.totalorder %s54, %s55
      %p67 = scmp.eq.s32.totalorder %s29, 2
      %p68 = por %p66, %p67
      %p70 = scmp.ne.s32.totalorder %s55, %s69
      %p71 = scmp.eq.s32.totalorder %s29, 0
      %p72 = por %p70, %p71
      %s73 = ssub.s32 %s23, %s30
      %p74 = scmp.eq.s32.totalorder %s73, 0
      %s76 = sadd.s32 %s75, 1
      %s77 = scalar_select %p74, %s75, %s76
      %p80 = pneg %p74
      %p81 = scmp.eq.s32.totalorder %s23, 2
      %p82 = por %p80, %p81
      %p83 = scmp.ne.s32.totalorder %s75, %s78
      %p84 = scmp.eq.s32.totalorder %s23, 0
      %p85 = por %p83, %p84
      %p86 = scmp.ne.s32.totalorder %s75, %s78
      %p87 = scmp.eq.s32.totalorder %s28, 2
      %p88 = por %p86, %p87
      %p89 = scmp.ne.s32.totalorder %s78, %s79
      %p90 = scmp.eq.s32.totalorder %s28, 0
      %p91 = por %p89, %p90
      %p92 = scmp.ne.s32.totalorder %s78, %s79
      %p93 = scmp.eq.s32.totalorder %s29, 2
      %p94 = por %p92, %p93
      %p96 = scmp.ne.s32.totalorder %s79, %s95
      %p97 = scmp.eq.s32.totalorder %s29, 0
      %p98 = por %p96, %p97
      %s99 = ssub.s32 %s23, %s30
      %p100 = scmp.eq.s32.totalorder %s99, 0
      %s102 = sadd.s32 %s101, 1
      %s103 = scalar_select %p100, %s101, %s102
      %p106 = pneg %p100
      %p107 = scmp.eq.s32.totalorder %s23, 2
      %p108 = por %p106, %p107
      %p109 = scmp.ne.s32.totalorder %s101, %s104
      %p110 = scmp.eq.s32.totalorder %s23, 0
      %p111 = por %p109, %p110
      %p112 = scmp.ne.s32.totalorder %s101, %s104
      %p113 = scmp.eq.s32.totalorder %s28, 2
      %p114 = por %p112, %p113
      %p115 = scmp.ne.s32.totalorder %s104, %s105
      %p116 = scmp.eq.s32.totalorder %s28, 0
      %p117 = por %p115, %p116
      %p118 = scmp.ne.s32.totalorder %s104, %s105
      %p119 = scmp.eq.s32.totalorder %s29, 2
      %p120 = por %p118, %p119
      %p122 = scmp.ne.s32.totalorder %s105, %s121
      %p123 = scmp.eq.s32.totalorder %s29, 0
      %p124 = por %p122, %p123
      %s125 = ssub.s32 %s23, %s30
      %p126 = scmp.eq.s32.totalorder %s125, 0
      %s128 = sadd.s32 %s127, 1
      %s129 = scalar_select %p126, %s127, %s128
      %p132 = pneg %p126
      %p133 = scmp.eq.s32.totalorder %s23, 2
      %p134 = por %p132, %p133
      %p135 = scmp.ne.s32.totalorder %s127, %s130
      %p136 = scmp.eq.s32.totalorder %s23, 0
      %p137 = por %p135, %p136
      %p138 = scmp.ne.s32.totalorder %s127, %s130
      %p139 = scmp.eq.s32.totalorder %s28, 2
      %p140 = por %p138, %p139
      %p141 = scmp.ne.s32.totalorder %s130, %s131
      %p142 = scmp.eq.s32.totalorder %s28, 0
      %p143 = por %p141, %p142
      %p144 = scmp.ne.s32.totalorder %s130, %s131
      %p145 = scmp.eq.s32.totalorder %s29, 2
      %p146 = por %p144, %p145
      %p148 = scmp.ne.s32.totalorder %s131, %s147
      %p149 = scmp.eq.s32.totalorder %s29, 0
      %p150 = por %p148, %p149
      %s151 = ssub.s32 %s23, %s30
      %p152 = scmp.eq.s32.totalorder %s151, 0
      %s154 = sadd.s32 %s153, 1
      %s155 = scalar_select %p152, %s153, %s154
      %p158 = pneg %p152
      %p159 = scmp.eq.s32.totalorder %s23, 2
      %p160 = por %p158, %p159
      %p161 = scmp.ne.s32.totalorder %s153, %s156
      %p162 = scmp.eq.s32.totalorder %s23, 0
      %p163 = por %p161, %p162
      %p164 = scmp.ne.s32.totalorder %s153, %s156
      %p165 = scmp.eq.s32.totalorder %s28, 2
      %p166 = por %p164, %p165
      %p167 = scmp.ne.s32.totalorder %s156, %s157
      %p168 = scmp.eq.s32.totalorder %s28, 0
      %p169 = por %p167, %p168
      %p170 = scmp.ne.s32.totalorder %s156, %s157
      %p171 = scmp.eq.s32.totalorder %s29, 2
      %p172 = por %p170, %p171
      %p174 = scmp.ne.s32.totalorder %s157, %s173
      %p175 = scmp.eq.s32.totalorder %s29, 0
      %p176 = por %p174, %p175
      %s177 = ssub.s32 %s23, %s30
      %p178 = scmp.eq.s32.totalorder %s177, 0
      %s180 = sadd.s32 %s179, 1
      %s181 = scalar_select %p178, %s179, %s180
      %p184 = pneg %p178
      %p185 = scmp.eq.s32.totalorder %s23, 2
      %p186 = por %p184, %p185
      %p187 = scmp.ne.s32.totalorder %s179, %s182
      %p188 = scmp.eq.s32.totalorder %s23, 0
      %p189 = por %p187, %p188
      %p190 = scmp.ne.s32.totalorder %s179, %s182
      %p191 = scmp.eq.s32.totalorder %s28, 2
      %p192 = por %p190, %p191
      %p193 = scmp.ne.s32.totalorder %s182, %s183
      %p194 = scmp.eq.s32.totalorder %s28, 0
      %p195 = por %p193, %p194
      %p196 = scmp.ne.s32.totalorder %s182, %s183
      %p197 = scmp.eq.s32.totalorder %s29, 2
      %p198 = por %p196, %p197
      %p200 = scmp.ne.s32.totalorder %s183, %s199
      %p201 = scmp.eq.s32.totalorder %s29, 0
      %p202 = por %p200, %p201
      %s203 = ssub.s32 %s23, %s30
      %p204 = scmp.eq.s32.totalorder %s203, 0
      %s206 = sadd.s32 %s205, 1
      %s207 = scalar_select %p204, %s205, %s206
      %p210 = pneg %p204
      %p211 = scmp.eq.s32.totalorder %s23, 2
      %p212 = por %p210, %p211
      %p213 = scmp.ne.s32.totalorder %s205, %s208
      %p214 = scmp.eq.s32.totalorder %s23, 0
      %p215 = por %p213, %p214
      %p216 = scmp.ne.s32.totalorder %s205, %s208
      %p217 = scmp.eq.s32.totalorder %s28, 2
      %p218 = por %p216, %p217
      %p219 = scmp.ne.s32.totalorder %s208, %s209
      %p220 = scmp.eq.s32.totalorder %s28, 0
      %p221 = por %p219, %p220
      %p222 = scmp.ne.s32.totalorder %s208, %s209
      %p223 = scmp.eq.s32.totalorder %s29, 2
      %p224 = por %p222, %p223
      %p226 = scmp.ne.s32.totalorder %s209, %s225
      %p227 = scmp.eq.s32.totalorder %s29, 0
      %p228 = por %p226, %p227
      %s229 = ssub.s32 %s23, %s30
      %p230 = scmp.eq.s32.totalorder %s229, 0
      %s232 = sadd.s32 %s231, 1
      %s233 = scalar_select %p230, %s231, %s232
      %p236 = pneg %p230
      %p237 = scmp.eq.s32.totalorder %s23, 2
      %p238 = por %p236, %p237
      %p239 = scmp.ne.s32.totalorder %s231, %s234
      %p240 = scmp.eq.s32.totalorder %s23, 0
      %p241 = por %p239, %p240
      %p242 = scmp.ne.s32.totalorder %s231, %s234
      %p243 = scmp.eq.s32.totalorder %s28, 2
      %p244 = por %p242, %p243
      %p245 = scmp.ne.s32.totalorder %s234, %s235
      %p246 = scmp.eq.s32.totalorder %s28, 0
      %p247 = por %p245, %p246
      %p248 = scmp.ne.s32.totalorder %s234, %s235
      %p249 = scmp.eq.s32.totalorder %s29, 2
      %p250 = por %p248, %p249
      %p252 = scmp.ne.s32.totalorder %s235, %s251
      %p253 = scmp.eq.s32.totalorder %s29, 0
      %p254 = por %p252, %p253
      %s255 = ssub.s32 %s23, %s30
      %p256 = scmp.eq.s32.totalorder %s255, 0
      %s258 = sadd.s32 %s257, 1
      %s259 = scalar_select %p256, %s257, %s258
      %p262 = pneg %p256
      %p263 = scmp.eq.s32.totalorder %s23, 2
      %p264 = por %p262, %p263
      %p265 = scmp.ne.s32.totalorder %s257, %s260
      %p266 = scmp.eq.s32.totalorder %s23, 0
      %p267 = por %p265, %p266
      %p268 = scmp.ne.s32.totalorder %s257, %s260
      %p269 = scmp.eq.s32.totalorder %s28, 2
      %p270 = por %p268, %p269
      %p271 = scmp.ne.s32.totalorder %s260, %s261
      %p272 = scmp.eq.s32.totalorder %s28, 0
      %p273 = por %p271, %p272
      %p274 = scmp.ne.s32.totalorder %s260, %s261
      %p275 = scmp.eq.s32.totalorder %s29, 2
      %p276 = por %p274, %p275
      %p278 = scmp.ne.s32.totalorder %s261, %s277
      %p279 = scmp.eq.s32.totalorder %s29, 0
      %p280 = por %p278, %p279
      %s281 = ssub.s32 %s23, %s30
      %p282 = scmp.eq.s32.totalorder %s281, 0
      %s284 = sadd.s32 %s283, 1
      %s285 = scalar_select %p282, %s283, %s284
      %p288 = pneg %p282
      %p289 = scmp.eq.s32.totalorder %s23, 2
      %p290 = por %p288, %p289
      %p291 = scmp.ne.s32.totalorder %s283, %s286
      %p292 = scmp.eq.s32.totalorder %s23, 0
      %p293 = por %p291, %p292
      %p294 = scmp.ne.s32.totalorder %s283, %s286
      %p295 = scmp.eq.s32.totalorder %s28, 2
      %p296 = por %p294, %p295
      %p297 = scmp.ne.s32.totalorder %s286, %s287
      %p298 = scmp.eq.s32.totalorder %s28, 0
      %p299 = por %p297, %p298
      %p300 = scmp.ne.s32.totalorder %s286, %s287
      %p301 = scmp.eq.s32.totalorder %s29, 2
      %p302 = por %p300, %p301
      %p304 = scmp.ne.s32.totalorder %s287, %s303
      %p305 = scmp.eq.s32.totalorder %s29, 0
      %p306 = por %p304, %p305
      %s308 = sadd.s32 %s307, 1
      %p311 = scmp.eq.s32.totalorder %s23, 2
      %p312 = scmp.ne.s32.totalorder %s307, %s309
      %p313 = scmp.eq.s32.totalorder %s23, 0
      %p314 = por %p312, %p313
      %p315 = scmp.ne.s32.totalorder %s307, %s309
      %p316 = scmp.eq.s32.totalorder %s28, 2
      %p317 = por %p315, %p316
      %p318 = scmp.ne.s32.totalorder %s309, %s310
      %p319 = scmp.eq.s32.totalorder %s28, 0
      %p320 = por %p318, %p319
      %p321 = scmp.ne.s32.totalorder %s309, %s310
      %p322 = scmp.eq.s32.totalorder %s29, 2
      %p323 = por %p321, %p322
      %p325 = scmp.ne.s32.totalorder %s310, %s324
      %p326 = scmp.eq.s32.totalorder %s29, 0
      %p327 = por %p325, %p326
      %s329 = sadd.s32 %s328, 1
      %p332 = scmp.eq.s32.totalorder %s23, 2
      %p333 = scmp.ne.s32.totalorder %s328, %s330
      %p334 = scmp.eq.s32.totalorder %s23, 0
      %p335 = por %p333, %p334
      %p336 = scmp.ne.s32.totalorder %s328, %s330
      %p337 = scmp.eq.s32.totalorder %s28, 2
      %p338 = por %p336, %p337
      %p339 = scmp.ne.s32.totalorder %s330, %s331
      %p340 = scmp.eq.s32.totalorder %s28, 0
      %p341 = por %p339, %p340
      %p342 = scmp.ne.s32.totalorder %s330, %s331
      %p343 = scmp.eq.s32.totalorder %s29, 2
      %p344 = por %p342, %p343
      %p346 = scmp.ne.s32.totalorder %s331, %s345
      %p347 = scmp.eq.s32.totalorder %s29, 0
      %p348 = por %p346, %p347
      %s350 = sadd.s32 %s349, 1
      %p353 = scmp.eq.s32.totalorder %s23, 2
      %p354 = scmp.ne.s32.totalorder %s349, %s351
      %p355 = scmp.eq.s32.totalorder %s23, 0
      %p356 = por %p354, %p355
      %p357 = scmp.ne.s32.totalorder %s349, %s351
      %p358 = scmp.eq.s32.totalorder %s28, 2
      %p359 = por %p357, %p358
      %p360 = scmp.ne.s32.totalorder %s351, %s352
      %p361 = scmp.eq.s32.totalorder %s28, 0
      %p362 = por %p360, %p361
      %p363 = scmp.ne.s32.totalorder %s351, %s352
      %p364 = scmp.eq.s32.totalorder %s29, 2
      %p365 = por %p363, %p364
      %p367 = scmp.ne.s32.totalorder %s352, %s366
      %p368 = scmp.eq.s32.totalorder %s29, 0
      %p369 = por %p367, %p368
      %p370 = scmp.le.s32.totalorder 1, %s23
      %p371 = scmp.lt.s32.totalorder %s23, 4
      %p372 = pnand %p370, %p371
      %p373 = pneg %p372
      // Predicated region
      $region9: #{decoder_forward.1} parent=5 // pred_check
        _
      $region10: #{decoder_forward.1} parent=5 // pred_check_branch
        %375 = sbr.rel (%p372) target = $region12
      $region11: #{decoder_forward.1} parent=5 // pred_region
        %s376 = ssub.s32 %s23, 1
        // Predicated region
        $region13: #{decoder_forward.1} parent=11 // pred_check
          %p377 = pneg %p44
        $region14: #{decoder_forward.1} parent=11 // pred_check_branch
          %379 = sbr.rel (%p377) target = $region16
        $region15: #{decoder_forward.1} parent=11 // pred_region
          %s381 = ssub.s32 256, 256
          %382 = vsyncadd [#allocation4], %s381
          %s383 = sshll.u32 [#allocation3], 4
          %s384 = int_to_ptr.vmem [resolvable:$true] %s383
          %389 = dma.hbm_to_vmem [thread:$0]  %s0, 256, %s384, [#allocation4], 128, 128, 8
        $region16: #{decoder_forward.1} parent=11 // pred_fallthru
          _
        // Predicated region
        $region17: #{decoder_forward.1} parent=11 // pred_check
          %p390 = pneg %p65
        $region18: #{decoder_forward.1} parent=11 // pred_check_branch
          %392 = sbr.rel (%p390) target = $region20
        $region19: #{decoder_forward.1} parent=11 // pred_region
          _
        $region20: #{decoder_forward.1} parent=11 // pred_fallthru
          _
        // Predicated region
        $region21: #{decoder_forward.1} parent=11 // pred_check
          %p393 = pneg %p320
        $region22: #{decoder_forward.1} parent=11 // pred_check_branch
          %395 = sbr.rel (%p393) target = $region24
        $region23: #{decoder_forward.1} parent=11 // pred_region
          %s397 = ssub.s32 512, 512
          %398 = vsyncadd [#allocation6], %s397
          %s399 = sshll.u32 [#allocation7], 4
          %s400 = int_to_ptr.vmem [resolvable:$true] %s399
          %405 = dma.hbm_to_vmem [thread:$0]  %s11, 512, %s400, [#allocation6], 128, 128, 8
        $region24: #{decoder_forward.1} parent=11 // pred_fallthru
          _
        // Predicated region
        $region25: #{decoder_forward.1} parent=11 // pred_check
          %p406 = pneg %p341
        $region26: #{decoder_forward.1} parent=11 // pred_check_branch
          %408 = sbr.rel (%p406) target = $region28
        $region27: #{decoder_forward.1} parent=11 // pred_region
          _
        $region28: #{decoder_forward.1} parent=11 // pred_fallthru
          _
      $region12: #{decoder_forward.1} parent=5 // pred_fallthru
        _
      %p409 = scmp.lt.s32.totalorder %s23, 3
      // Predicated region
      $region29: #{decoder_forward.1} parent=5 // pred_check
        %p410 = pneg %p409
      $region30: #{decoder_forward.1} parent=5 // pred_check_branch
        %412 = sbr.rel (%p410) target = $region32
      $region31: #{decoder_forward.1} parent=5 // pred_region
        // Predicated region
        $region33: #{decoder_forward.1} parent=31 // pred_check
          %p413 = pneg %p85
        $region34: #{decoder_forward.1} parent=31 // pred_check_branch
          %415 = sbr.rel (%p413) target = $region36
        $region35: #{decoder_forward.1} parent=31 // pred_region
          %p416 = scmp.lt.s32.totalorder %s23, 2
          %s417 = scalar_select %p416, %s23, 2
          %s418 = smul.addr %s417, 4
          %s419 = smul.addr %s418, 4
          %s420 = scalar_lea.vmem %s2, %s419
        $region36: #{decoder_forward.1} parent=31 // pred_fallthru
          _
        // Predicated region
        $region37: #{decoder_forward.1} parent=31 // pred_check
          %p421 = pneg %p111
        $region38: #{decoder_forward.1} parent=31 // pred_check_branch
          %423 = sbr.rel (%p421) target = $region40
        $region39: #{decoder_forward.1} parent=31 // pred_region
          %p424 = scmp.lt.s32.totalorder %s23, 2
          %s425 = scalar_select %p424, %s23, 2
          %s426 = smul.addr %s425, 4
          %s427 = smul.addr %s426, 4
          %s428 = scalar_lea.vmem %s3, %s427
        $region40: #{decoder_forward.1} parent=31 // pred_fallthru
          _
        // Predicated region
        $region41: #{decoder_forward.1} parent=31 // pred_check
          %p429 = pneg %p137
        $region42: #{decoder_forward.1} parent=31 // pred_check_branch
          %431 = sbr.rel (%p429) target = $region44
        $region43: #{decoder_forward.1} parent=31 // pred_region
          %p432 = scmp.lt.s32.totalorder %s23, 2
          %s433 = scalar_select %p432, %s23, 2
          %s434 = smul.addr %s433, 4
          %s435 = smul.addr %s434, 4
          %s436 = scalar_lea.vmem %s4, %s435
        $region44: #{decoder_forward.1} parent=31 // pred_fallthru
          _
        // Predicated region
        $region45: #{decoder_forward.1} parent=31 // pred_check
          %p437 = pneg %p163
        $region46: #{decoder_forward.1} parent=31 // pred_check_branch
          %439 = sbr.rel (%p437) target = $region48
        $region47: #{decoder_forward.1} parent=31 // pred_region
          %p440 = scmp.lt.s32.totalorder %s23, 2
          %s441 = scalar_select %p440, %s23, 2
          %s442 = smul.addr %s441, 4
          %s443 = smul.addr %s442, 4
          %s444 = scalar_lea.vmem %s5, %s443
        $region48: #{decoder_forward.1} parent=31 // pred_fallthru
          _
        // Predicated region
        $region49: #{decoder_forward.1} parent=31 // pred_check
          %p445 = pneg %p189
        $region50: #{decoder_forward.1} parent=31 // pred_check_branch
          %447 = sbr.rel (%p445) target = $region52
        $region51: #{decoder_forward.1} parent=31 // pred_region
          %p448 = scmp.lt.s32.totalorder %s23, 2
          %s449 = scalar_select %p448, %s23, 2
          %s450 = smul.addr %s449, 4
          %s451 = smul.addr %s450, 4
          %s452 = scalar_lea.vmem %s6, %s451
        $region52: #{decoder_forward.1} parent=31 // pred_fallthru
          _
        // Predicated region
        $region53: #{decoder_forward.1} parent=31 // pred_check
          %p453 = pneg %p215
        $region54: #{decoder_forward.1} parent=31 // pred_check_branch
          %455 = sbr.rel (%p453) target = $region56
        $region55: #{decoder_forward.1} parent=31 // pred_region
          %s456 = sand.u32 %s23, 1
          %s457 = scalar_lea.sflag [#allocation6], %s456
          %s458 = sand.u32 %s205, 1
          %s459 = smul.addr %s458, 16
          %s460 = scalar_lea.vmem [#allocation5], %s459
          %s462 = ssub.s32 256, 256
          %463 = vsyncadd %s457, %s462
          %s464 = smul.addr %s23, 4
          %s465 = smul.addr %s464, 64
          %s466 = scalar_lea.hbm %s7, %s465
          %s467 = sshll.u32 %s460, 4
          %s468 = int_to_ptr.vmem [resolvable:$true] %s467
          %473 = dma.hbm_to_vmem [thread:$0]  %s466, 256, %s468, %s457, 64, 64, 4
        $region56: #{decoder_forward.1} parent=31 // pred_fallthru
          _
        // Predicated region
        $region57: #{decoder_forward.1} parent=31 // pred_check
          %p474 = pneg %p241
        $region58: #{decoder_forward.1} parent=31 // pred_check_branch
          %476 = sbr.rel (%p474) target = $region60
        $region59: #{decoder_forward.1} parent=31 // pred_region
          %p477 = scmp.lt.s32.totalorder %s23, 2
          %s478 = scalar_select %p477, %s23, 2
          %s479 = smul.addr %s478, 8
          %s480 = smul.addr %s479, 4
          %s481 = scalar_lea.vmem %s8, %s480
        $region60: #{decoder_forward.1} parent=31 // pred_fallthru
          _
        // Predicated region
        $region61: #{decoder_forward.1} parent=31 // pred_check
          %p482 = pneg %p267
        $region62: #{decoder_forward.1} parent=31 // pred_check_branch
          %484 = sbr.rel (%p482) target = $region64
        $region63: #{decoder_forward.1} parent=31 // pred_region
          %p485 = scmp.lt.s32.totalorder %s23, 2
          %s486 = scalar_select %p485, %s23, 2
          %s487 = smul.addr %s486, 2
          %s488 = smul.addr %s487, 8
          %s489 = scalar_lea.vmem %s9, %s488
        $region64: #{decoder_forward.1} parent=31 // pred_fallthru
          _
        // Predicated region
        $region65: #{decoder_forward.1} parent=31 // pred_check
          %p490 = pneg %p293
        $region66: #{decoder_forward.1} parent=31 // pred_check_branch
          %492 = sbr.rel (%p490) target = $region68
        $region67: #{decoder_forward.1} parent=31 // pred_region
          %p493 = scmp.lt.s32.totalorder %s23, 2
          %s494 = scalar_select %p493, %s23, 2
          %s495 = scalar_lea.vmem %s10, %s494
        $region68: #{decoder_forward.1} parent=31 // pred_fallthru
          _
      $region32: #{decoder_forward.1} parent=5 // pred_fallthru
        _
      %p496 = scmp.le.s32.totalorder 1, %s23
      %p497 = scmp.lt.s32.totalorder %s23, 4
      %p498 = pnand %p496, %p497
      %p499 = pneg %p498
      // Predicated region
      $region69: #{decoder_forward.1} parent=5 // pred_check
        _
      $region70: #{decoder_forward.1} parent=5 // pred_check_branch
        %501 = sbr.rel (%p498) target = $region72
      $region71: #{decoder_forward.1} parent=5 // pred_region
        %s502 = ssub.s32 %s23, 1
        // Predicated region
        $region73: #{decoder_forward.1} parent=71 // pred_check
          %p503 = pneg %p44
        $region74: #{decoder_forward.1} parent=71 // pred_check_branch
          %505 = sbr.rel (%p503) target = $region76
        $region75: #{decoder_forward.1} parent=71 // pred_region
          %506 = dma.done [#allocation4], 256
        $region76: #{decoder_forward.1} parent=71 // pred_fallthru
          _
        %s507 = sand.u32 %s28, 1
        %s508 = scalar_lea.sflag [#allocation6], %s507
        %s509 = sand.u32 %s208, 1
        %s510 = smul.addr %s509, 16
        %s511 = scalar_lea.vmem [#allocation5], %s510
        // Predicated region
        $region77: #{decoder_forward.1} parent=71 // pred_check
          %p512 = pneg %p221
        $region78: #{decoder_forward.1} parent=71 // pred_check_branch
          %514 = sbr.rel (%p512) target = $region80
        $region79: #{decoder_forward.1} parent=71 // pred_region
          %515 = dma.done %s508, 256
        $region80: #{decoder_forward.1} parent=71 // pred_fallthru
          _
        // Predicated region
        $region81: #{decoder_forward.1} parent=71 // pred_check
          %p516 = pneg %p320
        $region82: #{decoder_forward.1} parent=71 // pred_check_branch
          %518 = sbr.rel (%p516) target = $region84
        $region83: #{decoder_forward.1} parent=71 // pred_region
          %519 = dma.done [#allocation6], 512
        $region84: #{decoder_forward.1} parent=71 // pred_fallthru
          _
        %p520 = pneg %p44
        %p521 = pneg %p41
        %p522 = pneg %p65
        %p523 = pneg %p62
        %p524 = scmp.lt.s32.totalorder %s28, 2
        %s525 = scalar_select %p524, %s28, 2
        %s526 = smul.addr %s525, 4
        %s527 = smul.addr %s526, 4
        %s528 = scalar_lea.vmem %s2, %s527
        %p529 = pneg %p91
        %p530 = pneg %p88
        %p531 = scmp.lt.s32.totalorder %s28, 2
        %s532 = scalar_select %p531, %s28, 2
        %s533 = smul.addr %s532, 4
        %s534 = smul.addr %s533, 4
        %s535 = scalar_lea.vmem %s3, %s534
        %p536 = pneg %p117
        %p537 = pneg %p114
        %p538 = scmp.lt.s32.totalorder %s28, 2
        %s539 = scalar_select %p538, %s28, 2
        %s540 = smul.addr %s539, 4
        %s541 = smul.addr %s540, 4
        %s542 = scalar_lea.vmem %s4, %s541
        %p543 = pneg %p143
        %p544 = pneg %p140
        %p545 = scmp.lt.s32.totalorder %s28, 2
        %s546 = scalar_select %p545, %s28, 2
        %s547 = smul.addr %s546, 4
        %s548 = smul.addr %s547, 4
        %s549 = scalar_lea.vmem %s5, %s548
        %p550 = pneg %p169
        %p551 = pneg %p166
        %p552 = scmp.lt.s32.totalorder %s28, 2
        %s553 = scalar_select %p552, %s28, 2
        %s554 = smul.addr %s553, 4
        %s555 = smul.addr %s554, 4
        %s556 = scalar_lea.vmem %s6, %s555
        %p557 = pneg %p195
        %p558 = pneg %p192
        %s559 = sand.u32 %s28, 1
        %s560 = scalar_lea.sflag [#allocation6], %s559
        %s561 = sand.u32 %s208, 1
        %s562 = smul.addr %s561, 16
        %s563 = scalar_lea.vmem [#allocation5], %s562
        %p564 = pneg %p221
        %p565 = pneg %p218
        %p566 = scmp.lt.s32.totalorder %s28, 2
        %s567 = scalar_select %p566, %s28, 2
        %s568 = smul.addr %s567, 8
        %s569 = smul.addr %s568, 4
        %s570 = scalar_lea.vmem %s8, %s569
        %p571 = pneg %p247
        %p572 = pneg %p244
        %p573 = scmp.lt.s32.totalorder %s28, 2
        %s574 = scalar_select %p573, %s28, 2
        %s575 = smul.addr %s574, 2
        %s576 = smul.addr %s575, 8
        %s577 = scalar_lea.vmem %s9, %s576
        %p578 = pneg %p273
        %p579 = pneg %p270
        %p580 = scmp.lt.s32.totalorder %s28, 2
        %s581 = scalar_select %p580, %s28, 2
        %s582 = scalar_lea.vmem %s10, %s581
        %p583 = pneg %p299
        %p584 = pneg %p296
        %p585 = pneg %p320
        %p586 = pneg %p317
        %p587 = pneg %p341
        %p588 = pneg %p338
        %p589 = pneg %p362
        %p590 = pneg %p359
        %p591 = scmp.lt.s32.totalorder %s28, 2
        %s592 = scalar_select %p591, %s28, 2
        %s593 = smul.addr %s592, 4
        %s594 = smul.addr %s593, 4
        %s595 = scalar_lea.vmem %s2, %s594
        %p596 = scmp.lt.s32.totalorder %s28, 2
        %s597 = scalar_select %p596, %s28, 2
        %s598 = smul.addr %s597, 4
        %s599 = smul.addr %s598, 4
        %s600 = scalar_lea.vmem %s3, %s599
        %p601 = scmp.lt.s32.totalorder %s28, 2
        %s602 = scalar_select %p601, %s28, 2
        %s603 = smul.addr %s602, 4
        %s604 = smul.addr %s603, 4
        %s605 = scalar_lea.vmem %s4, %s604
        %p606 = scmp.lt.s32.totalorder %s28, 2
        %s607 = scalar_select %p606, %s28, 2
        %s608 = smul.addr %s607, 4
        %s609 = smul.addr %s608, 4
        %s610 = scalar_lea.vmem %s5, %s609
        %p611 = scmp.lt.s32.totalorder %s28, 2
        %s612 = scalar_select %p611, %s28, 2
        %s613 = smul.addr %s612, 4
        %s614 = smul.addr %s613, 4
        %s615 = scalar_lea.vmem %s6, %s614
        %p616 = scmp.lt.s32.totalorder %s28, 2
        %s617 = scalar_select %p616, %s28, 2
        %s618 = smul.addr %s617, 8
        %s619 = smul.addr %s618, 4
        %s620 = scalar_lea.vmem %s8, %s619
        %p621 = scmp.lt.s32.totalorder %s28, 2
        %s622 = scalar_select %p621, %s28, 2
        %s623 = smul.addr %s622, 2
        %s624 = smul.addr %s623, 8
        %s625 = scalar_lea.vmem %s9, %s624
        %p626 = scmp.lt.s32.totalorder %s28, 2
        %s627 = scalar_select %p626, %s28, 2
        %s628 = scalar_lea.vmem %s10, %s627
        %p630 = scmp.eq.s32.totalorder %s28, 0
        // Predicated region
        $region85: #{decoder_forward.1} parent=71 // pred_check
          %p631 = pneg %p630
        $region86: #{decoder_forward.1} parent=71 // pred_check_branch
          %633 = sbr.rel (%p631) target = $region88
        $region87: #{decoder_forward.1} parent=71 // pred_region
          %v634 = vld [vmem:[#allocation3] sm:$0xff]
          %v635 = vld [vmem:[#allocation3 + $0x8] sm:$0xff]
          %vm636 = vcmask 261120
          %637 = vst.msk [vmem:[#allocation2] sm:$0xff] %vm636, %v634
          %638 = vst.msk [vmem:[#allocation2 + $0x8] sm:$0xff] %vm636, %v635
        $region88: #{decoder_forward.1} parent=71 // pred_fallthru
          _
        %v639 = vld [vmem:[#allocation2] sm:$0xff]
        %v640 = vld [vmem:[#allocation2 + $0x8] sm:$0xff]
        %v641 = vld [vmem:[%s1] sm:$0xf]
        %v642 = vld [vmem:[%s1 + $0x4] sm:$0xf]
        %v643 = vld [vmem:[%s1 + $0x8] sm:$0xf]
        %v644 = vld [vmem:[%s1 + $0xc] sm:$0xf]
        %v645 = vld [vmem:[%s625] sm:$0xff]
        %v646 = vld [vmem:[%s625 + $0x8] sm:$0x7]
        %v647 = vpack.c.bf16 %v640, %v639
        %v648 = vld [vmem:[%s595] sm:$0xf]
        %v649 = vld [vmem:[%s595 + $0x4] sm:$0xf]
        %v650 = vld [vmem:[%s595 + $0x8] sm:$0xf]
        %v651 = vld [vmem:[%s595 + $0xc] sm:$0xf]
        %v656 = vunpack.c.l.b16 %v648
        %v657 = vunpack.c.l.b16 %v649
        %v658 = vunpack.c.l.b16 %v650
        %v659 = vunpack.c.l.b16 %v651
        %v660 = vpack.c.b16 %v657, %v656
        %v661 = vpack.c.b16 %v659, %v658
        %vm664 = vcmask 261120
        %v666 = vsel %vm664, %v647, 0
        %668 = vmatprep.subr.bf16.mxu0 0
        %669 = vmatpush1.bf16.msra.mxu0 0
        %670 = vmatprep.subr.bf16.mxu0 0
        %671 = vmatpush1.bf16.msra.mxu0 0
        %672 = vmatprep.subr.bf16.mxu0 0
        %673 = vmatpush1.bf16.msra.mxu0 0
        %674 = vmatprep.subr.bf16.mxu0 0
        %675 = vmatpush1.bf16.msra.mxu0 0
        %676 = vmatprep.subr.bf16.mxu0 0
        %677 = vmatpush1.bf16.msra.mxu0 0
        %678 = vmatprep.subr.bf16.mxu0 0
        %679 = vmatpush1.bf16.msra.mxu0 0
        %680 = vmatprep.subr.bf16.mxu0 0
        %681 = vmatpush1.bf16.msra.mxu0 %v661
        %682 = vmatprep.subr.bf16.mxu0 0
        %683 = vmatpush1.bf16.msra.mxu0 %v660
        %684 = vmatprep.subr.bf16.mxu0 0
        %685 = vmatpush2.bf16.msra.mxu0 0
        %686 = vmatprep.subr.bf16.mxu0 0
        %687 = vmatpush2.bf16.msra.mxu0 0
        %688 = vmatprep.subr.bf16.mxu0 0
        %689 = vmatpush2.bf16.msra.mxu0 0
        %690 = vmatprep.subr.bf16.mxu0 0
        %691 = vmatpush2.bf16.msra.mxu0 0
        %692 = vmatprep.subr.bf16.mxu0 0
        %693 = vmatpush2.bf16.msra.mxu0 0
        %694 = vmatprep.subr.bf16.mxu0 0
        %695 = vmatpush2.bf16.msra.mxu0 0
        %696 = vmatprep.subr.bf16.mxu0 0
        %697 = vmatpush2.bf16.msra.mxu0 0
        %698 = vmatprep.subr.bf16.mxu0 0
        %699 = vmatpush2.bf16.msra.mxu0 0
        %700 = vmatprep.mubr.bf16.mxu0 0
        %701 = vmatmul.mubr.bf16.gmra.mxu0 %v666
        %v702 = vpop.f32.mrf.mxu0
        %v703 = vadd.f32 0.0, %v702
        %v704 = vpop.f32.mrf.mxu0
        %v705 = vpop.f32.mrf.mxu0
        %v706 = vadd.f32 0.0, %v705
        %v707 = vpop.f32.mrf.mxu0
        %708 = vdwg.mxu0
        %v709 = vlaneseq
        %v710 = vshrl.u32 %v709, 7
        %v711 = vsub.s32 0, %v710
        %v712 = vrot.slane %v645, %v711
        %v713 = vadd.f32 %v703, %v712
        %v714 = vadd.f32 %v706, %v712
        %v715 = vlaneseq
        %v716 = vshrl.u32 %v715, 7
        %v717 = vsub.s32 1, %v716
        %v718 = vrot.slane %v645, %v717
        %720 = vrot.lane.b32.xlu0 %v718, 32
        %v721 = vpop.permute.xlu0 %720
        %v723 = vadd.f32 %v703, %v721
        %v724 = vadd.f32 %v706, %v721
        %v725 = vlaneseq
        %v726 = vshrl.u32 %v725, 7
        %v727 = vsub.s32 2, %v726
        %v728 = vrot.slane %v645, %v727
        %730 = vrot.lane.b32.xlu0 %v728, 64
        %v731 = vpop.permute.xlu0 %730
        %v733 = vadd.f32 %v703, %v731
        %v734 = vadd.f32 %v706, %v731
        %v735 = vld [vmem:[%s600] sm:$0xf]
        %v736 = vld [vmem:[%s600 + $0x4] sm:$0xf]
        %v737 = vld [vmem:[%s600 + $0x8] sm:$0xf]
        %v738 = vld [vmem:[%s600 + $0xc] sm:$0xf]
        %740 = vrot.lane.b32.xlu0 %v713, 120
        %v741 = vpop.permute.xlu0 %740
        %743 = vrot.lane.b32.xlu0 %v713, 112
        %v744 = vpop.permute.xlu0 %743
        %746 = vrot.lane.b32.xlu0 %v713, 104
        %v747 = vpop.permute.xlu0 %746
        %750 = vrot.lane.b32.xlu0 %v714, 120
        %v751 = vpop.permute.xlu0 %750
        %753 = vrot.lane.b32.xlu0 %v714, 112
        %v754 = vpop.permute.xlu0 %753
        %756 = vrot.lane.b32.xlu0 %v714, 104
        %v757 = vpop.permute.xlu0 %756
        %v759 = vpack.c.bf16 %v713, %v713
        %v760 = vpack.c.bf16 %v741, %v741
        %v761 = vpack.c.bf16 %v744, %v744
        %v762 = vpack.c.bf16 %v747, %v747
        %v763 = vpack.c.bf16 %v714, %v714
        %v764 = vpack.c.bf16 %v751, %v751
        %v765 = vpack.c.bf16 %v754, %v754
        %v766 = vpack.c.bf16 %v757, %v757
        %768 = vrot.lane.b32.xlu0 %v723, 120
        %v769 = vpop.permute.xlu0 %768
        %771 = vrot.lane.b32.xlu0 %v723, 112
        %v772 = vpop.permute.xlu0 %771
        %774 = vrot.lane.b32.xlu0 %v723, 104
        %v775 = vpop.permute.xlu0 %774
        %778 = vrot.lane.b32.xlu0 %v724, 120
        %v779 = vpop.permute.xlu0 %778
        %781 = vrot.lane.b32.xlu0 %v724, 112
        %v782 = vpop.permute.xlu0 %781
        %784 = vrot.lane.b32.xlu0 %v724, 104
        %v785 = vpop.permute.xlu0 %784
        %v787 = vpack.c.bf16 %v723, %v723
        %v788 = vpack.c.bf16 %v769, %v769
        %v789 = vpack.c.bf16 %v772, %v772
        %v790 = vpack.c.bf16 %v775, %v775
        %v791 = vpack.c.bf16 %v724, %v724
        %v792 = vpack.c.bf16 %v779, %v779
        %v793 = vpack.c.bf16 %v782, %v782
        %v794 = vpack.c.bf16 %v785, %v785
        %796 = vrot.lane.b32.xlu0 %v733, 120
        %v797 = vpop.permute.xlu0 %796
        %799 = vrot.lane.b32.xlu0 %v733, 112
        %v800 = vpop.permute.xlu0 %799
        %802 = vrot.lane.b32.xlu0 %v733, 104
        %v803 = vpop.permute.xlu0 %802
        %806 = vrot.lane.b32.xlu0 %v734, 120
        %v807 = vpop.permute.xlu0 %806
        %809 = vrot.lane.b32.xlu0 %v734, 112
        %v810 = vpop.permute.xlu0 %809
        %812 = vrot.lane.b32.xlu0 %v734, 104
        %v813 = vpop.permute.xlu0 %812
        %v815 = vpack.c.bf16 %v733, %v733
        %v816 = vpack.c.bf16 %v797, %v797
        %v817 = vpack.c.bf16 %v800, %v800
        %v818 = vpack.c.bf16 %v803, %v803
        %v819 = vpack.c.bf16 %v734, %v734
        %v820 = vpack.c.bf16 %v807, %v807
        %v821 = vpack.c.bf16 %v810, %v810
        %v822 = vpack.c.bf16 %v813, %v813
        %824 = vrot.lane.b32.xlu0 %v787, 96
        %v825 = vpop.permute.xlu0 %824
        %vm826 = vcmask 64512
        %v828 = vsel %vm826, %v759, 0
        %v831 = vsel %vm826, %v825, 0
        %833 = vmatprep.subr.bf16.mxu0 0
        %834 = vmatpush1.bf16.xpose.msra.mxu0 0
        %835 = vmatprep.subr.bf16.mxu0 0
        %836 = vmatpush1.bf16.xpose.msra.mxu0 0
        %837 = vmatprep.subr.bf16.mxu0 0
        %838 = vmatpush1.bf16.xpose.msra.mxu0 0
        %839 = vmatprep.subr.bf16.mxu0 0
        %840 = vmatpush1.bf16.xpose.msra.mxu0 0
        %841 = vmatprep.subr.bf16.mxu0 0
        %842 = vmatpush1.bf16.xpose.msra.mxu0 0
        %843 = vmatprep.subr.bf16.mxu0 0
        %844 = vmatpush1.bf16.xpose.msra.mxu0 0
        %845 = vmatprep.subr.bf16.mxu0 0
        %846 = vmatpush1.bf16.xpose.msra.mxu0 0
        %847 = vmatprep.subr.bf16.mxu0 0
        %848 = vmatpush1.bf16.xpose.msra.mxu0 %v831
        %849 = vmatprep.subr.bf16.mxu0 0
        %850 = vmatpush2.bf16.xpose.msra.mxu0 0
        %851 = vmatprep.subr.bf16.mxu0 0
        %852 = vmatpush2.bf16.xpose.msra.mxu0 0
        %853 = vmatprep.subr.bf16.mxu0 0
        %854 = vmatpush2.bf16.xpose.msra.mxu0 0
        %855 = vmatprep.subr.bf16.mxu0 0
        %856 = vmatpush2.bf16.xpose.msra.mxu0 0
        %857 = vmatprep.subr.bf16.mxu0 0
        %858 = vmatpush2.bf16.xpose.msra.mxu0 0
        %859 = vmatprep.subr.bf16.mxu0 0
        %860 = vmatpush2.bf16.xpose.msra.mxu0 0
        %861 = vmatprep.subr.bf16.mxu0 0
        %862 = vmatpush2.bf16.xpose.msra.mxu0 0
        %863 = vmatprep.subr.bf16.mxu0 0
        %864 = vmatpush2.bf16.xpose.msra.mxu0 0
        %865 = vmatprep.mubr.bf16.mxu0 0
        %866 = vmatmul.mubr.bf16.gmra.mxu0 %v828
        %v867 = vpop.f32.mrf.mxu0
        %v868 = vadd.f32 0.0, %v867
        %v869 = vpop.f32.mrf.mxu0
        %v870 = vpop.f32.mrf.mxu0
        %v871 = vpop.f32.mrf.mxu0
        %872 = vdwg.mxu0
        %874 = vrot.lane.b32.xlu0 %v788, 96
        %v875 = vpop.permute.xlu0 %874
        %v877 = vsel %vm826, %v760, 0
        %v880 = vsel %vm826, %v875, 0
        %882 = vmatprep.subr.bf16.mxu0 0
        %883 = vmatpush1.bf16.xpose.msra.mxu0 0
        %884 = vmatprep.subr.bf16.mxu0 0
        %885 = vmatpush1.bf16.xpose.msra.mxu0 0
        %886 = vmatprep.subr.bf16.mxu0 0
        %887 = vmatpush1.bf16.xpose.msra.mxu0 0
        %888 = vmatprep.subr.bf16.mxu0 0
        %889 = vmatpush1.bf16.xpose.msra.mxu0 0
        %890 = vmatprep.subr.bf16.mxu0 0
        %891 = vmatpush1.bf16.xpose.msra.mxu0 0
        %892 = vmatprep.subr.bf16.mxu0 0
        %893 = vmatpush1.bf16.xpose.msra.mxu0 0
        %894 = vmatprep.subr.bf16.mxu0 0
        %895 = vmatpush1.bf16.xpose.msra.mxu0 0
        %896 = vmatprep.subr.bf16.mxu0 0
        %897 = vmatpush1.bf16.xpose.msra.mxu0 %v880
        %898 = vmatprep.subr.bf16.mxu0 0
        %899 = vmatpush2.bf16.xpose.msra.mxu0 0
        %900 = vmatprep.subr.bf16.mxu0 0
        %901 = vmatpush2.bf16.xpose.msra.mxu0 0
        %902 = vmatprep.subr.bf16.mxu0 0
        %903 = vmatpush2.bf16.xpose.msra.mxu0 0
        %904 = vmatprep.subr.bf16.mxu0 0
        %905 = vmatpush2.bf16.xpose.msra.mxu0 0
        %906 = vmatprep.subr.bf16.mxu0 0
        %907 = vmatpush2.bf16.xpose.msra.mxu0 0
        %908 = vmatprep.subr.bf16.mxu0 0
        %909 = vmatpush2.bf16.xpose.msra.mxu0 0
        %910 = vmatprep.subr.bf16.mxu0 0
        %911 = vmatpush2.bf16.xpose.msra.mxu0 0
        %912 = vmatprep.subr.bf16.mxu0 0
        %913 = vmatpush2.bf16.xpose.msra.mxu0 0
        %914 = vmatprep.mubr.bf16.mxu0 0
        %915 = vmatmul.mubr.bf16.gmra.mxu0 %v877
        %v916 = vpop.f32.mrf.mxu0
        %v917 = vadd.f32 0.0, %v916
        %v918 = vpop.f32.mrf.mxu0
        %v919 = vpop.f32.mrf.mxu0
        %v920 = vpop.f32.mrf.mxu0
        %921 = vdwg.mxu0
        %923 = vrot.lane.b32.xlu0 %v789, 96
        %v924 = vpop.permute.xlu0 %923
        %v926 = vsel %vm826, %v761, 0
        %v929 = vsel %vm826, %v924, 0
        %931 = vmatprep.subr.bf16.mxu0 0
        %932 = vmatpush1.bf16.xpose.msra.mxu0 0
        %933 = vmatprep.subr.bf16.mxu0 0
        %934 = vmatpush1.bf16.xpose.msra.mxu0 0
        %935 = vmatprep.subr.bf16.mxu0 0
        %936 = vmatpush1.bf16.xpose.msra.mxu0 0
        %937 = vmatprep.subr.bf16.mxu0 0
        %938 = vmatpush1.bf16.xpose.msra.mxu0 0
        %939 = vmatprep.subr.bf16.mxu0 0
        %940 = vmatpush1.bf16.xpose.msra.mxu0 0
        %941 = vmatprep.subr.bf16.mxu0 0
        %942 = vmatpush1.bf16.xpose.msra.mxu0 0
        %943 = vmatprep.subr.bf16.mxu0 0
        %944 = vmatpush1.bf16.xpose.msra.mxu0 0
        %945 = vmatprep.subr.bf16.mxu0 0
        %946 = vmatpush1.bf16.xpose.msra.mxu0 %v929
        %947 = vmatprep.subr.bf16.mxu0 0
        %948 = vmatpush2.bf16.xpose.msra.mxu0 0
        %949 = vmatprep.subr.bf16.mxu0 0
        %950 = vmatpush2.bf16.xpose.msra.mxu0 0
        %951 = vmatprep.subr.bf16.mxu0 0
        %952 = vmatpush2.bf16.xpose.msra.mxu0 0
        %953 = vmatprep.subr.bf16.mxu0 0
        %954 = vmatpush2.bf16.xpose.msra.mxu0 0
        %955 = vmatprep.subr.bf16.mxu0 0
        %956 = vmatpush2.bf16.xpose.msra.mxu0 0
        %957 = vmatprep.subr.bf16.mxu0 0
        %958 = vmatpush2.bf16.xpose.msra.mxu0 0
        %959 = vmatprep.subr.bf16.mxu0 0
        %960 = vmatpush2.bf16.xpose.msra.mxu0 0
        %961 = vmatprep.subr.bf16.mxu0 0
        %962 = vmatpush2.bf16.xpose.msra.mxu0 0
        %963 = vmatprep.mubr.bf16.mxu0 0
        %964 = vmatmul.mubr.bf16.gmra.mxu0 %v926
        %v965 = vpop.f32.mrf.mxu0
        %v966 = vadd.f32 0.0, %v965
        %v967 = vpop.f32.mrf.mxu0
        %v968 = vpop.f32.mrf.mxu0
        %v969 = vpop.f32.mrf.mxu0
        %970 = vdwg.mxu0
        %972 = vrot.lane.b32.xlu0 %v790, 96
        %v973 = vpop.permute.xlu0 %972
        %v975 = vsel %vm826, %v762, 0
        %v978 = vsel %vm826, %v973, 0
        %980 = vmatprep.subr.bf16.mxu0 0
        %981 = vmatpush1.bf16.xpose.msra.mxu0 0
        %982 = vmatprep.subr.bf16.mxu0 0
        %983 = vmatpush1.bf16.xpose.msra.mxu0 0
        %984 = vmatprep.subr.bf16.mxu0 0
        %985 = vmatpush1.bf16.xpose.msra.mxu0 0
        %986 = vmatprep.subr.bf16.mxu0 0
        %987 = vmatpush1.bf16.xpose.msra.mxu0 0
        %988 = vmatprep.subr.bf16.mxu0 0
        %989 = vmatpush1.bf16.xpose.msra.mxu0 0
        %990 = vmatprep.subr.bf16.mxu0 0
        %991 = vmatpush1.bf16.xpose.msra.mxu0 0
        %992 = vmatprep.subr.bf16.mxu0 0
        %993 = vmatpush1.bf16.xpose.msra.mxu0 0
        %994 = vmatprep.subr.bf16.mxu0 0
        %995 = vmatpush1.bf16.xpose.msra.mxu0 %v978
        %996 = vmatprep.subr.bf16.mxu0 0
        %997 = vmatpush2.bf16.xpose.msra.mxu0 0
        %998 = vmatprep.subr.bf16.mxu0 0
        %999 = vmatpush2.bf16.xpose.msra.mxu0 0
        %1000 = vmatprep.subr.bf16.mxu0 0
        %1001 = vmatpush2.bf16.xpose.msra.mxu0 0
        %1002 = vmatprep.subr.bf16.mxu0 0
        %1003 = vmatpush2.bf16.xpose.msra.mxu0 0
        %1004 = vmatprep.subr.bf16.mxu0 0
        %1005 = vmatpush2.bf16.xpose.msra.mxu0 0
        %1006 = vmatprep.subr.bf16.mxu0 0
        %1007 = vmatpush2.bf16.xpose.msra.mxu0 0
        %1008 = vmatprep.subr.bf16.mxu0 0
        %1009 = vmatpush2.bf16.xpose.msra.mxu0 0
        %1010 = vmatprep.subr.bf16.mxu0 0
        %1011 = vmatpush2.bf16.xpose.msra.mxu0 0
        %1012 = vmatprep.mubr.bf16.mxu0 0
        %1013 = vmatmul.mubr.bf16.gmra.mxu0 %v975
        %v1014 = vpop.f32.mrf.mxu0
        %v1015 = vadd.f32 0.0, %v1014
        %v1016 = vpop.f32.mrf.mxu0
        %v1017 = vpop.f32.mrf.mxu0
        %v1018 = vpop.f32.mrf.mxu0
        %1019 = vdwg.mxu0
        %1021 = vrot.lane.b32.xlu0 %v791, 96
        %v1022 = vpop.permute.xlu0 %1021
        %v1024 = vsel %vm826, %v763, 0
        %v1027 = vsel %vm826, %v1022, 0
        %1029 = vmatprep.subr.bf16.mxu0 0
        %1030 = vmatpush1.bf16.xpose.msra.mxu0 0
        %1031 = vmatprep.subr.bf16.mxu0 0
        %1032 = vmatpush1.bf16.xpose.msra.mxu0 0
        %1033 = vmatprep.subr.bf16.mxu0 0
        %1034 = vmatpush1.bf16.xpose.msra.mxu0 0
        %1035 = vmatprep.subr.bf16.mxu0 0
        %1036 = vmatpush1.bf16.xpose.msra.mxu0 0
        %1037 = vmatprep.subr.bf16.mxu0 0
        %1038 = vmatpush1.bf16.xpose.msra.mxu0 0
        %1039 = vmatprep.subr.bf16.mxu0 0
        %1040 = vmatpush1.bf16.xpose.msra.mxu0 0
        %1041 = vmatprep.subr.bf16.mxu0 0
        %1042 = vmatpush1.bf16.xpose.msra.mxu0 0
        %1043 = vmatprep.subr.bf16.mxu0 0
        %1044 = vmatpush1.bf16.xpose.msra.mxu0 %v1027
        %1045 = vmatprep.subr.bf16.mxu0 0
        %1046 = vmatpush2.bf16.xpose.msra.mxu0 0
        %1047 = vmatprep.subr.bf16.mxu0 0
        %1048 = vmatpush2.bf16.xpose.msra.mxu0 0
        %1049 = vmatprep.subr.bf16.mxu0 0
        %1050 = vmatpush2.bf16.xpose.msra.mxu0 0
        %1051 = vmatprep.subr.bf16.mxu0 0
        %1052 = vmatpush2.bf16.xpose.msra.mxu0 0
        %1053 = vmatprep.subr.bf16.mxu0 0
        %1054 = vmatpush2.bf16.xpose.msra.mxu0 0
        %1055 = vmatprep.subr.bf16.mxu0 0
        %1056 = vmatpush2.bf16.xpose.msra.mxu0 0
        %1057 = vmatprep.subr.bf16.mxu0 0
        %1058 = vmatpush2.bf16.xpose.msra.mxu0 0
        %1059 = vmatprep.subr.bf16.mxu0 0
        %1060 = vmatpush2.bf16.xpose.msra.mxu0 0
        %1061 = vmatprep.mubr.bf16.mxu0 0
        %1062 = vmatmul.mubr.bf16.gmra.mxu0 %v1024
        %v1063 = vpop.f32.mrf.mxu0
        %v1064 = vadd.f32 0.0, %v1063
        %v1065 = vpop.f32.mrf.mxu0
        %v1066 = vpop.f32.mrf.mxu0
        %v1067 = vpop.f32.mrf.mxu0
        %1068 = vdwg.mxu0
        %1070 = vrot.lane.b32.xlu0 %v792, 96
        %v1071 = vpop.permute.xlu0 %1070
        %v1073 = vsel %vm826, %v764, 0
        %v1076 = vsel %vm826, %v1071, 0
        %1078 = vmatprep.subr.bf16.mxu0 0
        %1079 = vmatpush1.bf16.xpose.msra.mxu0 0
        %1080 = vmatprep.subr.bf16.mxu0 0
        %1081 = vmatpush1.bf16.xpose.msra.mxu0 0
        %1082 = vmatprep.subr.bf16.mxu0 0
        %1083 = vmatpush1.bf16.xpose.msra.mxu0 0
        %1084 = vmatprep.subr.bf16.mxu0 0
        %1085 = vmatpush1.bf16.xpose.msra.mxu0 0
        %1086 = vmatprep.subr.bf16.mxu0 0
        %1087 = vmatpush1.bf16.xpose.msra.mxu0 0
        %1088 = vmatprep.subr.bf16.mxu0 0
        %1089 = vmatpush1.bf16.xpose.msra.mxu0 0
        %1090 = vmatprep.subr.bf16.mxu0 0
        %1091 = vmatpush1.bf16.xpose.msra.mxu0 0
        %1092 = vmatprep.subr.bf16.mxu0 0
        %1093 = vmatpush1.bf16.xpose.msra.mxu0 %v1076
        %1094 = vmatprep.subr.bf16.mxu0 0
        %1095 = vmatpush2.bf16.xpose.msra.mxu0 0
        %1096 = vmatprep.subr.bf16.mxu0 0
        %1097 = vmatpush2.bf16.xpose.msra.mxu0 0
        %1098 = vmatprep.subr.bf16.mxu0 0
        %1099 = vmatpush2.bf16.xpose.msra.mxu0 0
        %1100 = vmatprep.subr.bf16.mxu0 0
        %1101 = vmatpush2.bf16.xpose.msra.mxu0 0
        %1102 = vmatprep.subr.bf16.mxu0 0
        %1103 = vmatpush2.bf16.xpose.msra.mxu0 0
        %1104 = vmatprep.subr.bf16.mxu0 0
        %1105 = vmatpush2.bf16.xpose.msra.mxu0 0
        %1106 = vmatprep.subr.bf16.mxu0 0
        %1107 = vmatpush2.bf16.xpose.msra.mxu0 0
        %1108 = vmatprep.subr.bf16.mxu0 0
        %1109 = vmatpush2.bf16.xpose.msra.mxu0 0
        %1110 = vmatprep.mubr.bf16.mxu0 0
        %1111 = vmatmul.mubr.bf16.gmra.mxu0 %v1073
        %v1112 = vpop.f32.mrf.mxu0
        %v1113 = vadd.f32 0.0, %v1112
        %v1114 = vpop.f32.mrf.mxu0
        %v1115 = vpop.f32.mrf.mxu0
        %v1116 = vpop.f32.mrf.mxu0
        %1117 = vdwg.mxu0
        %1119 = vrot.lane.b32.xlu0 %v793, 96
        %v1120 = vpop.permute.xlu0 %1119
        %v1122 = vsel %vm826, %v765, 0
        %v1125 = vsel %vm826, %v1120, 0
        %1127 = vmatprep.subr.bf16.mxu0 0
        %1128 = vmatpush1.bf16.xpose.msra.mxu0 0
        %1129 = vmatprep.subr.bf16.mxu0 0
        %1130 = vmatpush1.bf16.xpose.msra.mxu0 0
        %1131 = vmatprep.subr.bf16.mxu0 0
        %1132 = vmatpush1.bf16.xpose.msra.mxu0 0
        %1133 = vmatprep.subr.bf16.mxu0 0
        %1134 = vmatpush1.bf16.xpose.msra.mxu0 0
        %1135 = vmatprep.subr.bf16.mxu0 0
        %1136 = vmatpush1.bf16.xpose.msra.mxu0 0
        %1137 = vmatprep.subr.bf16.mxu0 0
        %1138 = vmatpush1.bf16.xpose.msra.mxu0 0
        %1139 = vmatprep.subr.bf16.mxu0 0
        %1140 = vmatpush1.bf16.xpose.msra.mxu0 0
        %1141 = vmatprep.subr.bf16.mxu0 0
        %1142 = vmatpush1.bf16.xpose.msra.mxu0 %v1125
        %1143 = vmatprep.subr.bf16.mxu0 0
        %1144 = vmatpush2.bf16.xpose.msra.mxu0 0
        %1145 = vmatprep.subr.bf16.mxu0 0
        %1146 = vmatpush2.bf16.xpose.msra.mxu0 0
        %1147 = vmatprep.subr.bf16.mxu0 0
        %1148 = vmatpush2.bf16.xpose.msra.mxu0 0
        %1149 = vmatprep.subr.bf16.mxu0 0
        %1150 = vmatpush2.bf16.xpose.msra.mxu0 0
        %1151 = vmatprep.subr.bf16.mxu0 0
        %1152 = vmatpush2.bf16.xpose.msra.mxu0 0
        %1153 = vmatprep.subr.bf16.mxu0 0
        %1154 = vmatpush2.bf16.xpose.msra.mxu0 0
        %1155 = vmatprep.subr.bf16.mxu0 0
        %1156 = vmatpush2.bf16.xpose.msra.mxu0 0
        %1157 = vmatprep.subr.bf16.mxu0 0
        %1158 = vmatpush2.bf16.xpose.msra.mxu0 0
        %1159 = vmatprep.mubr.bf16.mxu0 0
        %1160 = vmatmul.mubr.bf16.gmra.mxu0 %v1122
        %v1161 = vpop.f32.mrf.mxu0
        %v1162 = vadd.f32 0.0, %v1161
        %v1163 = vpop.f32.mrf.mxu0
        %v1164 = vpop.f32.mrf.mxu0
        %v1165 = vpop.f32.mrf.mxu0
        %1166 = vdwg.mxu0
        %1168 = vrot.lane.b32.xlu0 %v794, 96
        %v1169 = vpop.permute.xlu0 %1168
        %v1171 = vsel %vm826, %v766, 0
        %v1174 = vsel %vm826, %v1169, 0
        %1176 = vmatprep.subr.bf16.mxu0 0
        %1177 = vmatpush1.bf16.xpose.msra.mxu0 0
        %1178 = vmatprep.subr.bf16.mxu0 0
        %1179 = vmatpush1.bf16.xpose.msra.mxu0 0
        %1180 = vmatprep.subr.bf16.mxu0 0
        %1181 = vmatpush1.bf16.xpose.msra.mxu0 0
        %1182 = vmatprep.subr.bf16.mxu0 0
        %1183 = vmatpush1.bf16.xpose.msra.mxu0 0
        %1184 = vmatprep.subr.bf16.mxu0 0
        %1185 = vmatpush1.bf16.xpose.msra.mxu0 0
        %1186 = vmatprep.subr.bf16.mxu0 0
        %1187 = vmatpush1.bf16.xpose.msra.mxu0 0
        %1188 = vmatprep.subr.bf16.mxu0 0
        %1189 = vmatpush1.bf16.xpose.msra.mxu0 0
        %1190 = vmatprep.subr.bf16.mxu0 0
        %1191 = vmatpush1.bf16.xpose.msra.mxu0 %v1174
        %1192 = vmatprep.subr.bf16.mxu0 0
        %1193 = vmatpush2.bf16.xpose.msra.mxu0 0
        %1194 = vmatprep.subr.bf16.mxu0 0
        %1195 = vmatpush2.bf16.xpose.msra.mxu0 0
        %1196 = vmatprep.subr.bf16.mxu0 0
        %1197 = vmatpush2.bf16.xpose.msra.mxu0 0
        %1198 = vmatprep.subr.bf16.mxu0 0
        %1199 = vmatpush2.bf16.xpose.msra.mxu0 0
        %1200 = vmatprep.subr.bf16.mxu0 0
        %1201 = vmatpush2.bf16.xpose.msra.mxu0 0
        %1202 = vmatprep.subr.bf16.mxu0 0
        %1203 = vmatpush2.bf16.xpose.msra.mxu0 0
        %1204 = vmatprep.subr.bf16.mxu0 0
        %1205 = vmatpush2.bf16.xpose.msra.mxu0 0
        %1206 = vmatprep.subr.bf16.mxu0 0
        %1207 = vmatpush2.bf16.xpose.msra.mxu0 0
        %1208 = vmatprep.mubr.bf16.mxu0 0
        %1209 = vmatmul.mubr.bf16.gmra.mxu0 %v1171
        %v1210 = vpop.f32.mrf.mxu0
        %v1211 = vadd.f32 0.0, %v1210
        %v1212 = vpop.f32.mrf.mxu0
        %v1213 = vpop.f32.mrf.mxu0
        %v1214 = vpop.f32.mrf.mxu0
        %1215 = vdwg.mxu0
        %v1216 = vsel %vm826, %v868, -inf
        %1217 = vmax.xlane.f32.xlu0 %v1216
        %v1218 = vpop.xlane.xlu0 %1217
        %v1219 = vsel %vm826, %v917, -inf
        %1220 = vmax.xlane.f32.xlu0 %v1219
        %v1221 = vpop.xlane.xlu0 %1220
        %v1222 = vsel %vm826, %v966, -inf
        %1223 = vmax.xlane.f32.xlu0 %v1222
        %v1224 = vpop.xlane.xlu0 %1223
        %v1225 = vsel %vm826, %v1015, -inf
        %1226 = vmax.xlane.f32.xlu0 %v1225
        %v1227 = vpop.xlane.xlu0 %1226
        %v1228 = vsel %vm826, %v1064, -inf
        %1229 = vmax.xlane.f32.xlu0 %v1228
        %v1230 = vpop.xlane.xlu0 %1229
        %v1231 = vsel %vm826, %v1113, -inf
        %1232 = vmax.xlane.f32.xlu0 %v1231
        %v1233 = vpop.xlane.xlu0 %1232
        %v1234 = vsel %vm826, %v1162, -inf
        %1235 = vmax.xlane.f32.xlu0 %v1234
        %v1236 = vpop.xlane.xlu0 %1235
        %v1237 = vsel %vm826, %v1211, -inf
        %1238 = vmax.xlane.f32.xlu0 %v1237
        %v1239 = vpop.xlane.xlu0 %1238
        %v1240 = vsub.f32 %v868, %v1218
        %v1241 = vsub.f32 %v917, %v1221
        %v1242 = vsub.f32 %v966, %v1224
        %v1243 = vsub.f32 %v1015, %v1227
        %v1244 = vsub.f32 %v1064, %v1230
        %v1245 = vsub.f32 %v1113, %v1233
        %v1246 = vsub.f32 %v1162, %v1236
        %v1247 = vsub.f32 %v1211, %v1239
        %v1248 = vmul.f32 %v1240, 1.442695
        %v1249 = vpow.pop %v1248
        %v1250 = vmul.f32 %v1241, 1.442695
        %v1251 = vpow.pop %v1250
        %v1252 = vmul.f32 %v1242, 1.442695
        %v1253 = vpow.pop %v1252
        %v1254 = vmul.f32 %v1243, 1.442695
        %v1255 = vpow.pop %v1254
        %v1256 = vmul.f32 %v1244, 1.442695
        %v1257 = vpow.pop %v1256
        %v1258 = vmul.f32 %v1245, 1.442695
        %v1259 = vpow.pop %v1258
        %v1260 = vmul.f32 %v1246, 1.442695
        %v1261 = vpow.pop %v1260
        %v1262 = vmul.f32 %v1247, 1.442695
        %v1263 = vpow.pop %v1262
        %v1264 = vsel %vm826, %v1249, 0.0
        %1265 = vadd.xlane.f32.xlu0 %v1264
        %v1266 = vpop.xlane.xlu0 %1265
        %v1267 = vsel %vm826, %v1251, 0.0
        %1268 = vadd.xlane.f32.xlu0 %v1267
        %v1269 = vpop.xlane.xlu0 %1268
        %v1270 = vsel %vm826, %v1253, 0.0
        %1271 = vadd.xlane.f32.xlu0 %v1270
        %v1272 = vpop.xlane.xlu0 %1271
        %v1273 = vsel %vm826, %v1255, 0.0
        %1274 = vadd.xlane.f32.xlu0 %v1273
        %v1275 = vpop.xlane.xlu0 %1274
        %v1276 = vsel %vm826, %v1257, 0.0
        %1277 = vadd.xlane.f32.xlu0 %v1276
        %v1278 = vpop.xlane.xlu0 %1277
        %v1279 = vsel %vm826, %v1259, 0.0
        %1280 = vadd.xlane.f32.xlu0 %v1279
        %v1281 = vpop.xlane.xlu0 %1280
        %v1282 = vsel %vm826, %v1261, 0.0
        %1283 = vadd.xlane.f32.xlu0 %v1282
        %v1284 = vpop.xlane.xlu0 %1283
        %v1285 = vsel %vm826, %v1263, 0.0
        %1286 = vadd.xlane.f32.xlu0 %v1285
        %v1287 = vpop.xlane.xlu0 %1286
        %v1288 = vrcp.pop %v1266
        %v1289 = vrcp.pop %v1269
        %v1290 = vrcp.pop %v1272
        %v1291 = vrcp.pop %v1275
        %v1292 = vrcp.pop %v1278
        %v1293 = vrcp.pop %v1281
        %v1294 = vrcp.pop %v1284
        %v1295 = vrcp.pop %v1287
        %v1296 = vmul.f32 %v1249, %v1288
        %v1297 = vmul.f32 %v1251, %v1289
        %v1298 = vmul.f32 %v1253, %v1290
        %v1299 = vmul.f32 %v1255, %v1291
        %v1300 = vmul.f32 %v1257, %v1292
        %v1301 = vmul.f32 %v1259, %v1293
        %v1302 = vmul.f32 %v1261, %v1294
        %v1303 = vmul.f32 %v1263, %v1295
        %v1304 = vpack.c.bf16 %v1296, %v1296
        %v1305 = vpack.c.bf16 %v1297, %v1297
        %v1306 = vpack.c.bf16 %v1298, %v1298
        %v1307 = vpack.c.bf16 %v1299, %v1299
        %v1308 = vpack.c.bf16 %v1300, %v1300
        %v1309 = vpack.c.bf16 %v1301, %v1301
        %v1310 = vpack.c.bf16 %v1302, %v1302
        %v1311 = vpack.c.bf16 %v1303, %v1303
        %1313 = vrot.lane.b32.xlu0 %v815, 64
        %v1314 = vpop.permute.xlu0 %1313
        %v1316 = vsel %vm826, %v1304, 0
        %vm1318 = vcmask 1043456
        %v1320 = vsel %vm1318, %v1314, 0
        %1322 = vmatprep.subr.bf16.mxu0 0
        %1323 = vmatpush1.bf16.msra.mxu0 0
        %1324 = vmatprep.subr.bf16.mxu0 0
        %1325 = vmatpush1.bf16.msra.mxu0 0
        %1326 = vmatprep.subr.bf16.mxu0 0
        %1327 = vmatpush1.bf16.msra.mxu0 0
        %1328 = vmatprep.subr.bf16.mxu0 0
        %1329 = vmatpush1.bf16.msra.mxu0 0
        %1330 = vmatprep.subr.bf16.mxu0 0
        %1331 = vmatpush1.bf16.msra.mxu0 0
        %1332 = vmatprep.subr.bf16.mxu0 0
        %1333 = vmatpush1.bf16.msra.mxu0 0
        %1334 = vmatprep.subr.bf16.mxu0 0
        %1335 = vmatpush1.bf16.msra.mxu0 0
        %1336 = vmatprep.subr.bf16.mxu0 0
        %1337 = vmatpush1.bf16.msra.mxu0 %v1320
        %1338 = vmatprep.subr.bf16.mxu0 0
        %1339 = vmatpush2.bf16.msra.mxu0 0
        %1340 = vmatprep.subr.bf16.mxu0 0
        %1341 = vmatpush2.bf16.msra.mxu0 0
        %1342 = vmatprep.subr.bf16.mxu0 0
        %1343 = vmatpush2.bf16.msra.mxu0 0
        %1344 = vmatprep.subr.bf16.mxu0 0
        %1345 = vmatpush2.bf16.msra.mxu0 0
        %1346 = vmatprep.subr.bf16.mxu0 0
        %1347 = vmatpush2.bf16.msra.mxu0 0
        %1348 = vmatprep.subr.bf16.mxu0 0
        %1349 = vmatpush2.bf16.msra.mxu0 0
        %1350 = vmatprep.subr.bf16.mxu0 0
        %1351 = vmatpush2.bf16.msra.mxu0 0
        %1352 = vmatprep.subr.bf16.mxu0 0
        %1353 = vmatpush2.bf16.msra.mxu0 0
        %1354 = vmatprep.mubr.bf16.mxu0 0
        %1355 = vmatmul.mubr.bf16.gmra.mxu0 %v1316
        %v1356 = vpop.f32.mrf.mxu0
        %v1357 = vadd.f32 0.0, %v1356
        %v1358 = vpop.f32.mrf.mxu0
        %v1359 = vpop.f32.mrf.mxu0
        %v1360 = vpop.f32.mrf.mxu0
        %1361 = vdwg.mxu0
        %1363 = vrot.lane.b32.xlu0 %v816, 64
        %v1364 = vpop.permute.xlu0 %1363
        %v1366 = vsel %vm826, %v1305, 0
        %v1369 = vsel %vm1318, %v1364, 0
        %1371 = vmatprep.subr.bf16.mxu0 0
        %1372 = vmatpush1.bf16.msra.mxu0 0
        %1373 = vmatprep.subr.bf16.mxu0 0
        %1374 = vmatpush1.bf16.msra.mxu0 0
        %1375 = vmatprep.subr.bf16.mxu0 0
        %1376 = vmatpush1.bf16.msra.mxu0 0
        %1377 = vmatprep.subr.bf16.mxu0 0
        %1378 = vmatpush1.bf16.msra.mxu0 0
        %1379 = vmatprep.subr.bf16.mxu0 0
        %1380 = vmatpush1.bf16.msra.mxu0 0
        %1381 = vmatprep.subr.bf16.mxu0 0
        %1382 = vmatpush1.bf16.msra.mxu0 0
        %1383 = vmatprep.subr.bf16.mxu0 0
        %1384 = vmatpush1.bf16.msra.mxu0 0
        %1385 = vmatprep.subr.bf16.mxu0 0
        %1386 = vmatpush1.bf16.msra.mxu0 %v1369
        %1387 = vmatprep.subr.bf16.mxu0 0
        %1388 = vmatpush2.bf16.msra.mxu0 0
        %1389 = vmatprep.subr.bf16.mxu0 0
        %1390 = vmatpush2.bf16.msra.mxu0 0
        %1391 = vmatprep.subr.bf16.mxu0 0
        %1392 = vmatpush2.bf16.msra.mxu0 0
        %1393 = vmatprep.subr.bf16.mxu0 0
        %1394 = vmatpush2.bf16.msra.mxu0 0
        %1395 = vmatprep.subr.bf16.mxu0 0
        %1396 = vmatpush2.bf16.msra.mxu0 0
        %1397 = vmatprep.subr.bf16.mxu0 0
        %1398 = vmatpush2.bf16.msra.mxu0 0
        %1399 = vmatprep.subr.bf16.mxu0 0
        %1400 = vmatpush2.bf16.msra.mxu0 0
        %1401 = vmatprep.subr.bf16.mxu0 0
        %1402 = vmatpush2.bf16.msra.mxu0 0
        %1403 = vmatprep.mubr.bf16.mxu0 0
        %1404 = vmatmul.mubr.bf16.gmra.mxu0 %v1366
        %v1405 = vpop.f32.mrf.mxu0
        %v1406 = vadd.f32 0.0, %v1405
        %v1407 = vpop.f32.mrf.mxu0
        %v1408 = vpop.f32.mrf.mxu0
        %v1409 = vpop.f32.mrf.mxu0
        %1410 = vdwg.mxu0
        %1412 = vrot.lane.b32.xlu0 %v817, 64
        %v1413 = vpop.permute.xlu0 %1412
        %v1415 = vsel %vm826, %v1306, 0
        %v1418 = vsel %vm1318, %v1413, 0
        %1420 = vmatprep.subr.bf16.mxu0 0
        %1421 = vmatpush1.bf16.msra.mxu0 0
        %1422 = vmatprep.subr.bf16.mxu0 0
        %1423 = vmatpush1.bf16.msra.mxu0 0
        %1424 = vmatprep.subr.bf16.mxu0 0
        %1425 = vmatpush1.bf16.msra.mxu0 0
        %1426 = vmatprep.subr.bf16.mxu0 0
        %1427 = vmatpush1.bf16.msra.mxu0 0
        %1428 = vmatprep.subr.bf16.mxu0 0
        %1429 = vmatpush1.bf16.msra.mxu0 0
        %1430 = vmatprep.subr.bf16.mxu0 0
        %1431 = vmatpush1.bf16.msra.mxu0 0
        %1432 = vmatprep.subr.bf16.mxu0 0
        %1433 = vmatpush1.bf16.msra.mxu0 0
        %1434 = vmatprep.subr.bf16.mxu0 0
        %1435 = vmatpush1.bf16.msra.mxu0 %v1418
        %1436 = vmatprep.subr.bf16.mxu0 0
        %1437 = vmatpush2.bf16.msra.mxu0 0
        %1438 = vmatprep.subr.bf16.mxu0 0
        %1439 = vmatpush2.bf16.msra.mxu0 0
        %1440 = vmatprep.subr.bf16.mxu0 0
        %1441 = vmatpush2.bf16.msra.mxu0 0
        %1442 = vmatprep.subr.bf16.mxu0 0
        %1443 = vmatpush2.bf16.msra.mxu0 0
        %1444 = vmatprep.subr.bf16.mxu0 0
        %1445 = vmatpush2.bf16.msra.mxu0 0
        %1446 = vmatprep.subr.bf16.mxu0 0
        %1447 = vmatpush2.bf16.msra.mxu0 0
        %1448 = vmatprep.subr.bf16.mxu0 0
        %1449 = vmatpush2.bf16.msra.mxu0 0
        %1450 = vmatprep.subr.bf16.mxu0 0
        %1451 = vmatpush2.bf16.msra.mxu0 0
        %1452 = vmatprep.mubr.bf16.mxu0 0
        %1453 = vmatmul.mubr.bf16.gmra.mxu0 %v1415
        %v1454 = vpop.f32.mrf.mxu0
        %v1455 = vadd.f32 0.0, %v1454
        %v1456 = vpop.f32.mrf.mxu0
        %v1457 = vpop.f32.mrf.mxu0
        %v1458 = vpop.f32.mrf.mxu0
        %1459 = vdwg.mxu0
        %1461 = vrot.lane.b32.xlu0 %v818, 64
        %v1462 = vpop.permute.xlu0 %1461
        %v1464 = vsel %vm826, %v1307, 0
        %v1467 = vsel %vm1318, %v1462, 0
        %1469 = vmatprep.subr.bf16.mxu0 0
        %1470 = vmatpush1.bf16.msra.mxu0 0
        %1471 = vmatprep.subr.bf16.mxu0 0
        %1472 = vmatpush1.bf16.msra.mxu0 0
        %1473 = vmatprep.subr.bf16.mxu0 0
        %1474 = vmatpush1.bf16.msra.mxu0 0
        %1475 = vmatprep.subr.bf16.mxu0 0
        %1476 = vmatpush1.bf16.msra.mxu0 0
        %1477 = vmatprep.subr.bf16.mxu0 0
        %1478 = vmatpush1.bf16.msra.mxu0 0
        %1479 = vmatprep.subr.bf16.mxu0 0
        %1480 = vmatpush1.bf16.msra.mxu0 0
        %1481 = vmatprep.subr.bf16.mxu0 0
        %1482 = vmatpush1.bf16.msra.mxu0 0
        %1483 = vmatprep.subr.bf16.mxu0 0
        %1484 = vmatpush1.bf16.msra.mxu0 %v1467
        %1485 = vmatprep.subr.bf16.mxu0 0
        %1486 = vmatpush2.bf16.msra.mxu0 0
        %1487 = vmatprep.subr.bf16.mxu0 0
        %1488 = vmatpush2.bf16.msra.mxu0 0
        %1489 = vmatprep.subr.bf16.mxu0 0
        %1490 = vmatpush2.bf16.msra.mxu0 0
        %1491 = vmatprep.subr.bf16.mxu0 0
        %1492 = vmatpush2.bf16.msra.mxu0 0
        %1493 = vmatprep.subr.bf16.mxu0 0
        %1494 = vmatpush2.bf16.msra.mxu0 0
        %1495 = vmatprep.subr.bf16.mxu0 0
        %1496 = vmatpush2.bf16.msra.mxu0 0
        %1497 = vmatprep.subr.bf16.mxu0 0
        %1498 = vmatpush2.bf16.msra.mxu0 0
        %1499 = vmatprep.subr.bf16.mxu0 0
        %1500 = vmatpush2.bf16.msra.mxu0 0
        %1501 = vmatprep.mubr.bf16.mxu0 0
        %1502 = vmatmul.mubr.bf16.gmra.mxu0 %v1464
        %v1503 = vpop.f32.mrf.mxu0
        %v1504 = vadd.f32 0.0, %v1503
        %v1505 = vpop.f32.mrf.mxu0
        %v1506 = vpop.f32.mrf.mxu0
        %v1507 = vpop.f32.mrf.mxu0
        %1508 = vdwg.mxu0
        %1510 = vrot.lane.b32.xlu0 %v819, 64
        %v1511 = vpop.permute.xlu0 %1510
        %v1513 = vsel %vm826, %v1308, 0
        %v1516 = vsel %vm1318, %v1511, 0
        %1518 = vmatprep.subr.bf16.mxu0 0
        %1519 = vmatpush1.bf16.msra.mxu0 0
        %1520 = vmatprep.subr.bf16.mxu0 0
        %1521 = vmatpush1.bf16.msra.mxu0 0
        %1522 = vmatprep.subr.bf16.mxu0 0
        %1523 = vmatpush1.bf16.msra.mxu0 0
        %1524 = vmatprep.subr.bf16.mxu0 0
        %1525 = vmatpush1.bf16.msra.mxu0 0
        %1526 = vmatprep.subr.bf16.mxu0 0
        %1527 = vmatpush1.bf16.msra.mxu0 0
        %1528 = vmatprep.subr.bf16.mxu0 0
        %1529 = vmatpush1.bf16.msra.mxu0 0
        %1530 = vmatprep.subr.bf16.mxu0 0
        %1531 = vmatpush1.bf16.msra.mxu0 0
        %1532 = vmatprep.subr.bf16.mxu0 0
        %1533 = vmatpush1.bf16.msra.mxu0 %v1516
        %1534 = vmatprep.subr.bf16.mxu0 0
        %1535 = vmatpush2.bf16.msra.mxu0 0
        %1536 = vmatprep.subr.bf16.mxu0 0
        %1537 = vmatpush2.bf16.msra.mxu0 0
        %1538 = vmatprep.subr.bf16.mxu0 0
        %1539 = vmatpush2.bf16.msra.mxu0 0
        %1540 = vmatprep.subr.bf16.mxu0 0
        %1541 = vmatpush2.bf16.msra.mxu0 0
        %1542 = vmatprep.subr.bf16.mxu0 0
        %1543 = vmatpush2.bf16.msra.mxu0 0
        %1544 = vmatprep.subr.bf16.mxu0 0
        %1545 = vmatpush2.bf16.msra.mxu0 0
        %1546 = vmatprep.subr.bf16.mxu0 0
        %1547 = vmatpush2.bf16.msra.mxu0 0
        %1548 = vmatprep.subr.bf16.mxu0 0
        %1549 = vmatpush2.bf16.msra.mxu0 0
        %1550 = vmatprep.mubr.bf16.mxu0 0
        %1551 = vmatmul.mubr.bf16.gmra.mxu0 %v1513
        %v1552 = vpop.f32.mrf.mxu0
        %v1553 = vadd.f32 0.0, %v1552
        %v1554 = vpop.f32.mrf.mxu0
        %v1555 = vpop.f32.mrf.mxu0
        %v1556 = vpop.f32.mrf.mxu0
        %1557 = vdwg.mxu0
        %1559 = vrot.lane.b32.xlu0 %v820, 64
        %v1560 = vpop.permute.xlu0 %1559
        %v1562 = vsel %vm826, %v1309, 0
        %v1565 = vsel %vm1318, %v1560, 0
        %1567 = vmatprep.subr.bf16.mxu0 0
        %1568 = vmatpush1.bf16.msra.mxu0 0
        %1569 = vmatprep.subr.bf16.mxu0 0
        %1570 = vmatpush1.bf16.msra.mxu0 0
        %1571 = vmatprep.subr.bf16.mxu0 0
        %1572 = vmatpush1.bf16.msra.mxu0 0
        %1573 = vmatprep.subr.bf16.mxu0 0
        %1574 = vmatpush1.bf16.msra.mxu0 0
        %1575 = vmatprep.subr.bf16.mxu0 0
        %1576 = vmatpush1.bf16.msra.mxu0 0
        %1577 = vmatprep.subr.bf16.mxu0 0
        %1578 = vmatpush1.bf16.msra.mxu0 0
        %1579 = vmatprep.subr.bf16.mxu0 0
        %1580 = vmatpush1.bf16.msra.mxu0 0
        %1581 = vmatprep.subr.bf16.mxu0 0
        %1582 = vmatpush1.bf16.msra.mxu0 %v1565
        %1583 = vmatprep.subr.bf16.mxu0 0
        %1584 = vmatpush2.bf16.msra.mxu0 0
        %1585 = vmatprep.subr.bf16.mxu0 0
        %1586 = vmatpush2.bf16.msra.mxu0 0
        %1587 = vmatprep.subr.bf16.mxu0 0
        %1588 = vmatpush2.bf16.msra.mxu0 0
        %1589 = vmatprep.subr.bf16.mxu0 0
        %1590 = vmatpush2.bf16.msra.mxu0 0
        %1591 = vmatprep.subr.bf16.mxu0 0
        %1592 = vmatpush2.bf16.msra.mxu0 0
        %1593 = vmatprep.subr.bf16.mxu0 0
        %1594 = vmatpush2.bf16.msra.mxu0 0
        %1595 = vmatprep.subr.bf16.mxu0 0
        %1596 = vmatpush2.bf16.msra.mxu0 0
        %1597 = vmatprep.subr.bf16.mxu0 0
        %1598 = vmatpush2.bf16.msra.mxu0 0
        %1599 = vmatprep.mubr.bf16.mxu0 0
        %1600 = vmatmul.mubr.bf16.gmra.mxu0 %v1562
        %v1601 = vpop.f32.mrf.mxu0
        %v1602 = vadd.f32 0.0, %v1601
        %v1603 = vpop.f32.mrf.mxu0
        %v1604 = vpop.f32.mrf.mxu0
        %v1605 = vpop.f32.mrf.mxu0
        %1606 = vdwg.mxu0
        %1608 = vrot.lane.b32.xlu0 %v821, 64
        %v1609 = vpop.permute.xlu0 %1608
        %v1611 = vsel %vm826, %v1310, 0
        %v1614 = vsel %vm1318, %v1609, 0
        %1616 = vmatprep.subr.bf16.mxu0 0
        %1617 = vmatpush1.bf16.msra.mxu0 0
        %1618 = vmatprep.subr.bf16.mxu0 0
        %1619 = vmatpush1.bf16.msra.mxu0 0
        %1620 = vmatprep.subr.bf16.mxu0 0
        %1621 = vmatpush1.bf16.msra.mxu0 0
        %1622 = vmatprep.subr.bf16.mxu0 0
        %1623 = vmatpush1.bf16.msra.mxu0 0
        %1624 = vmatprep.subr.bf16.mxu0 0
        %1625 = vmatpush1.bf16.msra.mxu0 0
        %1626 = vmatprep.subr.bf16.mxu0 0
        %1627 = vmatpush1.bf16.msra.mxu0 0
        %1628 = vmatprep.subr.bf16.mxu0 0
        %1629 = vmatpush1.bf16.msra.mxu0 0
        %1630 = vmatprep.subr.bf16.mxu0 0
        %1631 = vmatpush1.bf16.msra.mxu0 %v1614
        %1632 = vmatprep.subr.bf16.mxu0 0
        %1633 = vmatpush2.bf16.msra.mxu0 0
        %1634 = vmatprep.subr.bf16.mxu0 0
        %1635 = vmatpush2.bf16.msra.mxu0 0
        %1636 = vmatprep.subr.bf16.mxu0 0
        %1637 = vmatpush2.bf16.msra.mxu0 0
        %1638 = vmatprep.subr.bf16.mxu0 0
        %1639 = vmatpush2.bf16.msra.mxu0 0
        %1640 = vmatprep.subr.bf16.mxu0 0
        %1641 = vmatpush2.bf16.msra.mxu0 0
        %1642 = vmatprep.subr.bf16.mxu0 0
        %1643 = vmatpush2.bf16.msra.mxu0 0
        %1644 = vmatprep.subr.bf16.mxu0 0
        %1645 = vmatpush2.bf16.msra.mxu0 0
        %1646 = vmatprep.subr.bf16.mxu0 0
        %1647 = vmatpush2.bf16.msra.mxu0 0
        %1648 = vmatprep.mubr.bf16.mxu0 0
        %1649 = vmatmul.mubr.bf16.gmra.mxu0 %v1611
        %v1650 = vpop.f32.mrf.mxu0
        %v1651 = vadd.f32 0.0, %v1650
        %v1652 = vpop.f32.mrf.mxu0
        %v1653 = vpop.f32.mrf.mxu0
        %v1654 = vpop.f32.mrf.mxu0
        %1655 = vdwg.mxu0
        %1657 = vrot.lane.b32.xlu0 %v822, 64
        %v1658 = vpop.permute.xlu0 %1657
        %v1660 = vsel %vm826, %v1311, 0
        %v1663 = vsel %vm1318, %v1658, 0
        %1665 = vmatprep.subr.bf16.mxu0 0
        %1666 = vmatpush1.bf16.msra.mxu0 0
        %1667 = vmatprep.subr.bf16.mxu0 0
        %1668 = vmatpush1.bf16.msra.mxu0 0
        %1669 = vmatprep.subr.bf16.mxu0 0
        %1670 = vmatpush1.bf16.msra.mxu0 0
        %1671 = vmatprep.subr.bf16.mxu0 0
        %1672 = vmatpush1.bf16.msra.mxu0 0
        %1673 = vmatprep.subr.bf16.mxu0 0
        %1674 = vmatpush1.bf16.msra.mxu0 0
        %1675 = vmatprep.subr.bf16.mxu0 0
        %1676 = vmatpush1.bf16.msra.mxu0 0
        %1677 = vmatprep.subr.bf16.mxu0 0
        %1678 = vmatpush1.bf16.msra.mxu0 0
        %1679 = vmatprep.subr.bf16.mxu0 0
        %1680 = vmatpush1.bf16.msra.mxu0 %v1663
        %1681 = vmatprep.subr.bf16.mxu0 0
        %1682 = vmatpush2.bf16.msra.mxu0 0
        %1683 = vmatprep.subr.bf16.mxu0 0
        %1684 = vmatpush2.bf16.msra.mxu0 0
        %1685 = vmatprep.subr.bf16.mxu0 0
        %1686 = vmatpush2.bf16.msra.mxu0 0
        %1687 = vmatprep.subr.bf16.mxu0 0
        %1688 = vmatpush2.bf16.msra.mxu0 0
        %1689 = vmatprep.subr.bf16.mxu0 0
        %1690 = vmatpush2.bf16.msra.mxu0 0
        %1691 = vmatprep.subr.bf16.mxu0 0
        %1692 = vmatpush2.bf16.msra.mxu0 0
        %1693 = vmatprep.subr.bf16.mxu0 0
        %1694 = vmatpush2.bf16.msra.mxu0 0
        %1695 = vmatprep.subr.bf16.mxu0 0
        %1696 = vmatpush2.bf16.msra.mxu0 0
        %1697 = vmatprep.mubr.bf16.mxu0 0
        %1698 = vmatmul.mubr.bf16.gmra.mxu0 %v1660
        %v1699 = vpop.f32.mrf.mxu0
        %v1700 = vadd.f32 0.0, %v1699
        %v1701 = vpop.f32.mrf.mxu0
        %v1702 = vpop.f32.mrf.mxu0
        %v1703 = vpop.f32.mrf.mxu0
        %1704 = vdwg.mxu0
        %1706 = vrot.lane.b32.xlu0 %v1406, 8
        %v1707 = vpop.permute.xlu0 %1706
        %1710 = vrot.lane.b32.xlu0 %v1455, 16
        %v1711 = vpop.permute.xlu0 %1710
        %1714 = vrot.lane.b32.xlu0 %v1504, 24
        %v1715 = vpop.permute.xlu0 %1714
        %v1717 = vsel %vm826, %v1357, %v1707
        %vm1718 = vcmask 130048
        %v1719 = vsel %vm1718, %v1717, %v1711
        %vm1720 = vcmask 195584
        %v1721 = vsel %vm1720, %v1719, %v1715
        %1723 = vrot.lane.b32.xlu0 %v1602, 8
        %v1724 = vpop.permute.xlu0 %1723
        %1727 = vrot.lane.b32.xlu0 %v1651, 16
        %v1728 = vpop.permute.xlu0 %1727
        %1731 = vrot.lane.b32.xlu0 %v1700, 24
        %v1732 = vpop.permute.xlu0 %1731
        %v1734 = vsel %vm826, %v1553, %v1724
        %v1735 = vsel %vm1718, %v1734, %v1728
        %v1736 = vsel %vm1720, %v1735, %v1732
        %v1737 = vpack.c.bf16 %v1736, %v1721
        %v1738 = vlaneseq
        %v1739 = vshrl.u32 %v1738, 7
        %v1740 = vsub.s32 3, %v1739
        %v1741 = vrot.slane %v645, %v1740
        %v1746 = vunpack.c.l.b16 %v735
        %v1747 = vunpack.c.l.b16 %v736
        %v1748 = vunpack.c.l.b16 %v737
        %v1749 = vunpack.c.l.b16 %v738
        %v1750 = vpack.c.b16 %v1747, %v1746
        %v1751 = vpack.c.b16 %v1749, %v1748
        %v1755 = vsel %vm664, %v1737, 0
        %1757 = vmatprep.subr.bf16.mxu0 0
        %1758 = vmatpush1.bf16.msra.mxu0 0
        %1759 = vmatprep.subr.bf16.mxu0 0
        %1760 = vmatpush1.bf16.msra.mxu0 0
        %1761 = vmatprep.subr.bf16.mxu0 0
        %1762 = vmatpush1.bf16.msra.mxu0 0
        %1763 = vmatprep.subr.bf16.mxu0 0
        %1764 = vmatpush1.bf16.msra.mxu0 0
        %1765 = vmatprep.subr.bf16.mxu0 0
        %1766 = vmatpush1.bf16.msra.mxu0 0
        %1767 = vmatprep.subr.bf16.mxu0 0
        %1768 = vmatpush1.bf16.msra.mxu0 0
        %1769 = vmatprep.subr.bf16.mxu0 0
        %1770 = vmatpush1.bf16.msra.mxu0 %v1751
        %1771 = vmatprep.subr.bf16.mxu0 0
        %1772 = vmatpush1.bf16.msra.mxu0 %v1750
        %1773 = vmatprep.subr.bf16.mxu0 0
        %1774 = vmatpush2.bf16.msra.mxu0 0
        %1775 = vmatprep.subr.bf16.mxu0 0
        %1776 = vmatpush2.bf16.msra.mxu0 0
        %1777 = vmatprep.subr.bf16.mxu0 0
        %1778 = vmatpush2.bf16.msra.mxu0 0
        %1779 = vmatprep.subr.bf16.mxu0 0
        %1780 = vmatpush2.bf16.msra.mxu0 0
        %1781 = vmatprep.subr.bf16.mxu0 0
        %1782 = vmatpush2.bf16.msra.mxu0 0
        %1783 = vmatprep.subr.bf16.mxu0 0
        %1784 = vmatpush2.bf16.msra.mxu0 0
        %1785 = vmatprep.subr.bf16.mxu0 0
        %1786 = vmatpush2.bf16.msra.mxu0 0
        %1787 = vmatprep.subr.bf16.mxu0 0
        %1788 = vmatpush2.bf16.msra.mxu0 0
        %1789 = vmatprep.mubr.bf16.mxu0 0
        %1790 = vmatmul.mubr.bf16.gmra.mxu0 %v1755
        %v1791 = vpop.f32.mrf.mxu0
        %v1792 = vadd.f32 %v1741, %v1791
        %v1793 = vpop.f32.mrf.mxu0
        %v1794 = vpop.f32.mrf.mxu0
        %v1795 = vadd.f32 %v1741, %v1794
        %v1796 = vpop.f32.mrf.mxu0
        %1797 = vdwg.mxu0
        %v1798 = vadd.f32 %v639, %v1792
        %v1799 = vadd.f32 %v640, %v1795
        %v1800 = vsel %vm664, %v1798, 0.0
        %1801 = vadd.xlane.f32.xlu0 %v1800
        %v1802 = vpop.xlane.xlu0 %1801
        %v1803 = vsel %vm664, %v1799, 0.0
        %1804 = vadd.xlane.f32.xlu0 %v1803
        %v1805 = vpop.xlane.xlu0 %1804
        %v1806 = vrcp.pop 32.0
        %v1807 = vmul.f32 %v1802, %v1806
        %v1808 = vmul.f32 %v1805, %v1806
        %v1809 = vsub.f32 %v1798, %v1807
        %v1810 = vsub.f32 %v1799, %v1808
        %v1811 = vmul.f32 %v1809, %v1809
        %v1812 = vmul.f32 %v1810, %v1810
        %v1813 = vsel %vm664, %v1811, 0.0
        %1814 = vadd.xlane.f32.xlu0 %v1813
        %v1815 = vpop.xlane.xlu0 %1814
        %v1816 = vsel %vm664, %v1812, 0.0
        %1817 = vadd.xlane.f32.xlu0 %v1816
        %v1818 = vpop.xlane.xlu0 %1817
        %v1819 = vmul.f32 %v1815, %v1806
        %v1820 = vmul.f32 %v1818, %v1806
        %v1821 = vadd.f32 %v1819, 1e-05
        %v1822 = vadd.f32 %v1820, 1e-05
        %v1823 = vrsqrt.pop %v1821
        %v1824 = vrsqrt.pop %v1822
        %v1825 = vmul.f32 %v1809, %v1823
        %v1826 = vmul.f32 %v1810, %v1824
        %v1827 = vlaneseq
        %v1828 = vshrl.u32 %v1827, 7
        %v1829 = vsub.s32 1, %v1828
        %v1830 = vrot.slane %v646, %v1829
        %v1831 = vmul.f32 %v1825, %v1830
        %v1832 = vmul.f32 %v1826, %v1830
        %v1833 = vlaneseq
        %v1834 = vshrl.u32 %v1833, 7
        %v1835 = vsub.s32 2, %v1834
        %v1836 = vrot.slane %v646, %v1835
        %v1837 = vadd.f32 %v1831, %v1836
        %v1838 = vadd.f32 %v1832, %v1836
        %v1839 = vpack.c.bf16 %v1838, %v1837
        %v1840 = vld [vmem:[%s605] sm:$0xf]
        %v1841 = vld [vmem:[%s605 + $0x4] sm:$0xf]
        %v1842 = vld [vmem:[%s605 + $0x8] sm:$0xf]
        %v1843 = vld [vmem:[%s605 + $0xc] sm:$0xf]
        %v1844 = vlaneseq
        %v1845 = vshrl.u32 %v1844, 7
        %v1846 = vsub.s32 4, %v1845
        %v1847 = vrot.slane %v645, %v1846
        %v1852 = vunpack.c.l.b16 %v1840
        %v1853 = vunpack.c.l.b16 %v1841
        %v1854 = vunpack.c.l.b16 %v1842
        %v1855 = vunpack.c.l.b16 %v1843
        %v1856 = vpack.c.b16 %v1853, %v1852
        %v1857 = vpack.c.b16 %v1855, %v1854
        %v1861 = vsel %vm664, %v1839, 0
        %1863 = vmatprep.subr.bf16.mxu0 0
        %1864 = vmatpush1.bf16.msra.mxu0 0
        %1865 = vmatprep.subr.bf16.mxu0 0
        %1866 = vmatpush1.bf16.msra.mxu0 0
        %1867 = vmatprep.subr.bf16.mxu0 0
        %1868 = vmatpush1.bf16.msra.mxu0 0
        %1869 = vmatprep.subr.bf16.mxu0 0
        %1870 = vmatpush1.bf16.msra.mxu0 0
        %1871 = vmatprep.subr.bf16.mxu0 0
        %1872 = vmatpush1.bf16.msra.mxu0 0
        %1873 = vmatprep.subr.bf16.mxu0 0
        %1874 = vmatpush1.bf16.msra.mxu0 0
        %1875 = vmatprep.subr.bf16.mxu0 0
        %1876 = vmatpush1.bf16.msra.mxu0 %v1857
        %1877 = vmatprep.subr.bf16.mxu0 0
        %1878 = vmatpush1.bf16.msra.mxu0 %v1856
        %1879 = vmatprep.subr.bf16.mxu0 0
        %1880 = vmatpush2.bf16.msra.mxu0 0
        %1881 = vmatprep.subr.bf16.mxu0 0
        %1882 = vmatpush2.bf16.msra.mxu0 0
        %1883 = vmatprep.subr.bf16.mxu0 0
        %1884 = vmatpush2.bf16.msra.mxu0 0
        %1885 = vmatprep.subr.bf16.mxu0 0
        %1886 = vmatpush2.bf16.msra.mxu0 0
        %1887 = vmatprep.subr.bf16.mxu0 0
        %1888 = vmatpush2.bf16.msra.mxu0 0
        %1889 = vmatprep.subr.bf16.mxu0 0
        %1890 = vmatpush2.bf16.msra.mxu0 0
        %1891 = vmatprep.subr.bf16.mxu0 0
        %1892 = vmatpush2.bf16.msra.mxu0 0
        %1893 = vmatprep.subr.bf16.mxu0 0
        %1894 = vmatpush2.bf16.msra.mxu0 0
        %1895 = vmatprep.mubr.bf16.mxu0 0
        %1896 = vmatmul.mubr.bf16.gmra.mxu0 %v1861
        %v1897 = vpop.f32.mrf.mxu0
        %v1898 = vadd.f32 %v1847, %v1897
        %v1899 = vpop.f32.mrf.mxu0
        %v1900 = vpop.f32.mrf.mxu0
        %v1901 = vadd.f32 %v1847, %v1900
        %v1902 = vpop.f32.mrf.mxu0
        %1903 = vdwg.mxu0
        %v1904 = vld [vmem:[%s610] sm:$0xf]
        %v1905 = vld [vmem:[%s610 + $0x4] sm:$0xf]
        %v1906 = vld [vmem:[%s610 + $0x8] sm:$0xf]
        %v1907 = vld [vmem:[%s610 + $0xc] sm:$0xf]
        %v1912 = vunpack.c.l.b16 %v641
        %v1913 = vunpack.c.l.b16 %v642
        %v1914 = vunpack.c.l.b16 %v643
        %v1915 = vunpack.c.l.b16 %v644
        %v1916 = vpack.c.b16 %v1913, %v1912
        %v1917 = vpack.c.b16 %v1915, %v1914
        %v1922 = vunpack.c.l.b16 %v1904
        %v1923 = vunpack.c.l.b16 %v1905
        %v1924 = vunpack.c.l.b16 %v1906
        %v1925 = vunpack.c.l.b16 %v1907
        %v1926 = vpack.c.b16 %v1923, %v1922
        %v1927 = vpack.c.b16 %v1925, %v1924
        %v1931 = vsel %vm664, %v1916, 0
        %v1934 = vsel %vm664, %v1917, 0
        %1936 = vmatprep.subr.bf16.mxu0 0
        %1937 = vmatpush1.bf16.msra.mxu0 0
        %1938 = vmatprep.subr.bf16.mxu0 0
        %1939 = vmatpush1.bf16.msra.mxu0 0
        %1940 = vmatprep.subr.bf16.mxu0 0
        %1941 = vmatpush1.bf16.msra.mxu0 0
        %1942 = vmatprep.subr.bf16.mxu0 0
        %1943 = vmatpush1.bf16.msra.mxu0 0
        %1944 = vmatprep.subr.bf16.mxu0 0
        %1945 = vmatpush1.bf16.msra.mxu0 0
        %1946 = vmatprep.subr.bf16.mxu0 0
        %1947 = vmatpush1.bf16.msra.mxu0 0
        %1948 = vmatprep.subr.bf16.mxu0 0
        %1949 = vmatpush1.bf16.msra.mxu0 %v1927
        %1950 = vmatprep.subr.bf16.mxu0 0
        %1951 = vmatpush1.bf16.msra.mxu0 %v1926
        %1952 = vmatprep.subr.bf16.mxu0 0
        %1953 = vmatpush2.bf16.msra.mxu0 0
        %1954 = vmatprep.subr.bf16.mxu0 0
        %1955 = vmatpush2.bf16.msra.mxu0 0
        %1956 = vmatprep.subr.bf16.mxu0 0
        %1957 = vmatpush2.bf16.msra.mxu0 0
        %1958 = vmatprep.subr.bf16.mxu0 0
        %1959 = vmatpush2.bf16.msra.mxu0 0
        %1960 = vmatprep.subr.bf16.mxu0 0
        %1961 = vmatpush2.bf16.msra.mxu0 0
        %1962 = vmatprep.subr.bf16.mxu0 0
        %1963 = vmatpush2.bf16.msra.mxu0 0
        %1964 = vmatprep.subr.bf16.mxu0 0
        %1965 = vmatpush2.bf16.msra.mxu0 0
        %1966 = vmatprep.subr.bf16.mxu0 0
        %1967 = vmatpush2.bf16.msra.mxu0 0
        %1968 = vmatprep.mubr.bf16.mxu0 0
        %1969 = vmatmul.mubr.bf16.gmra.mxu0 %v1931
        %v1970 = vpop.f32.mrf.mxu0
        %v1971 = vadd.f32 0.0, %v1970
        %v1972 = vpop.f32.mrf.mxu0
        %v1973 = vpop.f32.mrf.mxu0
        %v1974 = vadd.f32 0.0, %v1973
        %v1975 = vpop.f32.mrf.mxu0
        %1976 = vmatprep.mubr.bf16.mxu0 0
        %1977 = vmatmul.mubr.bf16.gmra.mxu0 %v1934
        %v1978 = vpop.f32.mrf.mxu0
        %v1979 = vadd.f32 0.0, %v1978
        %v1980 = vpop.f32.mrf.mxu0
        %v1981 = vpop.f32.mrf.mxu0
        %v1982 = vadd.f32 0.0, %v1981
        %v1983 = vpop.f32.mrf.mxu0
        %1984 = vdwg.mxu0
        %v1985 = vlaneseq
        %v1986 = vshrl.u32 %v1985, 7
        %v1987 = vsub.s32 5, %v1986
        %v1988 = vrot.slane %v645, %v1987
        %v1989 = vadd.f32 %v1971, %v1988
        %v1990 = vadd.f32 %v1974, %v1988
        %v1991 = vadd.f32 %v1979, %v1988
        %v1992 = vadd.f32 %v1982, %v1988
        %v1993 = vlaneseq
        %v1994 = vshrl.u32 %v1993, 7
        %v1995 = vsub.s32 6, %v1994
        %v1996 = vrot.slane %v645, %v1995
        %1998 = vrot.lane.b32.xlu0 %v1996, 32
        %v1999 = vpop.permute.xlu0 %1998
        %v2001 = vadd.f32 %v1971, %v1999
        %v2002 = vadd.f32 %v1974, %v1999
        %v2003 = vadd.f32 %v1979, %v1999
        %v2004 = vadd.f32 %v1982, %v1999
        %v2005 = vld [vmem:[%s615] sm:$0xf]
        %v2006 = vld [vmem:[%s615 + $0x4] sm:$0xf]
        %v2007 = vld [vmem:[%s615 + $0x8] sm:$0xf]
        %v2008 = vld [vmem:[%s615 + $0xc] sm:$0xf]
        %2010 = vrot.lane.b32.xlu0 %v1898, 120
        %v2011 = vpop.permute.xlu0 %2010
        %2013 = vrot.lane.b32.xlu0 %v1898, 112
        %v2014 = vpop.permute.xlu0 %2013
        %2016 = vrot.lane.b32.xlu0 %v1898, 104
        %v2017 = vpop.permute.xlu0 %2016
        %2020 = vrot.lane.b32.xlu0 %v1901, 120
        %v2021 = vpop.permute.xlu0 %2020
        %2023 = vrot.lane.b32.xlu0 %v1901, 112
        %v2024 = vpop.permute.xlu0 %2023
        %2026 = vrot.lane.b32.xlu0 %v1901, 104
        %v2027 = vpop.permute.xlu0 %2026
        %v2029 = vpack.c.bf16 %v1898, %v1898
        %v2030 = vpack.c.bf16 %v2011, %v2011
        %v2031 = vpack.c.bf16 %v2014, %v2014
        %v2032 = vpack.c.bf16 %v2017, %v2017
        %v2033 = vpack.c.bf16 %v1901, %v1901
        %v2034 = vpack.c.bf16 %v2021, %v2021
        %v2035 = vpack.c.bf16 %v2024, %v2024
        %v2036 = vpack.c.bf16 %v2027, %v2027
        %2039 = vrot.lane.b32.xlu0 %v1989, 120
        %v2040 = vpop.permute.xlu0 %2039
        %2041 = vrot.lane.b32.xlu0 %v1990, 120
        %v2042 = vpop.permute.xlu0 %2041
        %2045 = vrot.lane.b32.xlu0 %v1989, 112
        %v2046 = vpop.permute.xlu0 %2045
        %2047 = vrot.lane.b32.xlu0 %v1990, 112
        %v2048 = vpop.permute.xlu0 %2047
        %2051 = vrot.lane.b32.xlu0 %v1989, 104
        %v2052 = vpop.permute.xlu0 %2051
        %2053 = vrot.lane.b32.xlu0 %v1990, 104
        %v2054 = vpop.permute.xlu0 %2053
        %2059 = vrot.lane.b32.xlu0 %v1991, 120
        %v2060 = vpop.permute.xlu0 %2059
        %2061 = vrot.lane.b32.xlu0 %v1992, 120
        %v2062 = vpop.permute.xlu0 %2061
        %2065 = vrot.lane.b32.xlu0 %v1991, 112
        %v2066 = vpop.permute.xlu0 %2065
        %2067 = vrot.lane.b32.xlu0 %v1992, 112
        %v2068 = vpop.permute.xlu0 %2067
        %2071 = vrot.lane.b32.xlu0 %v1991, 104
        %v2072 = vpop.permute.xlu0 %2071
        %2073 = vrot.lane.b32.xlu0 %v1992, 104
        %v2074 = vpop.permute.xlu0 %2073
        %v2077 = vpack.c.bf16 %v1990, %v1989
        %v2078 = vpack.c.bf16 %v2042, %v2040
        %v2079 = vpack.c.bf16 %v2048, %v2046
        %v2080 = vpack.c.bf16 %v2054, %v2052
        %v2081 = vpack.c.bf16 %v1992, %v1991
        %v2082 = vpack.c.bf16 %v2062, %v2060
        %v2083 = vpack.c.bf16 %v2068, %v2066
        %v2084 = vpack.c.bf16 %v2074, %v2072
        %2087 = vrot.lane.b32.xlu0 %v2001, 120
        %v2088 = vpop.permute.xlu0 %2087
        %2089 = vrot.lane.b32.xlu0 %v2002, 120
        %v2090 = vpop.permute.xlu0 %2089
        %2093 = vrot.lane.b32.xlu0 %v2001, 112
        %v2094 = vpop.permute.xlu0 %2093
        %2095 = vrot.lane.b32.xlu0 %v2002, 112
        %v2096 = vpop.permute.xlu0 %2095
        %2099 = vrot.lane.b32.xlu0 %v2001, 104
        %v2100 = vpop.permute.xlu0 %2099
        %2101 = vrot.lane.b32.xlu0 %v2002, 104
        %v2102 = vpop.permute.xlu0 %2101
        %2107 = vrot.lane.b32.xlu0 %v2003, 120
        %v2108 = vpop.permute.xlu0 %2107
        %2109 = vrot.lane.b32.xlu0 %v2004, 120
        %v2110 = vpop.permute.xlu0 %2109
        %2113 = vrot.lane.b32.xlu0 %v2003, 112
        %v2114 = vpop.permute.xlu0 %2113
        %2115 = vrot.lane.b32.xlu0 %v2004, 112
        %v2116 = vpop.permute.xlu0 %2115
        %2119 = vrot.lane.b32.xlu0 %v2003, 104
        %v2120 = vpop.permute.xlu0 %2119
        %2121 = vrot.lane.b32.xlu0 %v2004, 104
        %v2122 = vpop.permute.xlu0 %2121
        %v2125 = vpack.c.bf16 %v2002, %v2001
        %v2126 = vpack.c.bf16 %v2090, %v2088
        %v2127 = vpack.c.bf16 %v2096, %v2094
        %v2128 = vpack.c.bf16 %v2102, %v2100
        %v2129 = vpack.c.bf16 %v2004, %v2003
        %v2130 = vpack.c.bf16 %v2110, %v2108
        %v2131 = vpack.c.bf16 %v2116, %v2114
        %v2132 = vpack.c.bf16 %v2122, %v2120
        %v2134 = vsel %vm826, %v2029, 0
        %v2137 = vsel %vm826, %v2077, 0
        %2139 = vmatprep.subr.bf16.mxu0 0
        %2140 = vmatpush1.bf16.xpose.msra.mxu0 0
        %2141 = vmatprep.subr.bf16.mxu0 0
        %2142 = vmatpush1.bf16.xpose.msra.mxu0 0
        %2143 = vmatprep.subr.bf16.mxu0 0
        %2144 = vmatpush1.bf16.xpose.msra.mxu0 0
        %2145 = vmatprep.subr.bf16.mxu0 0
        %2146 = vmatpush1.bf16.xpose.msra.mxu0 0
        %2147 = vmatprep.subr.bf16.mxu0 0
        %2148 = vmatpush1.bf16.xpose.msra.mxu0 0
        %2149 = vmatprep.subr.bf16.mxu0 0
        %2150 = vmatpush1.bf16.xpose.msra.mxu0 0
        %2151 = vmatprep.subr.bf16.mxu0 0
        %2152 = vmatpush1.bf16.xpose.msra.mxu0 0
        %2153 = vmatprep.subr.bf16.mxu0 0
        %2154 = vmatpush1.bf16.xpose.msra.mxu0 %v2137
        %2155 = vmatprep.subr.bf16.mxu0 0
        %2156 = vmatpush2.bf16.xpose.msra.mxu0 0
        %2157 = vmatprep.subr.bf16.mxu0 0
        %2158 = vmatpush2.bf16.xpose.msra.mxu0 0
        %2159 = vmatprep.subr.bf16.mxu0 0
        %2160 = vmatpush2.bf16.xpose.msra.mxu0 0
        %2161 = vmatprep.subr.bf16.mxu0 0
        %2162 = vmatpush2.bf16.xpose.msra.mxu0 0
        %2163 = vmatprep.subr.bf16.mxu0 0
        %2164 = vmatpush2.bf16.xpose.msra.mxu0 0
        %2165 = vmatprep.subr.bf16.mxu0 0
        %2166 = vmatpush2.bf16.xpose.msra.mxu0 0
        %2167 = vmatprep.subr.bf16.mxu0 0
        %2168 = vmatpush2.bf16.xpose.msra.mxu0 0
        %2169 = vmatprep.subr.bf16.mxu0 0
        %2170 = vmatpush2.bf16.xpose.msra.mxu0 0
        %2171 = vmatprep.mubr.bf16.mxu0 0
        %2172 = vmatmul.mubr.bf16.gmra.mxu0 %v2134
        %v2173 = vpop.f32.mrf.mxu0
        %v2174 = vadd.f32 0.0, %v2173
        %v2175 = vpop.f32.mrf.mxu0
        %v2176 = vpop.f32.mrf.mxu0
        %v2177 = vpop.f32.mrf.mxu0
        %2178 = vdwg.mxu0
        %v2180 = vsel %vm826, %v2030, 0
        %v2183 = vsel %vm826, %v2078, 0
        %2185 = vmatprep.subr.bf16.mxu0 0
        %2186 = vmatpush1.bf16.xpose.msra.mxu0 0
        %2187 = vmatprep.subr.bf16.mxu0 0
        %2188 = vmatpush1.bf16.xpose.msra.mxu0 0
        %2189 = vmatprep.subr.bf16.mxu0 0
        %2190 = vmatpush1.bf16.xpose.msra.mxu0 0
        %2191 = vmatprep.subr.bf16.mxu0 0
        %2192 = vmatpush1.bf16.xpose.msra.mxu0 0
        %2193 = vmatprep.subr.bf16.mxu0 0
        %2194 = vmatpush1.bf16.xpose.msra.mxu0 0
        %2195 = vmatprep.subr.bf16.mxu0 0
        %2196 = vmatpush1.bf16.xpose.msra.mxu0 0
        %2197 = vmatprep.subr.bf16.mxu0 0
        %2198 = vmatpush1.bf16.xpose.msra.mxu0 0
        %2199 = vmatprep.subr.bf16.mxu0 0
        %2200 = vmatpush1.bf16.xpose.msra.mxu0 %v2183
        %2201 = vmatprep.subr.bf16.mxu0 0
        %2202 = vmatpush2.bf16.xpose.msra.mxu0 0
        %2203 = vmatprep.subr.bf16.mxu0 0
        %2204 = vmatpush2.bf16.xpose.msra.mxu0 0
        %2205 = vmatprep.subr.bf16.mxu0 0
        %2206 = vmatpush2.bf16.xpose.msra.mxu0 0
        %2207 = vmatprep.subr.bf16.mxu0 0
        %2208 = vmatpush2.bf16.xpose.msra.mxu0 0
        %2209 = vmatprep.subr.bf16.mxu0 0
        %2210 = vmatpush2.bf16.xpose.msra.mxu0 0
        %2211 = vmatprep.subr.bf16.mxu0 0
        %2212 = vmatpush2.bf16.xpose.msra.mxu0 0
        %2213 = vmatprep.subr.bf16.mxu0 0
        %2214 = vmatpush2.bf16.xpose.msra.mxu0 0
        %2215 = vmatprep.subr.bf16.mxu0 0
        %2216 = vmatpush2.bf16.xpose.msra.mxu0 0
        %2217 = vmatprep.mubr.bf16.mxu0 0
        %2218 = vmatmul.mubr.bf16.gmra.mxu0 %v2180
        %v2219 = vpop.f32.mrf.mxu0
        %v2220 = vadd.f32 0.0, %v2219
        %v2221 = vpop.f32.mrf.mxu0
        %v2222 = vpop.f32.mrf.mxu0
        %v2223 = vpop.f32.mrf.mxu0
        %2224 = vdwg.mxu0
        %v2226 = vsel %vm826, %v2031, 0
        %v2229 = vsel %vm826, %v2079, 0
        %2231 = vmatprep.subr.bf16.mxu0 0
        %2232 = vmatpush1.bf16.xpose.msra.mxu0 0
        %2233 = vmatprep.subr.bf16.mxu0 0
        %2234 = vmatpush1.bf16.xpose.msra.mxu0 0
        %2235 = vmatprep.subr.bf16.mxu0 0
        %2236 = vmatpush1.bf16.xpose.msra.mxu0 0
        %2237 = vmatprep.subr.bf16.mxu0 0
        %2238 = vmatpush1.bf16.xpose.msra.mxu0 0
        %2239 = vmatprep.subr.bf16.mxu0 0
        %2240 = vmatpush1.bf16.xpose.msra.mxu0 0
        %2241 = vmatprep.subr.bf16.mxu0 0
        %2242 = vmatpush1.bf16.xpose.msra.mxu0 0
        %2243 = vmatprep.subr.bf16.mxu0 0
        %2244 = vmatpush1.bf16.xpose.msra.mxu0 0
        %2245 = vmatprep.subr.bf16.mxu0 0
        %2246 = vmatpush1.bf16.xpose.msra.mxu0 %v2229
        %2247 = vmatprep.subr.bf16.mxu0 0
        %2248 = vmatpush2.bf16.xpose.msra.mxu0 0
        %2249 = vmatprep.subr.bf16.mxu0 0
        %2250 = vmatpush2.bf16.xpose.msra.mxu0 0
        %2251 = vmatprep.subr.bf16.mxu0 0
        %2252 = vmatpush2.bf16.xpose.msra.mxu0 0
        %2253 = vmatprep.subr.bf16.mxu0 0
        %2254 = vmatpush2.bf16.xpose.msra.mxu0 0
        %2255 = vmatprep.subr.bf16.mxu0 0
        %2256 = vmatpush2.bf16.xpose.msra.mxu0 0
        %2257 = vmatprep.subr.bf16.mxu0 0
        %2258 = vmatpush2.bf16.xpose.msra.mxu0 0
        %2259 = vmatprep.subr.bf16.mxu0 0
        %2260 = vmatpush2.bf16.xpose.msra.mxu0 0
        %2261 = vmatprep.subr.bf16.mxu0 0
        %2262 = vmatpush2.bf16.xpose.msra.mxu0 0
        %2263 = vmatprep.mubr.bf16.mxu0 0
        %2264 = vmatmul.mubr.bf16.gmra.mxu0 %v2226
        %v2265 = vpop.f32.mrf.mxu0
        %v2266 = vadd.f32 0.0, %v2265
        %v2267 = vpop.f32.mrf.mxu0
        %v2268 = vpop.f32.mrf.mxu0
        %v2269 = vpop.f32.mrf.mxu0
        %2270 = vdwg.mxu0
        %v2272 = vsel %vm826, %v2032, 0
        %v2275 = vsel %vm826, %v2080, 0
        %2277 = vmatprep.subr.bf16.mxu0 0
        %2278 = vmatpush1.bf16.xpose.msra.mxu0 0
        %2279 = vmatprep.subr.bf16.mxu0 0
        %2280 = vmatpush1.bf16.xpose.msra.mxu0 0
        %2281 = vmatprep.subr.bf16.mxu0 0
        %2282 = vmatpush1.bf16.xpose.msra.mxu0 0
        %2283 = vmatprep.subr.bf16.mxu0 0
        %2284 = vmatpush1.bf16.xpose.msra.mxu0 0
        %2285 = vmatprep.subr.bf16.mxu0 0
        %2286 = vmatpush1.bf16.xpose.msra.mxu0 0
        %2287 = vmatprep.subr.bf16.mxu0 0
        %2288 = vmatpush1.bf16.xpose.msra.mxu0 0
        %2289 = vmatprep.subr.bf16.mxu0 0
        %2290 = vmatpush1.bf16.xpose.msra.mxu0 0
        %2291 = vmatprep.subr.bf16.mxu0 0
        %2292 = vmatpush1.bf16.xpose.msra.mxu0 %v2275
        %2293 = vmatprep.subr.bf16.mxu0 0
        %2294 = vmatpush2.bf16.xpose.msra.mxu0 0
        %2295 = vmatprep.subr.bf16.mxu0 0
        %2296 = vmatpush2.bf16.xpose.msra.mxu0 0
        %2297 = vmatprep.subr.bf16.mxu0 0
        %2298 = vmatpush2.bf16.xpose.msra.mxu0 0
        %2299 = vmatprep.subr.bf16.mxu0 0
        %2300 = vmatpush2.bf16.xpose.msra.mxu0 0
        %2301 = vmatprep.subr.bf16.mxu0 0
        %2302 = vmatpush2.bf16.xpose.msra.mxu0 0
        %2303 = vmatprep.subr.bf16.mxu0 0
        %2304 = vmatpush2.bf16.xpose.msra.mxu0 0
        %2305 = vmatprep.subr.bf16.mxu0 0
        %2306 = vmatpush2.bf16.xpose.msra.mxu0 0
        %2307 = vmatprep.subr.bf16.mxu0 0
        %2308 = vmatpush2.bf16.xpose.msra.mxu0 0
        %2309 = vmatprep.mubr.bf16.mxu0 0
        %2310 = vmatmul.mubr.bf16.gmra.mxu0 %v2272
        %v2311 = vpop.f32.mrf.mxu0
        %v2312 = vadd.f32 0.0, %v2311
        %v2313 = vpop.f32.mrf.mxu0
        %v2314 = vpop.f32.mrf.mxu0
        %v2315 = vpop.f32.mrf.mxu0
        %2316 = vdwg.mxu0
        %v2318 = vsel %vm826, %v2033, 0
        %v2321 = vsel %vm826, %v2081, 0
        %2323 = vmatprep.subr.bf16.mxu0 0
        %2324 = vmatpush1.bf16.xpose.msra.mxu0 0
        %2325 = vmatprep.subr.bf16.mxu0 0
        %2326 = vmatpush1.bf16.xpose.msra.mxu0 0
        %2327 = vmatprep.subr.bf16.mxu0 0
        %2328 = vmatpush1.bf16.xpose.msra.mxu0 0
        %2329 = vmatprep.subr.bf16.mxu0 0
        %2330 = vmatpush1.bf16.xpose.msra.mxu0 0
        %2331 = vmatprep.subr.bf16.mxu0 0
        %2332 = vmatpush1.bf16.xpose.msra.mxu0 0
        %2333 = vmatprep.subr.bf16.mxu0 0
        %2334 = vmatpush1.bf16.xpose.msra.mxu0 0
        %2335 = vmatprep.subr.bf16.mxu0 0
        %2336 = vmatpush1.bf16.xpose.msra.mxu0 0
        %2337 = vmatprep.subr.bf16.mxu0 0
        %2338 = vmatpush1.bf16.xpose.msra.mxu0 %v2321
        %2339 = vmatprep.subr.bf16.mxu0 0
        %2340 = vmatpush2.bf16.xpose.msra.mxu0 0
        %2341 = vmatprep.subr.bf16.mxu0 0
        %2342 = vmatpush2.bf16.xpose.msra.mxu0 0
        %2343 = vmatprep.subr.bf16.mxu0 0
        %2344 = vmatpush2.bf16.xpose.msra.mxu0 0
        %2345 = vmatprep.subr.bf16.mxu0 0
        %2346 = vmatpush2.bf16.xpose.msra.mxu0 0
        %2347 = vmatprep.subr.bf16.mxu0 0
        %2348 = vmatpush2.bf16.xpose.msra.mxu0 0
        %2349 = vmatprep.subr.bf16.mxu0 0
        %2350 = vmatpush2.bf16.xpose.msra.mxu0 0
        %2351 = vmatprep.subr.bf16.mxu0 0
        %2352 = vmatpush2.bf16.xpose.msra.mxu0 0
        %2353 = vmatprep.subr.bf16.mxu0 0
        %2354 = vmatpush2.bf16.xpose.msra.mxu0 0
        %2355 = vmatprep.mubr.bf16.mxu0 0
        %2356 = vmatmul.mubr.bf16.gmra.mxu0 %v2318
        %v2357 = vpop.f32.mrf.mxu0
        %v2358 = vadd.f32 0.0, %v2357
        %v2359 = vpop.f32.mrf.mxu0
        %v2360 = vpop.f32.mrf.mxu0
        %v2361 = vpop.f32.mrf.mxu0
        %2362 = vdwg.mxu0
        %v2364 = vsel %vm826, %v2034, 0
        %v2367 = vsel %vm826, %v2082, 0
        %2369 = vmatprep.subr.bf16.mxu0 0
        %2370 = vmatpush1.bf16.xpose.msra.mxu0 0
        %2371 = vmatprep.subr.bf16.mxu0 0
        %2372 = vmatpush1.bf16.xpose.msra.mxu0 0
        %2373 = vmatprep.subr.bf16.mxu0 0
        %2374 = vmatpush1.bf16.xpose.msra.mxu0 0
        %2375 = vmatprep.subr.bf16.mxu0 0
        %2376 = vmatpush1.bf16.xpose.msra.mxu0 0
        %2377 = vmatprep.subr.bf16.mxu0 0
        %2378 = vmatpush1.bf16.xpose.msra.mxu0 0
        %2379 = vmatprep.subr.bf16.mxu0 0
        %2380 = vmatpush1.bf16.xpose.msra.mxu0 0
        %2381 = vmatprep.subr.bf16.mxu0 0
        %2382 = vmatpush1.bf16.xpose.msra.mxu0 0
        %2383 = vmatprep.subr.bf16.mxu0 0
        %2384 = vmatpush1.bf16.xpose.msra.mxu0 %v2367
        %2385 = vmatprep.subr.bf16.mxu0 0
        %2386 = vmatpush2.bf16.xpose.msra.mxu0 0
        %2387 = vmatprep.subr.bf16.mxu0 0
        %2388 = vmatpush2.bf16.xpose.msra.mxu0 0
        %2389 = vmatprep.subr.bf16.mxu0 0
        %2390 = vmatpush2.bf16.xpose.msra.mxu0 0
        %2391 = vmatprep.subr.bf16.mxu0 0
        %2392 = vmatpush2.bf16.xpose.msra.mxu0 0
        %2393 = vmatprep.subr.bf16.mxu0 0
        %2394 = vmatpush2.bf16.xpose.msra.mxu0 0
        %2395 = vmatprep.subr.bf16.mxu0 0
        %2396 = vmatpush2.bf16.xpose.msra.mxu0 0
        %2397 = vmatprep.subr.bf16.mxu0 0
        %2398 = vmatpush2.bf16.xpose.msra.mxu0 0
        %2399 = vmatprep.subr.bf16.mxu0 0
        %2400 = vmatpush2.bf16.xpose.msra.mxu0 0
        %2401 = vmatprep.mubr.bf16.mxu0 0
        %2402 = vmatmul.mubr.bf16.gmra.mxu0 %v2364
        %v2403 = vpop.f32.mrf.mxu0
        %v2404 = vadd.f32 0.0, %v2403
        %v2405 = vpop.f32.mrf.mxu0
        %v2406 = vpop.f32.mrf.mxu0
        %v2407 = vpop.f32.mrf.mxu0
        %2408 = vdwg.mxu0
        %v2410 = vsel %vm826, %v2035, 0
        %v2413 = vsel %vm826, %v2083, 0
        %2415 = vmatprep.subr.bf16.mxu0 0
        %2416 = vmatpush1.bf16.xpose.msra.mxu0 0
        %2417 = vmatprep.subr.bf16.mxu0 0
        %2418 = vmatpush1.bf16.xpose.msra.mxu0 0
        %2419 = vmatprep.subr.bf16.mxu0 0
        %2420 = vmatpush1.bf16.xpose.msra.mxu0 0
        %2421 = vmatprep.subr.bf16.mxu0 0
        %2422 = vmatpush1.bf16.xpose.msra.mxu0 0
        %2423 = vmatprep.subr.bf16.mxu0 0
        %2424 = vmatpush1.bf16.xpose.msra.mxu0 0
        %2425 = vmatprep.subr.bf16.mxu0 0
        %2426 = vmatpush1.bf16.xpose.msra.mxu0 0
        %2427 = vmatprep.subr.bf16.mxu0 0
        %2428 = vmatpush1.bf16.xpose.msra.mxu0 0
        %2429 = vmatprep.subr.bf16.mxu0 0
        %2430 = vmatpush1.bf16.xpose.msra.mxu0 %v2413
        %2431 = vmatprep.subr.bf16.mxu0 0
        %2432 = vmatpush2.bf16.xpose.msra.mxu0 0
        %2433 = vmatprep.subr.bf16.mxu0 0
        %2434 = vmatpush2.bf16.xpose.msra.mxu0 0
        %2435 = vmatprep.subr.bf16.mxu0 0
        %2436 = vmatpush2.bf16.xpose.msra.mxu0 0
        %2437 = vmatprep.subr.bf16.mxu0 0
        %2438 = vmatpush2.bf16.xpose.msra.mxu0 0
        %2439 = vmatprep.subr.bf16.mxu0 0
        %2440 = vmatpush2.bf16.xpose.msra.mxu0 0
        %2441 = vmatprep.subr.bf16.mxu0 0
        %2442 = vmatpush2.bf16.xpose.msra.mxu0 0
        %2443 = vmatprep.subr.bf16.mxu0 0
        %2444 = vmatpush2.bf16.xpose.msra.mxu0 0
        %2445 = vmatprep.subr.bf16.mxu0 0
        %2446 = vmatpush2.bf16.xpose.msra.mxu0 0
        %2447 = vmatprep.mubr.bf16.mxu0 0
        %2448 = vmatmul.mubr.bf16.gmra.mxu0 %v2410
        %v2449 = vpop.f32.mrf.mxu0
        %v2450 = vadd.f32 0.0, %v2449
        %v2451 = vpop.f32.mrf.mxu0
        %v2452 = vpop.f32.mrf.mxu0
        %v2453 = vpop.f32.mrf.mxu0
        %2454 = vdwg.mxu0
        %v2456 = vsel %vm826, %v2036, 0
        %v2459 = vsel %vm826, %v2084, 0
        %2461 = vmatprep.subr.bf16.mxu0 0
        %2462 = vmatpush1.bf16.xpose.msra.mxu0 0
        %2463 = vmatprep.subr.bf16.mxu0 0
        %2464 = vmatpush1.bf16.xpose.msra.mxu0 0
        %2465 = vmatprep.subr.bf16.mxu0 0
        %2466 = vmatpush1.bf16.xpose.msra.mxu0 0
        %2467 = vmatprep.subr.bf16.mxu0 0
        %2468 = vmatpush1.bf16.xpose.msra.mxu0 0
        %2469 = vmatprep.subr.bf16.mxu0 0
        %2470 = vmatpush1.bf16.xpose.msra.mxu0 0
        %2471 = vmatprep.subr.bf16.mxu0 0
        %2472 = vmatpush1.bf16.xpose.msra.mxu0 0
        %2473 = vmatprep.subr.bf16.mxu0 0
        %2474 = vmatpush1.bf16.xpose.msra.mxu0 0
        %2475 = vmatprep.subr.bf16.mxu0 0
        %2476 = vmatpush1.bf16.xpose.msra.mxu0 %v2459
        %2477 = vmatprep.subr.bf16.mxu0 0
        %2478 = vmatpush2.bf16.xpose.msra.mxu0 0
        %2479 = vmatprep.subr.bf16.mxu0 0
        %2480 = vmatpush2.bf16.xpose.msra.mxu0 0
        %2481 = vmatprep.subr.bf16.mxu0 0
        %2482 = vmatpush2.bf16.xpose.msra.mxu0 0
        %2483 = vmatprep.subr.bf16.mxu0 0
        %2484 = vmatpush2.bf16.xpose.msra.mxu0 0
        %2485 = vmatprep.subr.bf16.mxu0 0
        %2486 = vmatpush2.bf16.xpose.msra.mxu0 0
        %2487 = vmatprep.subr.bf16.mxu0 0
        %2488 = vmatpush2.bf16.xpose.msra.mxu0 0
        %2489 = vmatprep.subr.bf16.mxu0 0
        %2490 = vmatpush2.bf16.xpose.msra.mxu0 0
        %2491 = vmatprep.subr.bf16.mxu0 0
        %2492 = vmatpush2.bf16.xpose.msra.mxu0 0
        %2493 = vmatprep.mubr.bf16.mxu0 0
        %2494 = vmatmul.mubr.bf16.gmra.mxu0 %v2456
        %v2495 = vpop.f32.mrf.mxu0
        %v2496 = vadd.f32 0.0, %v2495
        %v2497 = vpop.f32.mrf.mxu0
        %v2498 = vpop.f32.mrf.mxu0
        %v2499 = vpop.f32.mrf.mxu0
        %2500 = vdwg.mxu0
        %v2501 = vsel %vm1718, %v2174, -inf
        %2502 = vmax.xlane.f32.xlu0 %v2501
        %v2503 = vpop.xlane.xlu0 %2502
        %v2504 = vsel %vm1718, %v2220, -inf
        %2505 = vmax.xlane.f32.xlu0 %v2504
        %v2506 = vpop.xlane.xlu0 %2505
        %v2507 = vsel %vm1718, %v2266, -inf
        %2508 = vmax.xlane.f32.xlu0 %v2507
        %v2509 = vpop.xlane.xlu0 %2508
        %v2510 = vsel %vm1718, %v2312, -inf
        %2511 = vmax.xlane.f32.xlu0 %v2510
        %v2512 = vpop.xlane.xlu0 %2511
        %v2513 = vsel %vm1718, %v2358, -inf
        %2514 = vmax.xlane.f32.xlu0 %v2513
        %v2515 = vpop.xlane.xlu0 %2514
        %v2516 = vsel %vm1718, %v2404, -inf
        %2517 = vmax.xlane.f32.xlu0 %v2516
        %v2518 = vpop.xlane.xlu0 %2517
        %v2519 = vsel %vm1718, %v2450, -inf
        %2520 = vmax.xlane.f32.xlu0 %v2519
        %v2521 = vpop.xlane.xlu0 %2520
        %v2522 = vsel %vm1718, %v2496, -inf
        %2523 = vmax.xlane.f32.xlu0 %v2522
        %v2524 = vpop.xlane.xlu0 %2523
        %v2525 = vsub.f32 %v2174, %v2503
        %v2526 = vsub.f32 %v2220, %v2506
        %v2527 = vsub.f32 %v2266, %v2509
        %v2528 = vsub.f32 %v2312, %v2512
        %v2529 = vsub.f32 %v2358, %v2515
        %v2530 = vsub.f32 %v2404, %v2518
        %v2531 = vsub.f32 %v2450, %v2521
        %v2532 = vsub.f32 %v2496, %v2524
        %v2533 = vmul.f32 %v2525, 1.442695
        %v2534 = vpow.pop %v2533
        %v2535 = vmul.f32 %v2526, 1.442695
        %v2536 = vpow.pop %v2535
        %v2537 = vmul.f32 %v2527, 1.442695
        %v2538 = vpow.pop %v2537
        %v2539 = vmul.f32 %v2528, 1.442695
        %v2540 = vpow.pop %v2539
        %v2541 = vmul.f32 %v2529, 1.442695
        %v2542 = vpow.pop %v2541
        %v2543 = vmul.f32 %v2530, 1.442695
        %v2544 = vpow.pop %v2543
        %v2545 = vmul.f32 %v2531, 1.442695
        %v2546 = vpow.pop %v2545
        %v2547 = vmul.f32 %v2532, 1.442695
        %v2548 = vpow.pop %v2547
        %v2549 = vsel %vm1718, %v2534, 0.0
        %2550 = vadd.xlane.f32.xlu0 %v2549
        %v2551 = vpop.xlane.xlu0 %2550
        %v2552 = vsel %vm1718, %v2536, 0.0
        %2553 = vadd.xlane.f32.xlu0 %v2552
        %v2554 = vpop.xlane.xlu0 %2553
        %v2555 = vsel %vm1718, %v2538, 0.0
        %2556 = vadd.xlane.f32.xlu0 %v2555
        %v2557 = vpop.xlane.xlu0 %2556
        %v2558 = vsel %vm1718, %v2540, 0.0
        %2559 = vadd.xlane.f32.xlu0 %v2558
        %v2560 = vpop.xlane.xlu0 %2559
        %v2561 = vsel %vm1718, %v2542, 0.0
        %2562 = vadd.xlane.f32.xlu0 %v2561
        %v2563 = vpop.xlane.xlu0 %2562
        %v2564 = vsel %vm1718, %v2544, 0.0
        %2565 = vadd.xlane.f32.xlu0 %v2564
        %v2566 = vpop.xlane.xlu0 %2565
        %v2567 = vsel %vm1718, %v2546, 0.0
        %2568 = vadd.xlane.f32.xlu0 %v2567
        %v2569 = vpop.xlane.xlu0 %2568
        %v2570 = vsel %vm1718, %v2548, 0.0
        %2571 = vadd.xlane.f32.xlu0 %v2570
        %v2572 = vpop.xlane.xlu0 %2571
        %v2573 = vrcp.pop %v2551
        %v2574 = vrcp.pop %v2554
        %v2575 = vrcp.pop %v2557
        %v2576 = vrcp.pop %v2560
        %v2577 = vrcp.pop %v2563
        %v2578 = vrcp.pop %v2566
        %v2579 = vrcp.pop %v2569
        %v2580 = vrcp.pop %v2572
        %v2581 = vmul.f32 %v2534, %v2573
        %v2582 = vmul.f32 %v2536, %v2574
        %v2583 = vmul.f32 %v2538, %v2575
        %v2584 = vmul.f32 %v2540, %v2576
        %v2585 = vmul.f32 %v2542, %v2577
        %v2586 = vmul.f32 %v2544, %v2578
        %v2587 = vmul.f32 %v2546, %v2579
        %v2588 = vmul.f32 %v2548, %v2580
        %v2589 = vpack.c.bf16 %v2581, %v2581
        %v2590 = vpack.c.bf16 %v2582, %v2582
        %v2591 = vpack.c.bf16 %v2583, %v2583
        %v2592 = vpack.c.bf16 %v2584, %v2584
        %v2593 = vpack.c.bf16 %v2585, %v2585
        %v2594 = vpack.c.bf16 %v2586, %v2586
        %v2595 = vpack.c.bf16 %v2587, %v2587
        %v2596 = vpack.c.bf16 %v2588, %v2588
        %2598 = vrot.lane.b32.xlu0 %v2125, 96
        %v2599 = vpop.permute.xlu0 %2598
        %v2602 = vsel %vm1718, %v2589, 0
        %2604 = vmatprep.subr.bf16.mxu0 0
        %2605 = vmatpush1.bf16.msra.mxu0 0
        %2606 = vmatprep.subr.bf16.mxu0 0
        %2607 = vmatpush1.bf16.msra.mxu0 0
        %2608 = vmatprep.subr.bf16.mxu0 0
        %2609 = vmatpush1.bf16.msra.mxu0 0
        %2610 = vmatprep.subr.bf16.mxu0 0
        %2611 = vmatpush1.bf16.msra.mxu0 0
        %2612 = vmatprep.subr.bf16.mxu0 0
        %2613 = vmatpush1.bf16.msra.mxu0 0
        %2614 = vmatprep.subr.bf16.mxu0 0
        %2615 = vmatpush1.bf16.msra.mxu0 0
        %2616 = vmatprep.subr.bf16.mxu0 0
        %2617 = vmatpush1.bf16.msra.mxu0 0
        %2618 = vmatprep.subr.bf16.mxu0 0
        %2619 = vmatpush1.bf16.msra.mxu0 %v2599
        %2620 = vmatprep.subr.bf16.mxu0 0
        %2621 = vmatpush2.bf16.msra.mxu0 0
        %2622 = vmatprep.subr.bf16.mxu0 0
        %2623 = vmatpush2.bf16.msra.mxu0 0
        %2624 = vmatprep.subr.bf16.mxu0 0
        %2625 = vmatpush2.bf16.msra.mxu0 0
        %2626 = vmatprep.subr.bf16.mxu0 0
        %2627 = vmatpush2.bf16.msra.mxu0 0
        %2628 = vmatprep.subr.bf16.mxu0 0
        %2629 = vmatpush2.bf16.msra.mxu0 0
        %2630 = vmatprep.subr.bf16.mxu0 0
        %2631 = vmatpush2.bf16.msra.mxu0 0
        %2632 = vmatprep.subr.bf16.mxu0 0
        %2633 = vmatpush2.bf16.msra.mxu0 0
        %2634 = vmatprep.subr.bf16.mxu0 0
        %2635 = vmatpush2.bf16.msra.mxu0 0
        %2636 = vmatprep.mubr.bf16.mxu0 0
        %2637 = vmatmul.mubr.bf16.gmra.mxu0 %v2602
        %v2638 = vpop.f32.mrf.mxu0
        %v2639 = vadd.f32 0.0, %v2638
        %v2640 = vpop.f32.mrf.mxu0
        %v2641 = vpop.f32.mrf.mxu0
        %v2642 = vpop.f32.mrf.mxu0
        %2643 = vdwg.mxu0
        %2645 = vrot.lane.b32.xlu0 %v2126, 96
        %v2646 = vpop.permute.xlu0 %2645
        %v2649 = vsel %vm1718, %v2590, 0
        %2651 = vmatprep.subr.bf16.mxu0 0
        %2652 = vmatpush1.bf16.msra.mxu0 0
        %2653 = vmatprep.subr.bf16.mxu0 0
        %2654 = vmatpush1.bf16.msra.mxu0 0
        %2655 = vmatprep.subr.bf16.mxu0 0
        %2656 = vmatpush1.bf16.msra.mxu0 0
        %2657 = vmatprep.subr.bf16.mxu0 0
        %2658 = vmatpush1.bf16.msra.mxu0 0
        %2659 = vmatprep.subr.bf16.mxu0 0
        %2660 = vmatpush1.bf16.msra.mxu0 0
        %2661 = vmatprep.subr.bf16.mxu0 0
        %2662 = vmatpush1.bf16.msra.mxu0 0
        %2663 = vmatprep.subr.bf16.mxu0 0
        %2664 = vmatpush1.bf16.msra.mxu0 0
        %2665 = vmatprep.subr.bf16.mxu0 0
        %2666 = vmatpush1.bf16.msra.mxu0 %v2646
        %2667 = vmatprep.subr.bf16.mxu0 0
        %2668 = vmatpush2.bf16.msra.mxu0 0
        %2669 = vmatprep.subr.bf16.mxu0 0
        %2670 = vmatpush2.bf16.msra.mxu0 0
        %2671 = vmatprep.subr.bf16.mxu0 0
        %2672 = vmatpush2.bf16.msra.mxu0 0
        %2673 = vmatprep.subr.bf16.mxu0 0
        %2674 = vmatpush2.bf16.msra.mxu0 0
        %2675 = vmatprep.subr.bf16.mxu0 0
        %2676 = vmatpush2.bf16.msra.mxu0 0
        %2677 = vmatprep.subr.bf16.mxu0 0
        %2678 = vmatpush2.bf16.msra.mxu0 0
        %2679 = vmatprep.subr.bf16.mxu0 0
        %2680 = vmatpush2.bf16.msra.mxu0 0
        %2681 = vmatprep.subr.bf16.mxu0 0
        %2682 = vmatpush2.bf16.msra.mxu0 0
        %2683 = vmatprep.mubr.bf16.mxu0 0
        %2684 = vmatmul.mubr.bf16.gmra.mxu0 %v2649
        %v2685 = vpop.f32.mrf.mxu0
        %v2686 = vadd.f32 0.0, %v2685
        %v2687 = vpop.f32.mrf.mxu0
        %v2688 = vpop.f32.mrf.mxu0
        %v2689 = vpop.f32.mrf.mxu0
        %2690 = vdwg.mxu0
        %2692 = vrot.lane.b32.xlu0 %v2127, 96
        %v2693 = vpop.permute.xlu0 %2692
        %v2696 = vsel %vm1718, %v2591, 0
        %2698 = vmatprep.subr.bf16.mxu0 0
        %2699 = vmatpush1.bf16.msra.mxu0 0
        %2700 = vmatprep.subr.bf16.mxu0 0
        %2701 = vmatpush1.bf16.msra.mxu0 0
        %2702 = vmatprep.subr.bf16.mxu0 0
        %2703 = vmatpush1.bf16.msra.mxu0 0
        %2704 = vmatprep.subr.bf16.mxu0 0
        %2705 = vmatpush1.bf16.msra.mxu0 0
        %2706 = vmatprep.subr.bf16.mxu0 0
        %2707 = vmatpush1.bf16.msra.mxu0 0
        %2708 = vmatprep.subr.bf16.mxu0 0
        %2709 = vmatpush1.bf16.msra.mxu0 0
        %2710 = vmatprep.subr.bf16.mxu0 0
        %2711 = vmatpush1.bf16.msra.mxu0 0
        %2712 = vmatprep.subr.bf16.mxu0 0
        %2713 = vmatpush1.bf16.msra.mxu0 %v2693
        %2714 = vmatprep.subr.bf16.mxu0 0
        %2715 = vmatpush2.bf16.msra.mxu0 0
        %2716 = vmatprep.subr.bf16.mxu0 0
        %2717 = vmatpush2.bf16.msra.mxu0 0
        %2718 = vmatprep.subr.bf16.mxu0 0
        %2719 = vmatpush2.bf16.msra.mxu0 0
        %2720 = vmatprep.subr.bf16.mxu0 0
        %2721 = vmatpush2.bf16.msra.mxu0 0
        %2722 = vmatprep.subr.bf16.mxu0 0
        %2723 = vmatpush2.bf16.msra.mxu0 0
        %2724 = vmatprep.subr.bf16.mxu0 0
        %2725 = vmatpush2.bf16.msra.mxu0 0
        %2726 = vmatprep.subr.bf16.mxu0 0
        %2727 = vmatpush2.bf16.msra.mxu0 0
        %2728 = vmatprep.subr.bf16.mxu0 0
        %2729 = vmatpush2.bf16.msra.mxu0 0
        %2730 = vmatprep.mubr.bf16.mxu0 0
        %2731 = vmatmul.mubr.bf16.gmra.mxu0 %v2696
        %v2732 = vpop.f32.mrf.mxu0
        %v2733 = vadd.f32 0.0, %v2732
        %v2734 = vpop.f32.mrf.mxu0
        %v2735 = vpop.f32.mrf.mxu0
        %v2736 = vpop.f32.mrf.mxu0
        %2737 = vdwg.mxu0
        %2739 = vrot.lane.b32.xlu0 %v2128, 96
        %v2740 = vpop.permute.xlu0 %2739
        %v2743 = vsel %vm1718, %v2592, 0
        %2745 = vmatprep.subr.bf16.mxu0 0
        %2746 = vmatpush1.bf16.msra.mxu0 0
        %2747 = vmatprep.subr.bf16.mxu0 0
        %2748 = vmatpush1.bf16.msra.mxu0 0
        %2749 = vmatprep.subr.bf16.mxu0 0
        %2750 = vmatpush1.bf16.msra.mxu0 0
        %2751 = vmatprep.subr.bf16.mxu0 0
        %2752 = vmatpush1.bf16.msra.mxu0 0
        %2753 = vmatprep.subr.bf16.mxu0 0
        %2754 = vmatpush1.bf16.msra.mxu0 0
        %2755 = vmatprep.subr.bf16.mxu0 0
        %2756 = vmatpush1.bf16.msra.mxu0 0
        %2757 = vmatprep.subr.bf16.mxu0 0
        %2758 = vmatpush1.bf16.msra.mxu0 0
        %2759 = vmatprep.subr.bf16.mxu0 0
        %2760 = vmatpush1.bf16.msra.mxu0 %v2740
        %2761 = vmatprep.subr.bf16.mxu0 0
        %2762 = vmatpush2.bf16.msra.mxu0 0
        %2763 = vmatprep.subr.bf16.mxu0 0
        %2764 = vmatpush2.bf16.msra.mxu0 0
        %2765 = vmatprep.subr.bf16.mxu0 0
        %2766 = vmatpush2.bf16.msra.mxu0 0
        %2767 = vmatprep.subr.bf16.mxu0 0
        %2768 = vmatpush2.bf16.msra.mxu0 0
        %2769 = vmatprep.subr.bf16.mxu0 0
        %2770 = vmatpush2.bf16.msra.mxu0 0
        %2771 = vmatprep.subr.bf16.mxu0 0
        %2772 = vmatpush2.bf16.msra.mxu0 0
        %2773 = vmatprep.subr.bf16.mxu0 0
        %2774 = vmatpush2.bf16.msra.mxu0 0
        %2775 = vmatprep.subr.bf16.mxu0 0
        %2776 = vmatpush2.bf16.msra.mxu0 0
        %2777 = vmatprep.mubr.bf16.mxu0 0
        %2778 = vmatmul.mubr.bf16.gmra.mxu0 %v2743
        %v2779 = vpop.f32.mrf.mxu0
        %v2780 = vadd.f32 0.0, %v2779
        %v2781 = vpop.f32.mrf.mxu0
        %v2782 = vpop.f32.mrf.mxu0
        %v2783 = vpop.f32.mrf.mxu0
        %2784 = vdwg.mxu0
        %2786 = vrot.lane.b32.xlu0 %v2129, 96
        %v2787 = vpop.permute.xlu0 %2786
        %v2790 = vsel %vm1718, %v2593, 0
        %2792 = vmatprep.subr.bf16.mxu0 0
        %2793 = vmatpush1.bf16.msra.mxu0 0
        %2794 = vmatprep.subr.bf16.mxu0 0
        %2795 = vmatpush1.bf16.msra.mxu0 0
        %2796 = vmatprep.subr.bf16.mxu0 0
        %2797 = vmatpush1.bf16.msra.mxu0 0
        %2798 = vmatprep.subr.bf16.mxu0 0
        %2799 = vmatpush1.bf16.msra.mxu0 0
        %2800 = vmatprep.subr.bf16.mxu0 0
        %2801 = vmatpush1.bf16.msra.mxu0 0
        %2802 = vmatprep.subr.bf16.mxu0 0
        %2803 = vmatpush1.bf16.msra.mxu0 0
        %2804 = vmatprep.subr.bf16.mxu0 0
        %2805 = vmatpush1.bf16.msra.mxu0 0
        %2806 = vmatprep.subr.bf16.mxu0 0
        %2807 = vmatpush1.bf16.msra.mxu0 %v2787
        %2808 = vmatprep.subr.bf16.mxu0 0
        %2809 = vmatpush2.bf16.msra.mxu0 0
        %2810 = vmatprep.subr.bf16.mxu0 0
        %2811 = vmatpush2.bf16.msra.mxu0 0
        %2812 = vmatprep.subr.bf16.mxu0 0
        %2813 = vmatpush2.bf16.msra.mxu0 0
        %2814 = vmatprep.subr.bf16.mxu0 0
        %2815 = vmatpush2.bf16.msra.mxu0 0
        %2816 = vmatprep.subr.bf16.mxu0 0
        %2817 = vmatpush2.bf16.msra.mxu0 0
        %2818 = vmatprep.subr.bf16.mxu0 0
        %2819 = vmatpush2.bf16.msra.mxu0 0
        %2820 = vmatprep.subr.bf16.mxu0 0
        %2821 = vmatpush2.bf16.msra.mxu0 0
        %2822 = vmatprep.subr.bf16.mxu0 0
        %2823 = vmatpush2.bf16.msra.mxu0 0
        %2824 = vmatprep.mubr.bf16.mxu0 0
        %2825 = vmatmul.mubr.bf16.gmra.mxu0 %v2790
        %v2826 = vpop.f32.mrf.mxu0
        %v2827 = vadd.f32 0.0, %v2826
        %v2828 = vpop.f32.mrf.mxu0
        %v2829 = vpop.f32.mrf.mxu0
        %v2830 = vpop.f32.mrf.mxu0
        %2831 = vdwg.mxu0
        %2833 = vrot.lane.b32.xlu0 %v2130, 96
        %v2834 = vpop.permute.xlu0 %2833
        %v2837 = vsel %vm1718, %v2594, 0
        %2839 = vmatprep.subr.bf16.mxu0 0
        %2840 = vmatpush1.bf16.msra.mxu0 0
        %2841 = vmatprep.subr.bf16.mxu0 0
        %2842 = vmatpush1.bf16.msra.mxu0 0
        %2843 = vmatprep.subr.bf16.mxu0 0
        %2844 = vmatpush1.bf16.msra.mxu0 0
        %2845 = vmatprep.subr.bf16.mxu0 0
        %2846 = vmatpush1.bf16.msra.mxu0 0
        %2847 = vmatprep.subr.bf16.mxu0 0
        %2848 = vmatpush1.bf16.msra.mxu0 0
        %2849 = vmatprep.subr.bf16.mxu0 0
        %2850 = vmatpush1.bf16.msra.mxu0 0
        %2851 = vmatprep.subr.bf16.mxu0 0
        %2852 = vmatpush1.bf16.msra.mxu0 0
        %2853 = vmatprep.subr.bf16.mxu0 0
        %2854 = vmatpush1.bf16.msra.mxu0 %v2834
        %2855 = vmatprep.subr.bf16.mxu0 0
        %2856 = vmatpush2.bf16.msra.mxu0 0
        %2857 = vmatprep.subr.bf16.mxu0 0
        %2858 = vmatpush2.bf16.msra.mxu0 0
        %2859 = vmatprep.subr.bf16.mxu0 0
        %2860 = vmatpush2.bf16.msra.mxu0 0
        %2861 = vmatprep.subr.bf16.mxu0 0
        %2862 = vmatpush2.bf16.msra.mxu0 0
        %2863 = vmatprep.subr.bf16.mxu0 0
        %2864 = vmatpush2.bf16.msra.mxu0 0
        %2865 = vmatprep.subr.bf16.mxu0 0
        %2866 = vmatpush2.bf16.msra.mxu0 0
        %2867 = vmatprep.subr.bf16.mxu0 0
        %2868 = vmatpush2.bf16.msra.mxu0 0
        %2869 = vmatprep.subr.bf16.mxu0 0
        %2870 = vmatpush2.bf16.msra.mxu0 0
        %2871 = vmatprep.mubr.bf16.mxu0 0
        %2872 = vmatmul.mubr.bf16.gmra.mxu0 %v2837
        %v2873 = vpop.f32.mrf.mxu0
        %v2874 = vadd.f32 0.0, %v2873
        %v2875 = vpop.f32.mrf.mxu0
        %v2876 = vpop.f32.mrf.mxu0
        %v2877 = vpop.f32.mrf.mxu0
        %2878 = vdwg.mxu0
        %2880 = vrot.lane.b32.xlu0 %v2131, 96
        %v2881 = vpop.permute.xlu0 %2880
        %v2884 = vsel %vm1718, %v2595, 0
        %2886 = vmatprep.subr.bf16.mxu0 0
        %2887 = vmatpush1.bf16.msra.mxu0 0
        %2888 = vmatprep.subr.bf16.mxu0 0
        %2889 = vmatpush1.bf16.msra.mxu0 0
        %2890 = vmatprep.subr.bf16.mxu0 0
        %2891 = vmatpush1.bf16.msra.mxu0 0
        %2892 = vmatprep.subr.bf16.mxu0 0
        %2893 = vmatpush1.bf16.msra.mxu0 0
        %2894 = vmatprep.subr.bf16.mxu0 0
        %2895 = vmatpush1.bf16.msra.mxu0 0
        %2896 = vmatprep.subr.bf16.mxu0 0
        %2897 = vmatpush1.bf16.msra.mxu0 0
        %2898 = vmatprep.subr.bf16.mxu0 0
        %2899 = vmatpush1.bf16.msra.mxu0 0
        %2900 = vmatprep.subr.bf16.mxu0 0
        %2901 = vmatpush1.bf16.msra.mxu0 %v2881
        %2902 = vmatprep.subr.bf16.mxu0 0
        %2903 = vmatpush2.bf16.msra.mxu0 0
        %2904 = vmatprep.subr.bf16.mxu0 0
        %2905 = vmatpush2.bf16.msra.mxu0 0
        %2906 = vmatprep.subr.bf16.mxu0 0
        %2907 = vmatpush2.bf16.msra.mxu0 0
        %2908 = vmatprep.subr.bf16.mxu0 0
        %2909 = vmatpush2.bf16.msra.mxu0 0
        %2910 = vmatprep.subr.bf16.mxu0 0
        %2911 = vmatpush2.bf16.msra.mxu0 0
        %2912 = vmatprep.subr.bf16.mxu0 0
        %2913 = vmatpush2.bf16.msra.mxu0 0
        %2914 = vmatprep.subr.bf16.mxu0 0
        %2915 = vmatpush2.bf16.msra.mxu0 0
        %2916 = vmatprep.subr.bf16.mxu0 0
        %2917 = vmatpush2.bf16.msra.mxu0 0
        %2918 = vmatprep.mubr.bf16.mxu0 0
        %2919 = vmatmul.mubr.bf16.gmra.mxu0 %v2884
        %v2920 = vpop.f32.mrf.mxu0
        %v2921 = vadd.f32 0.0, %v2920
        %v2922 = vpop.f32.mrf.mxu0
        %v2923 = vpop.f32.mrf.mxu0
        %v2924 = vpop.f32.mrf.mxu0
        %2925 = vdwg.mxu0
        %2927 = vrot.lane.b32.xlu0 %v2132, 96
        %v2928 = vpop.permute.xlu0 %2927
        %v2931 = vsel %vm1718, %v2596, 0
        %2933 = vmatprep.subr.bf16.mxu0 0
        %2934 = vmatpush1.bf16.msra.mxu0 0
        %2935 = vmatprep.subr.bf16.mxu0 0
        %2936 = vmatpush1.bf16.msra.mxu0 0
        %2937 = vmatprep.subr.bf16.mxu0 0
        %2938 = vmatpush1.bf16.msra.mxu0 0
        %2939 = vmatprep.subr.bf16.mxu0 0
        %2940 = vmatpush1.bf16.msra.mxu0 0
        %2941 = vmatprep.subr.bf16.mxu0 0
        %2942 = vmatpush1.bf16.msra.mxu0 0
        %2943 = vmatprep.subr.bf16.mxu0 0
        %2944 = vmatpush1.bf16.msra.mxu0 0
        %2945 = vmatprep.subr.bf16.mxu0 0
        %2946 = vmatpush1.bf16.msra.mxu0 0
        %2947 = vmatprep.subr.bf16.mxu0 0
        %2948 = vmatpush1.bf16.msra.mxu0 %v2928
        %2949 = vmatprep.subr.bf16.mxu0 0
        %2950 = vmatpush2.bf16.msra.mxu0 0
        %2951 = vmatprep.subr.bf16.mxu0 0
        %2952 = vmatpush2.bf16.msra.mxu0 0
        %2953 = vmatprep.subr.bf16.mxu0 0
        %2954 = vmatpush2.bf16.msra.mxu0 0
        %2955 = vmatprep.subr.bf16.mxu0 0
        %2956 = vmatpush2.bf16.msra.mxu0 0
        %2957 = vmatprep.subr.bf16.mxu0 0
        %2958 = vmatpush2.bf16.msra.mxu0 0
        %2959 = vmatprep.subr.bf16.mxu0 0
        %2960 = vmatpush2.bf16.msra.mxu0 0
        %2961 = vmatprep.subr.bf16.mxu0 0
        %2962 = vmatpush2.bf16.msra.mxu0 0
        %2963 = vmatprep.subr.bf16.mxu0 0
        %2964 = vmatpush2.bf16.msra.mxu0 0
        %2965 = vmatprep.mubr.bf16.mxu0 0
        %2966 = vmatmul.mubr.bf16.gmra.mxu0 %v2931
        %v2967 = vpop.f32.mrf.mxu0
        %v2968 = vadd.f32 0.0, %v2967
        %v2969 = vpop.f32.mrf.mxu0
        %v2970 = vpop.f32.mrf.mxu0
        %v2971 = vpop.f32.mrf.mxu0
        %2972 = vdwg.mxu0
        %2974 = vrot.lane.b32.xlu0 %v2686, 8
        %v2975 = vpop.permute.xlu0 %2974
        %2978 = vrot.lane.b32.xlu0 %v2733, 16
        %v2979 = vpop.permute.xlu0 %2978
        %2982 = vrot.lane.b32.xlu0 %v2780, 24
        %v2983 = vpop.permute.xlu0 %2982
        %v2985 = vsel %vm826, %v2639, %v2975
        %v2986 = vsel %vm1718, %v2985, %v2979
        %v2987 = vsel %vm1720, %v2986, %v2983
        %2989 = vrot.lane.b32.xlu0 %v2874, 8
        %v2990 = vpop.permute.xlu0 %2989
        %2993 = vrot.lane.b32.xlu0 %v2921, 16
        %v2994 = vpop.permute.xlu0 %2993
        %2997 = vrot.lane.b32.xlu0 %v2968, 24
        %v2998 = vpop.permute.xlu0 %2997
        %v3000 = vsel %vm826, %v2827, %v2990
        %v3001 = vsel %vm1718, %v3000, %v2994
        %v3002 = vsel %vm1720, %v3001, %v2998
        %v3003 = vpack.c.bf16 %v3002, %v2987
        %v3004 = vlaneseq
        %v3005 = vshrl.u32 %v3004, 7
        %v3006 = vsub.s32 7, %v3005
        %v3007 = vrot.slane %v645, %v3006
        %v3012 = vunpack.c.l.b16 %v2005
        %v3013 = vunpack.c.l.b16 %v2006
        %v3014 = vunpack.c.l.b16 %v2007
        %v3015 = vunpack.c.l.b16 %v2008
        %v3016 = vpack.c.b16 %v3013, %v3012
        %v3017 = vpack.c.b16 %v3015, %v3014
        %v3021 = vsel %vm664, %v3003, 0
        %3023 = vmatprep.subr.bf16.mxu0 0
        %3024 = vmatpush1.bf16.msra.mxu0 0
        %3025 = vmatprep.subr.bf16.mxu0 0
        %3026 = vmatpush1.bf16.msra.mxu0 0
        %3027 = vmatprep.subr.bf16.mxu0 0
        %3028 = vmatpush1.bf16.msra.mxu0 0
        %3029 = vmatprep.subr.bf16.mxu0 0
        %3030 = vmatpush1.bf16.msra.mxu0 0
        %3031 = vmatprep.subr.bf16.mxu0 0
        %3032 = vmatpush1.bf16.msra.mxu0 0
        %3033 = vmatprep.subr.bf16.mxu0 0
        %3034 = vmatpush1.bf16.msra.mxu0 0
        %3035 = vmatprep.subr.bf16.mxu0 0
        %3036 = vmatpush1.bf16.msra.mxu0 %v3017
        %3037 = vmatprep.subr.bf16.mxu0 0
        %3038 = vmatpush1.bf16.msra.mxu0 %v3016
        %3039 = vmatprep.subr.bf16.mxu0 0
        %3040 = vmatpush2.bf16.msra.mxu0 0
        %3041 = vmatprep.subr.bf16.mxu0 0
        %3042 = vmatpush2.bf16.msra.mxu0 0
        %3043 = vmatprep.subr.bf16.mxu0 0
        %3044 = vmatpush2.bf16.msra.mxu0 0
        %3045 = vmatprep.subr.bf16.mxu0 0
        %3046 = vmatpush2.bf16.msra.mxu0 0
        %3047 = vmatprep.subr.bf16.mxu0 0
        %3048 = vmatpush2.bf16.msra.mxu0 0
        %3049 = vmatprep.subr.bf16.mxu0 0
        %3050 = vmatpush2.bf16.msra.mxu0 0
        %3051 = vmatprep.subr.bf16.mxu0 0
        %3052 = vmatpush2.bf16.msra.mxu0 0
        %3053 = vmatprep.subr.bf16.mxu0 0
        %3054 = vmatpush2.bf16.msra.mxu0 0
        %3055 = vmatprep.mubr.bf16.mxu0 0
        %3056 = vmatmul.mubr.bf16.gmra.mxu0 %v3021
        %v3057 = vpop.f32.mrf.mxu0
        %v3058 = vadd.f32 %v3007, %v3057
        %v3059 = vpop.f32.mrf.mxu0
        %v3060 = vpop.f32.mrf.mxu0
        %v3061 = vadd.f32 %v3007, %v3060
        %v3062 = vpop.f32.mrf.mxu0
        %3063 = vdwg.mxu0
        %v3064 = vadd.f32 %v1837, %v3058
        %v3065 = vadd.f32 %v1838, %v3061
        %v3066 = vsel %vm664, %v3064, 0.0
        %3067 = vadd.xlane.f32.xlu0 %v3066
        %v3068 = vpop.xlane.xlu0 %3067
        %v3069 = vsel %vm664, %v3065, 0.0
        %3070 = vadd.xlane.f32.xlu0 %v3069
        %v3071 = vpop.xlane.xlu0 %3070
        %v3072 = vmul.f32 %v3068, %v1806
        %v3073 = vmul.f32 %v3071, %v1806
        %v3074 = vsub.f32 %v3064, %v3072
        %v3075 = vsub.f32 %v3065, %v3073
        %v3076 = vmul.f32 %v3074, %v3074
        %v3077 = vmul.f32 %v3075, %v3075
        %v3078 = vsel %vm664, %v3076, 0.0
        %3079 = vadd.xlane.f32.xlu0 %v3078
        %v3080 = vpop.xlane.xlu0 %3079
        %v3081 = vsel %vm664, %v3077, 0.0
        %3082 = vadd.xlane.f32.xlu0 %v3081
        %v3083 = vpop.xlane.xlu0 %3082
        %v3084 = vmul.f32 %v3080, %v1806
        %v3085 = vmul.f32 %v3083, %v1806
        %v3086 = vadd.f32 %v3084, 1e-05
        %v3087 = vadd.f32 %v3085, 1e-05
        %v3088 = vrsqrt.pop %v3086
        %v3089 = vrsqrt.pop %v3087
        %v3090 = vmul.f32 %v3074, %v3088
        %v3091 = vmul.f32 %v3075, %v3089
        %v3092 = vmul.f32 %v3090, %v1830
        %v3093 = vmul.f32 %v3091, %v1830
        %v3094 = vadd.f32 %v3092, %v1836
        %v3095 = vadd.f32 %v3093, %v1836
        %v3096 = vpack.c.bf16 %v3095, %v3094
        %v3097 = vld [vmem:[%s511] sm:$0xf]
        %v3098 = vld [vmem:[%s511 + $0x4] sm:$0xf]
        %v3099 = vld [vmem:[%s511 + $0x8] sm:$0xf]
        %v3100 = vld [vmem:[%s511 + $0xc] sm:$0xf]
        %v3101 = vld [vmem:[%s628] sm:$0x1]
        %v3103 = vlaneseq
        %v3104 = vshrl.u32 %v3103, 7
        %v3105 = vsub.s32 0, %v3104
        %v3106 = vrot.slane %v3101, %v3105
        %v3112 = vunpack.c.l.b16 %v3097
        %v3113 = vunpack.c.l.b16 %v3098
        %v3114 = vunpack.c.l.b16 %v3099
        %v3115 = vunpack.c.l.b16 %v3100
        %v3116 = vpack.c.b16 %v3113, %v3112
        %v3117 = vpack.c.b16 %v3115, %v3114
        %v3121 = vsel %vm664, %v3096, 0
        %3123 = vmatprep.subr.bf16.mxu0 0
        %3124 = vmatpush1.bf16.msra.mxu0 0
        %3125 = vmatprep.subr.bf16.mxu0 0
        %3126 = vmatpush1.bf16.msra.mxu0 0
        %3127 = vmatprep.subr.bf16.mxu0 0
        %3128 = vmatpush1.bf16.msra.mxu0 0
        %3129 = vmatprep.subr.bf16.mxu0 0
        %3130 = vmatpush1.bf16.msra.mxu0 0
        %3131 = vmatprep.subr.bf16.mxu0 0
        %3132 = vmatpush1.bf16.msra.mxu0 0
        %3133 = vmatprep.subr.bf16.mxu0 0
        %3134 = vmatpush1.bf16.msra.mxu0 0
        %3135 = vmatprep.subr.bf16.mxu0 0
        %3136 = vmatpush1.bf16.msra.mxu0 %v3117
        %3137 = vmatprep.subr.bf16.mxu0 0
        %3138 = vmatpush1.bf16.msra.mxu0 %v3116
        %3139 = vmatprep.subr.bf16.mxu0 0
        %3140 = vmatpush2.bf16.msra.mxu0 0
        %3141 = vmatprep.subr.bf16.mxu0 0
        %3142 = vmatpush2.bf16.msra.mxu0 0
        %3143 = vmatprep.subr.bf16.mxu0 0
        %3144 = vmatpush2.bf16.msra.mxu0 0
        %3145 = vmatprep.subr.bf16.mxu0 0
        %3146 = vmatpush2.bf16.msra.mxu0 0
        %3147 = vmatprep.subr.bf16.mxu0 0
        %3148 = vmatpush2.bf16.msra.mxu0 0
        %3149 = vmatprep.subr.bf16.mxu0 0
        %3150 = vmatpush2.bf16.msra.mxu0 0
        %3151 = vmatprep.subr.bf16.mxu0 0
        %3152 = vmatpush2.bf16.msra.mxu0 0
        %3153 = vmatprep.subr.bf16.mxu0 0
        %3154 = vmatpush2.bf16.msra.mxu0 0
        %3155 = vmatprep.mubr.bf16.mxu0 0
        %3156 = vmatmul.mubr.bf16.gmra.mxu0 %v3121
        %v3157 = vpop.f32.mrf.mxu0
        %v3158 = vadd.f32 %v3106, %v3157
        %v3159 = vpop.f32.mrf.mxu0
        %v3160 = vpop.f32.mrf.mxu0
        %v3161 = vadd.f32 %v3106, %v3160
        %v3162 = vpop.f32.mrf.mxu0
        %3163 = vdwg.mxu0
        %v3164 = vmax.f32 %v3158, 0.0
        %v3165 = vmax.f32 %v3161, 0.0
        %v3166 = vpack.c.bf16 %v3165, %v3164
        %v3167 = vld [vmem:[%s620] sm:$0xf]
        %v3168 = vld [vmem:[%s620 + $0x4] sm:$0xf]
        %v3169 = vld [vmem:[%s620 + $0x8] sm:$0xf]
        %v3170 = vld [vmem:[%s620 + $0xc] sm:$0xf]
        %v3171 = vld [vmem:[%s620 + $0x10] sm:$0xf]
        %v3172 = vld [vmem:[%s620 + $0x14] sm:$0xf]
        %v3173 = vld [vmem:[%s620 + $0x18] sm:$0xf]
        %v3174 = vld [vmem:[%s620 + $0x1c] sm:$0xf]
        %v3175 = vlaneseq
        %v3176 = vshrl.u32 %v3175, 7
        %v3177 = vsub.s32 0, %v3176
        %v3178 = vrot.slane %v646, %v3177
        %v3187 = vunpack.c.l.b16 %v3167
        %v3188 = vunpack.c.l.b16 %v3168
        %v3189 = vunpack.c.l.b16 %v3169
        %v3190 = vunpack.c.l.b16 %v3170
        %v3191 = vunpack.c.l.b16 %v3171
        %v3192 = vunpack.c.l.b16 %v3172
        %v3193 = vunpack.c.l.b16 %v3173
        %v3194 = vunpack.c.l.b16 %v3174
        %v3195 = vpack.c.b16 %v3188, %v3187
        %v3196 = vpack.c.b16 %v3190, %v3189
        %v3197 = vpack.c.b16 %v3192, %v3191
        %v3198 = vpack.c.b16 %v3194, %v3193
        %vm3203 = vcmask 523264
        %v3205 = vsel %vm3203, %v3166, 0
        %3207 = vmatprep.subr.bf16.mxu0 0
        %3208 = vmatpush1.bf16.msra.mxu0 0
        %3209 = vmatprep.subr.bf16.mxu0 0
        %3210 = vmatpush1.bf16.msra.mxu0 0
        %3211 = vmatprep.subr.bf16.mxu0 0
        %3212 = vmatpush1.bf16.msra.mxu0 0
        %3213 = vmatprep.subr.bf16.mxu0 0
        %3214 = vmatpush1.bf16.msra.mxu0 0
        %3215 = vmatprep.subr.bf16.mxu0 0
        %3216 = vmatpush1.bf16.msra.mxu0 %v3198
        %3217 = vmatprep.subr.bf16.mxu0 0
        %3218 = vmatpush1.bf16.msra.mxu0 %v3197
        %3219 = vmatprep.subr.bf16.mxu0 0
        %3220 = vmatpush1.bf16.msra.mxu0 %v3196
        %3221 = vmatprep.subr.bf16.mxu0 0
        %3222 = vmatpush1.bf16.msra.mxu0 %v3195
        %3223 = vmatprep.subr.bf16.mxu0 0
        %3224 = vmatpush2.bf16.msra.mxu0 0
        %3225 = vmatprep.subr.bf16.mxu0 0
        %3226 = vmatpush2.bf16.msra.mxu0 0
        %3227 = vmatprep.subr.bf16.mxu0 0
        %3228 = vmatpush2.bf16.msra.mxu0 0
        %3229 = vmatprep.subr.bf16.mxu0 0
        %3230 = vmatpush2.bf16.msra.mxu0 0
        %3231 = vmatprep.subr.bf16.mxu0 0
        %3232 = vmatpush2.bf16.msra.mxu0 0
        %3233 = vmatprep.subr.bf16.mxu0 0
        %3234 = vmatpush2.bf16.msra.mxu0 0
        %3235 = vmatprep.subr.bf16.mxu0 0
        %3236 = vmatpush2.bf16.msra.mxu0 0
        %3237 = vmatprep.subr.bf16.mxu0 0
        %3238 = vmatpush2.bf16.msra.mxu0 0
        %3239 = vmatprep.mubr.bf16.mxu0 0
        %3240 = vmatmul.mubr.bf16.gmra.mxu0 %v3205
        %v3241 = vpop.f32.mrf.mxu0
        %v3242 = vadd.f32 %v3178, %v3241
        %v3243 = vpop.f32.mrf.mxu0
        %v3244 = vpop.f32.mrf.mxu0
        %v3245 = vadd.f32 %v3178, %v3244
        %v3246 = vpop.f32.mrf.mxu0
        %3247 = vdwg.mxu0
        %v3248 = vadd.f32 %v3094, %v3242
        %v3249 = vadd.f32 %v3095, %v3245
        %v3250 = vsel %vm664, %v3248, 0.0
        %3251 = vadd.xlane.f32.xlu0 %v3250
        %v3252 = vpop.xlane.xlu0 %3251
        %v3253 = vsel %vm664, %v3249, 0.0
        %3254 = vadd.xlane.f32.xlu0 %v3253
        %v3255 = vpop.xlane.xlu0 %3254
        %v3256 = vmul.f32 %v3252, %v1806
        %v3257 = vmul.f32 %v3255, %v1806
        %v3258 = vsub.f32 %v3248, %v3256
        %v3259 = vsub.f32 %v3249, %v3257
        %v3260 = vmul.f32 %v3258, %v3258
        %v3261 = vmul.f32 %v3259, %v3259
        %v3262 = vsel %vm664, %v3260, 0.0
        %3263 = vadd.xlane.f32.xlu0 %v3262
        %v3264 = vpop.xlane.xlu0 %3263
        %v3265 = vsel %vm664, %v3261, 0.0
        %3266 = vadd.xlane.f32.xlu0 %v3265
        %v3267 = vpop.xlane.xlu0 %3266
        %v3268 = vmul.f32 %v3264, %v1806
        %v3269 = vmul.f32 %v3267, %v1806
        %v3270 = vadd.f32 %v3268, 1e-05
        %v3271 = vadd.f32 %v3269, 1e-05
        %v3272 = vrsqrt.pop %v3270
        %v3273 = vrsqrt.pop %v3271
        %v3274 = vmul.f32 %v3258, %v3272
        %v3275 = vmul.f32 %v3259, %v3273
        %v3276 = vmul.f32 %v3274, %v1830
        %v3277 = vmul.f32 %v3275, %v1830
        %v3278 = vadd.f32 %v3276, %v1836
        %v3279 = vadd.f32 %v3277, %v1836
        %3280 = vst.msk [vmem:[#allocation2] sm:$0xff] %vm664, %v3278
        %3281 = vst.msk [vmem:[#allocation2 + $0x8] sm:$0xff] %vm664, %v3279
        %p3282 = scmp.eq.s32.totalorder %s28, 2
        // Predicated region
        $region89: #{decoder_forward.1} parent=71 // pred_check
          %p3283 = pneg %p3282
        $region90: #{decoder_forward.1} parent=71 // pred_check_branch
          %3285 = sbr.rel (%p3283) target = $region92
        $region91: #{decoder_forward.1} parent=71 // pred_region
          %v3286 = vld [vmem:[%s12] sm:$0x77]
          %v3287 = vmul.f32 %v3278, %v3278
          %v3288 = vsel %vm664, %v3287, 0.0
          %3289 = vadd.xlane.f32.xlu0 %v3288
          %v3290 = vpop.xlane.xlu0 %3289
          %v3291 = vrsqrt.pop %v3290
          %v3292 = vmul.f32 %v3290, %v3291
          %vm3293 = vcmp.eq.f32.partialorder %v3290, inf
          %v3294 = vsel %vm3293, %v3290, %v3292
          %vm3295 = vcmp.eq.f32.partialorder %v3290, 0.0
          %v3296 = vand.u32 %v3290, 2147483648
          %v3297 = vsel %vm3295, %v3296, %v3294
          %v3298 = vrot.slane %v3297, 4
          %v3299 = vmax.f32 %v3297, %v3298
          %v3300 = vrot.slane %v3299, 2
          %v3301 = vmax.f32 %v3299, %v3300
          %v3302 = vrot.slane %v3301, 1
          %v3303 = vmax.f32 %v3301, %v3302
          %v3304 = vsub.f32 %v3297, %v3303
          %v3305 = vmul.f32 %v3304, 1.442695
          %v3306 = vpow.pop %v3305
          %v3307 = vrot.slane %v3306, 4
          %v3308 = vadd.f32 %v3306, %v3307
          %v3309 = vrot.slane %v3308, 2
          %v3310 = vadd.f32 %v3308, %v3309
          %v3311 = vrot.slane %v3310, 1
          %v3312 = vadd.f32 %v3310, %v3311
          %v3313 = vrcp.pop %v3312
          %v3314 = vmul.f32 %v3306, %v3313
          %v3315 = vmul.f32 %v3314, %v3278
          %v3316 = vsel %vm664, %v3315, 0.0
          %v3317 = vrot.slane %v3316, 4
          %v3318 = vadd.f32 %v3316, %v3317
          %v3319 = vrot.slane %v3318, 2
          %v3320 = vadd.f32 %v3318, %v3319
          %v3321 = vrot.slane %v3320, 1
          %v3322 = vadd.f32 %v3320, %v3321
          %v3323 = vmul.f32 %v3279, %v3279
          %v3324 = vsel %vm664, %v3323, 0.0
          %3325 = vadd.xlane.f32.xlu0 %v3324
          %v3326 = vpop.xlane.xlu0 %3325
          %v3327 = vrsqrt.pop %v3326
          %v3328 = vmul.f32 %v3326, %v3327
          %vm3329 = vcmp.eq.f32.partialorder %v3326, inf
          %v3330 = vsel %vm3329, %v3326, %v3328
          %vm3331 = vcmp.eq.f32.partialorder %v3326, 0.0
          %v3332 = vand.u32 %v3326, 2147483648
          %v3333 = vsel %vm3331, %v3332, %v3330
          %v3334 = vrot.slane %v3333, 4
          %v3335 = vmax.f32 %v3333, %v3334
          %v3336 = vrot.slane %v3335, 2
          %v3337 = vmax.f32 %v3335, %v3336
          %v3338 = vrot.slane %v3337, 1
          %v3339 = vmax.f32 %v3337, %v3338
          %v3340 = vsub.f32 %v3333, %v3339
          %v3341 = vmul.f32 %v3340, 1.442695
          %v3342 = vpow.pop %v3341
          %v3343 = vrot.slane %v3342, 4
          %v3344 = vadd.f32 %v3342, %v3343
          %v3345 = vrot.slane %v3344, 2
          %v3346 = vadd.f32 %v3344, %v3345
          %v3347 = vrot.slane %v3346, 1
          %v3348 = vadd.f32 %v3346, %v3347
          %v3349 = vrcp.pop %v3348
          %v3350 = vmul.f32 %v3342, %v3349
          %v3351 = vmul.f32 %v3350, %v3279
          %v3352 = vsel %vm664, %v3351, 0.0
          %v3353 = vrot.slane %v3352, 4
          %v3354 = vadd.f32 %v3352, %v3353
          %v3355 = vrot.slane %v3354, 2
          %v3356 = vadd.f32 %v3354, %v3355
          %v3357 = vrot.slane %v3356, 1
          %v3358 = vadd.f32 %v3356, %v3357
          %vm3359 = vcmask 1040384
          %v3360 = vsel %vm3359, %v3322, %v3358
          %v3361 = vpack.c.bf16 %v3360, %v3360
          %v3362 = vld [vmem:[#allocation7] sm:$0xff]
          %v3363 = vld [vmem:[#allocation7 + $0x8] sm:$0xff]
          %v3364 = vld [vmem:[#allocation7 + $0x10] sm:$0xff]
          %v3365 = vld [vmem:[#allocation7 + $0x18] sm:$0xff]
          %v3367 = vlaneseq
          %v3368 = vshrl.u32 %v3367, 7
          %v3369 = vsub.s32 0, %v3368
          %v3370 = vrot.slane %v3286, %v3369
          %v3371 = vlaneseq
          %v3372 = vshrl.u32 %v3371, 7
          %v3373 = vsub.s32 4, %v3372
          %v3374 = vrot.slane %v3286, %v3373
          %v3377 = vlaneseq
          %v3378 = vshrl.u32 %v3377, 7
          %v3379 = vsub.s32 0, %v3378
          %v3380 = vrot.slane %v3370, %v3379
          %v3381 = vlaneseq
          %v3382 = vshrl.u32 %v3381, 7
          %v3383 = vsub.s32 0, %v3382
          %v3384 = vrot.slane %v3374, %v3383
          %v3389 = vunpack.c.l.b16 %v3362
          %v3390 = vunpack.c.h.b16 %v3362
          %v3391 = vunpack.c.l.b16 %v3363
          %v3392 = vunpack.c.h.b16 %v3363
          %v3393 = vunpack.c.l.b16 %v3364
          %v3394 = vunpack.c.h.b16 %v3364
          %v3395 = vunpack.c.l.b16 %v3365
          %v3396 = vunpack.c.h.b16 %v3365
          %v3397 = vpack.c.b16 %v3391, %v3389
          %v3398 = vpack.c.b16 %v3392, %v3390
          %v3399 = vpack.c.b16 %v3395, %v3393
          %v3400 = vpack.c.b16 %v3396, %v3394
          %v3406 = vsel %vm664, %v3361, 0
          %3408 = vmatprep.subr.bf16.mxu0 0
          %3409 = vmatpush1.bf16.msra.mxu0 0
          %3410 = vmatprep.subr.bf16.mxu0 0
          %3411 = vmatpush1.bf16.msra.mxu0 0
          %3412 = vmatprep.subr.bf16.mxu0 0
          %3413 = vmatpush1.bf16.msra.mxu0 0
          %3414 = vmatprep.subr.bf16.mxu0 0
          %3415 = vmatpush1.bf16.msra.mxu0 0
          %3416 = vmatprep.subr.bf16.mxu0 0
          %3417 = vmatpush1.bf16.msra.mxu0 0
          %3418 = vmatprep.subr.bf16.mxu0 0
          %3419 = vmatpush1.bf16.msra.mxu0 0
          %3420 = vmatprep.subr.bf16.mxu0 %v3400
          %3421 = vmatpush1.bf16.msra.mxu0 %v3399
          %3422 = vmatprep.subr.bf16.mxu0 %v3398
          %3423 = vmatpush1.bf16.msra.mxu0 %v3397
          %3424 = vmatprep.subr.bf16.mxu0 0
          %3425 = vmatpush2.bf16.msra.mxu0 0
          %3426 = vmatprep.subr.bf16.mxu0 0
          %3427 = vmatpush2.bf16.msra.mxu0 0
          %3428 = vmatprep.subr.bf16.mxu0 0
          %3429 = vmatpush2.bf16.msra.mxu0 0
          %3430 = vmatprep.subr.bf16.mxu0 0
          %3431 = vmatpush2.bf16.msra.mxu0 0
          %3432 = vmatprep.subr.bf16.mxu0 0
          %3433 = vmatpush2.bf16.msra.mxu0 0
          %3434 = vmatprep.subr.bf16.mxu0 0
          %3435 = vmatpush2.bf16.msra.mxu0 0
          %3436 = vmatprep.subr.bf16.mxu0 0
          %3437 = vmatpush2.bf16.msra.mxu0 0
          %3438 = vmatprep.subr.bf16.mxu0 0
          %3439 = vmatpush2.bf16.msra.mxu0 0
          %3440 = vmatprep.mubr.bf16.mxu0 0
          %3441 = vmatmul.mubr.bf16.gmra.mxu0 %v3406
          %v3442 = vpop.f32.mrf.mxu0
          %v3443 = vadd.f32 %v3380, %v3442
          %v3444 = vpop.f32.mrf.mxu0
          %v3445 = vadd.f32 %v3384, %v3444
          %v3446 = vpop.f32.mrf.mxu0
          %v3447 = vpop.f32.mrf.mxu0
          %3448 = vdwg.mxu0
          %v3449 = vmax.f32 %v3443, 0.0
          %v3450 = vmax.f32 %v3445, 0.0
          %v3451 = vlaneseq
          %v3452 = vshrl.u32 %v3451, 7
          %v3453 = vsub.s32 1, %v3452
          %v3454 = vrot.slane %v3286, %v3453
          %v3455 = vlaneseq
          %v3456 = vshrl.u32 %v3455, 7
          %v3457 = vsub.s32 5, %v3456
          %v3458 = vrot.slane %v3286, %v3457
          %v3461 = vlaneseq
          %v3462 = vshrl.u32 %v3461, 7
          %v3463 = vsub.s32 1, %v3462
          %v3464 = vrot.slane %v3454, %v3463
          %v3465 = vlaneseq
          %v3466 = vshrl.u32 %v3465, 7
          %v3467 = vsub.s32 1, %v3466
          %v3468 = vrot.slane %v3458, %v3467
          %v3469 = vmul.f32 %v3449, %v3464
          %v3470 = vmul.f32 %v3450, %v3468
          %vm3471 = vcmask 1041408
          %v3472 = vsel %vm3471, %v3469, 0.0
          %v3473 = vsel %vm3471, %v3470, 0.0
          %v3474 = vadd.f32 %v3472, %v3473
          %3475 = vadd.xlane.f32.xlu0 %v3474
          %v3476 = vpop.xlane.xlu0 %3475
          %v3477 = vlaneseq
          %v3478 = vshrl.u32 %v3477, 7
          %v3479 = vsub.s32 2, %v3478
          %v3480 = vrot.slane %v3286, %v3479
          %v3481 = vadd.f32 %v3476, %v3480
          %vm3482 = vcmask 1024
          %3483 = vst.msk [vmem:[%s13] sm:$0x3] %vm3482, %v3481
        $region92: #{decoder_forward.1} parent=71 // pred_fallthru
          _
        // Predicated region
        $region93: #{decoder_forward.1} parent=71 // pred_check
          %p3484 = pneg %p359
        $region94: #{decoder_forward.1} parent=71 // pred_check_branch
          %3486 = sbr.rel (%p3484) target = $region96
        $region95: #{decoder_forward.1} parent=71 // pred_region
          _
        $region96: #{decoder_forward.1} parent=71 // pred_fallthru
          _
        // Predicated region
        $region97: #{decoder_forward.1} parent=71 // pred_check
          %p3487 = pneg %p359
        $region98: #{decoder_forward.1} parent=71 // pred_check_branch
          %3489 = sbr.rel (%p3487) target = $region100
        $region99: #{decoder_forward.1} parent=71 // pred_region
          _
        $region100: #{decoder_forward.1} parent=71 // pred_fallthru
          _
      $region72: #{decoder_forward.1} parent=5 // pred_fallthru
        _
      %p3490 = scmp.le.s32.totalorder 2, %s23
      // Predicated region
      $region101: #{decoder_forward.1} parent=5 // pred_check
        %p3491 = pneg %p3490
      $region102: #{decoder_forward.1} parent=5 // pred_check_branch
        %3493 = sbr.rel (%p3491) target = $region104
      $region103: #{decoder_forward.1} parent=5 // pred_region
        %s3494 = ssub.s32 %s23, 2
      $region104: #{decoder_forward.1} parent=5 // pred_fallthru
        _
    $region6: #{decoder_forward.1} parent=1 // loop_footer
      %s27 = sadd.s32 1, %s23
    $region7: #{decoder_forward.1} parent=1 // loop_footer_branch
      %22 = sbr.rel target = $region3
    $region8: #{decoder_forward.1} parent=1 // loop_exit
      _
    %3495 = vsyncpa [#allocation4], 1
    %s3496 = scalar_lea.sflag [#allocation4], 1
    %3497 = vsyncpa %s3496, 1
    %3498 = vsyncpa [#allocation6], 1
    %s3499 = scalar_lea.sflag [#allocation6], 1
    %3500 = vsyncpa %s3499, 1

</llo_original>
